<compile_context>
chip_gen: v7x
topology: tpu7x:2x2x1
jax: 0.10.0
libtpu: 0.0.40
codegen_flags: <defaults>
</compile_context>

<pallas_src>
import jax
import jax.numpy as jnp
from jax import lax
from jax.experimental import pallas as pl
from jax.experimental.pallas import tpu as pltpu


def _round_up(x: int, m: int) -> int:
    return ((x + m - 1) // m) * m


# ------------------------------ fused kernel -------------------------------- #

def _make_fused_kernel(layer_shapes):
    """layer_shapes: tuple of (H, W, K, Cin, Cout) per conv layer (per-image
    conv-input spatial size). A 2x2 max-pool precedes every conv but the first."""
    L = len(layer_shapes)

    def kernel(*refs):
        x_ref = refs[0]
        wb_refs = refs[1:1 + 2 * L]          # w0, b0, w1, b1, ...  (w is (K, K*Cin, Cout))
        o_ref = refs[1 + 2 * L]
        scratch = refs[2 + 2 * L:]
        pad_refs = scratch[:L]               # zero-padded conv inputs
        unr_refs = scratch[L:2 * L]          # kw-unrolled conv inputs
        stage_refs = scratch[2 * L:]         # pre-pool conv outputs (layers 0..L-2)

        def conv_relu(pad_ref, unr_ref, w_ref, b_ref, H, W, K, Cin, Cout, Wc):
            # pad_ref: (1, H+K-1, K-1+Wc, Cin), zero halo.
            # Build kw-unrolled input once:  unr[:, a, w, kw*Cin + c] = pad[:, a, w+kw, c]
            unr_ref[...] = jnp.concatenate(
                [pad_ref[:, :, pl.ds(kw, Wc), :] for kw in range(K)], axis=-1)
            # K matmuls (one per kh), contracting over (kw, Cin) at once.
            acc = jnp.zeros((H * Wc, Cout), jnp.float32)
            for kh in range(K):
                xs = unr_ref[:, pl.ds(kh, H), :, :]
                xs = xs.reshape(H * Wc, K * Cin)       # layout-preserving (Wc % 8 == 0)
                acc = acc + jnp.dot(xs, w_ref[kh],
                                    preferred_element_type=jnp.float32)
            acc = jnp.maximum(acc + b_ref[...], 0.0)   # bias added once per conv
            return acc.reshape(1, H, Wc, Cout)         # layout-preserving split

        def maxpool2(s_ref, H, W):
            Ho, Wo = H // 2, W // 2
            a = s_ref[:, pl.ds(0, Ho, stride=2), pl.ds(0, Wo, stride=2), :]
            b = s_ref[:, pl.ds(0, Ho, stride=2), pl.ds(1, Wo, stride=2), :]
            c = s_ref[:, pl.ds(1, Ho, stride=2), pl.ds(0, Wo, stride=2), :]
            d = s_ref[:, pl.ds(1, Ho, stride=2), pl.ds(1, Wo, stride=2), :]
            return jnp.maximum(jnp.maximum(a, b), jnp.maximum(c, d))

        for i, (H, W, K, Cin, Cout) in enumerate(layer_shapes):
            p = K // 2
            Wc = max(_round_up(W, 8), 8)
            pad_ref = pad_refs[i]
            w_ref, b_ref = wb_refs[2 * i], wb_refs[2 * i + 1]

            # zero halo, then write the (pooled) activation into the interior
            pad_ref[...] = jnp.zeros(pad_ref.shape, jnp.float32)
            if i == 0:
                pad_ref[:, pl.ds(p, H), pl.ds(p, W), :] = x_ref[...]
            else:
                Hp, Wp = layer_shapes[i - 1][0], layer_shapes[i - 1][1]
                pad_ref[:, pl.ds(p, H), pl.ds(p, W), :] = maxpool2(
                    stage_refs[i - 1], Hp, Wp)

            y = conv_relu(pad_ref, unr_refs[i], w_ref, b_ref,
                          H, W, K, Cin, Cout, Wc)

            if i < L - 1:
                stage_refs[i][...] = y                 # stays in VMEM for the pool
            else:
                o_ref[...] = y[:, :, 0:W, :]           # drop over-slice garbage cols

    return kernel


# ------------------------------ module wrapper ------------------------------ #

def motion_encoder_forward(x_nchw, params):
    """x: (N, C, H, W) NCHW (PyTorch layout). params: list of (w_hwio, bias)."""
    N, C0, H0, W0 = x_nchw.shape
    x_nhwc = jnp.transpose(x_nchw, (0, 2, 3, 1)).astype(jnp.float32)

    layer_shapes = []
    flat_args = []
    H, W = H0, W0
    for li, (w, b) in enumerate(params):
        K, _, Cin, Cout = w.shape
        if li > 0:
            H, W = H // 2, W // 2                       # MaxPool2d(2) before this conv
        layer_shapes.append((H, W, K, Cin, Cout))
        # Host-side reshape to the kw-unrolled layout: (K, K*Cin, Cout)
        flat_args.append(w.reshape(K, K * Cin, Cout).astype(jnp.float32))
        flat_args.append(b.reshape(1, -1).astype(jnp.float32))
    L = len(layer_shapes)
    Hl, Wl, _, _, Cl = layer_shapes[-1]

    in_specs = [pl.BlockSpec((1, H0, W0, C0), lambda n: (n, 0, 0, 0))]
    for w2, b2 in zip(flat_args[0::2], flat_args[1::2]):
        in_specs.append(pl.BlockSpec(tuple(w2.shape), lambda n: (0, 0, 0)))
        in_specs.append(pl.BlockSpec(tuple(b2.shape), lambda n: (0, 0)))
    out_spec = pl.BlockSpec((1, Hl, Wl, Cl), lambda n: (n, 0, 0, 0))

    scratch_shapes = []
    for (H, W, K, Cin, Cout) in layer_shapes:           # padded conv inputs
        Wc = max(_round_up(W, 8), 8)
        scratch_shapes.append(
            pltpu.VMEM((1, H + K - 1, K - 1 + Wc, Cin), jnp.float32))
    for (H, W, K, Cin, Cout) in layer_shapes:           # kw-unrolled conv inputs
        Wc = max(_round_up(W, 8), 8)
        scratch_shapes.append(
            pltpu.VMEM((1, H + K - 1, Wc, K * Cin), jnp.float32))
    for (H, W, K, Cin, Cout) in layer_shapes[:-1]:      # pre-pool conv outputs
        Wc = max(_round_up(W, 8), 8)
        scratch_shapes.append(pltpu.VMEM((1, H, Wc, Cout), jnp.float32))

    kernel = _make_fused_kernel(tuple(layer_shapes))

    out_nhwc = pl.pallas_call(
        kernel,
        out_shape=jax.ShapeDtypeStruct((N, Hl, Wl, Cl), jnp.float32),
        grid_spec=pltpu.PrefetchScalarGridSpec(
            num_scalar_prefetch=0,
            grid=(N,),
            in_specs=in_specs,
            out_specs=out_spec,
            scratch_shapes=scratch_shapes),
        compiler_params=pltpu.CompilerParams(
            dimension_semantics=("parallel",)),
    )(x_nhwc, *flat_args)

    return jnp.transpose(out_nhwc, (0, 3, 1, 2))        # NHWC -> NCHW


# -------------------------------- parameters -------------------------------- #

def init_params(key, in_channels, model_channels, n_downs):
    """Deterministic synthetic parameters. Weight layout: HWIO = (K, K, Cin, Cout)."""
    specs = []
    cin, cout = in_channels, model_channels
    specs.append((5, cin, cout))
    for _ in range(n_downs - 1):
        cin, cout = cout, cout * 2
        specs.append((5, cin, cout))
    cin, cout = cout, cout * 2
    specs.append((7, cin, cout))

    params = []
    for i, (k, ci, co) in enumerate(specs):
        kw_key, kb_key = jax.random.split(jax.random.fold_in(key, i))
        fan_in = k * k * ci
        w = jax.random.normal(kw_key, (k, k, ci, co), jnp.float32) / jnp.sqrt(fan_in)
        b = jax.random.normal(kb_key, (co,), jnp.float32) * 0.01
        params.append((w, b))
    return params


# ------------------------------ pure-JAX reference --------------------------- #

def motion_encoder_reference(x_nchw, params):
    x = jnp.transpose(x_nchw, (0, 2, 3, 1)).astype(jnp.float32)

    def conv(x, w, b):
        y = lax.conv_general_dilated(
            x, w, window_strides=(1, 1), padding="SAME",
            dimension_numbers=("NHWC", "HWIO", "NHWC"),
            precision=lax.Precision.HIGHEST)
        return jnp.maximum(y + b, 0.0)

    def pool(x):
        return lax.reduce_window(x, -jnp.inf, lax.max,
                                 (1, 2, 2, 1), (1, 2, 2, 1), "VALID")

    w, b = params[0]
    x = conv(x, w, b)
    for (w, b) in params[1:]:
        x = pool(x)
        x = conv(x, w, b)
    return jnp.transpose(x, (0, 3, 1, 2))


# ----------------------------------- main ------------------------------------ #

if __name__ == "__main__":
    key = jax.random.PRNGKey(0)
    k_x, k_p = jax.random.split(key)

    in_channels, model_channels, n_downs = 4, 8, 2
    N, H, W = 2, 16, 16

    x = jax.random.normal(k_x, (N, in_channels, H, W), jnp.float32)   # NCHW input
    params = init_params(k_p, in_channels, model_channels, n_downs)

    fwd = jax.jit(motion_encoder_forward)
    out = jax.block_until_ready(fwd(x, params))

    expected_shape = (N, model_channels * (2 ** n_downs),
                      H // (2 ** n_downs), W // (2 ** n_downs))
    assert out.shape == expected_shape, (out.shape, expected_shape)

    ref = jax.block_until_ready(motion_encoder_reference(x, params))
    max_err = float(jnp.max(jnp.abs(out - ref)))
    assert jnp.allclose(out, ref, rtol=1e-4, atol=1e-4), max_err

    print("KERNEL_OK")
</pallas_src>

<mosaic_0001>
module attributes {stable_mosaic.version = 11 : i64} {
  func.func @kernel(%arg0: i32, %arg1: memref<1x16x16x4xf32, #tpu.memory_space<vmem>>, %arg2: memref<5x20x8xf32, #tpu.memory_space<vmem>>, %arg3: memref<1x8xf32, #tpu.memory_space<vmem>>, %arg4: memref<5x40x16xf32, #tpu.memory_space<vmem>>, %arg5: memref<1x16xf32, #tpu.memory_space<vmem>>, %arg6: memref<7x112x32xf32, #tpu.memory_space<vmem>>, %arg7: memref<1x32xf32, #tpu.memory_space<vmem>>, %arg8: memref<1x4x4x32xf32, #tpu.memory_space<vmem>>, %arg9: memref<1x20x20x4xf32, #tpu.memory_space<vmem>>, %arg10: memref<1x12x12x8xf32, #tpu.memory_space<vmem>>, %arg11: memref<1x10x14x16xf32, #tpu.memory_space<vmem>>, %arg12: memref<1x20x16x20xf32, #tpu.memory_space<vmem>>, %arg13: memref<1x12x8x40xf32, #tpu.memory_space<vmem>>, %arg14: memref<1x10x8x112xf32, #tpu.memory_space<vmem>>, %arg15: memref<1x16x16x8xf32, #tpu.memory_space<vmem>>, %arg16: memref<1x8x8x16xf32, #tpu.memory_space<vmem>>) attributes {dimension_semantics = [#tpu.dimension_semantics<parallel>], iteration_bounds = array<i64: 2>, scalar_prefetch = 0 : i64, scratch_operands = 8 : i64, tpu.core_type = #tpu.core_type<tc>, window_params = [{transform_indices = @transform_0, window_bounds = array<i64: 1, 16, 16, 4>}, {pipeline_mode = #tpu.pipeline_mode<synchronous>, transform_indices = @transform_1, window_bounds = array<i64: 5, 20, 8>}, {pipeline_mode = #tpu.pipeline_mode<synchronous>, transform_indices = @transform_2, window_bounds = array<i64: 1, 8>}, {pipeline_mode = #tpu.pipeline_mode<synchronous>, transform_indices = @transform_3, window_bounds = array<i64: 5, 40, 16>}, {pipeline_mode = #tpu.pipeline_mode<synchronous>, transform_indices = @transform_4, window_bounds = array<i64: 1, 16>}, {pipeline_mode = #tpu.pipeline_mode<synchronous>, transform_indices = @transform_5, window_bounds = array<i64: 7, 112, 32>}, {pipeline_mode = #tpu.pipeline_mode<synchronous>, transform_indices = @transform_6, window_bounds = array<i64: 1, 32>}, {transform_indices = @transform_7, window_bounds = array<i64: 1, 4, 4, 32>}]} {
    %cst = arith.constant 0.000000e+00 : f32
    %0 = vector.broadcast %cst : f32 to vector<1x20x20x4xf32>
    %c0 = arith.constant 0 : index
    %c0_0 = arith.constant 0 : index
    %c0_1 = arith.constant 0 : index
    %c0_2 = arith.constant 0 : index
    %1 = vector.load %arg9[%c0, %c0_0, %c0_1, %c0_2] : memref<1x20x20x4xf32, #tpu.memory_space<vmem>>, vector<1x20x20x4xf32>
    tpu.vector_store %arg9[%c0, %c0_0, %c0_1, %c0_2], %0 {strides = array<i32>} : memref<1x20x20x4xf32, #tpu.memory_space<vmem>>, vector<1x20x20x4xf32>,
    %c0_3 = arith.constant 0 : index
    %c0_4 = arith.constant 0 : index
    %c0_5 = arith.constant 0 : index
    %c0_6 = arith.constant 0 : index
    %2 = vector.load %arg1[%c0_3, %c0_4, %c0_5, %c0_6] : memref<1x16x16x4xf32, #tpu.memory_space<vmem>>, vector<1x16x16x4xf32>
    %c0_7 = arith.constant 0 : index
    %c2 = arith.constant 2 : index
    %c2_8 = arith.constant 2 : index
    %c0_9 = arith.constant 0 : index
    %3 = vector.load %arg9[%c0_7, %c2, %c2_8, %c0_9] : memref<1x20x20x4xf32, #tpu.memory_space<vmem>>, vector<1x16x16x4xf32>
    tpu.vector_store %arg9[%c0_7, %c2, %c2_8, %c0_9], %2 {strides = array<i32>} : memref<1x20x20x4xf32, #tpu.memory_space<vmem>>, vector<1x16x16x4xf32>,
    %c0_10 = arith.constant 0 : index
    %c0_11 = arith.constant 0 : index
    %c0_12 = arith.constant 0 : index
    %c0_13 = arith.constant 0 : index
    %4 = vector.load %arg9[%c0_10, %c0_11, %c0_12, %c0_13] : memref<1x20x20x4xf32, #tpu.memory_space<vmem>>, vector<1x20x16x4xf32>
    %c0_14 = arith.constant 0 : index
    %c0_15 = arith.constant 0 : index
    %c1 = arith.constant 1 : index
    %c0_16 = arith.constant 0 : index
    %5 = vector.load %arg9[%c0_14, %c0_15, %c1, %c0_16] : memref<1x20x20x4xf32, #tpu.memory_space<vmem>>, vector<1x20x16x4xf32>
    %c0_17 = arith.constant 0 : index
    %c0_18 = arith.constant 0 : index
    %c2_19 = arith.constant 2 : index
    %c0_20 = arith.constant 0 : index
    %6 = vector.load %arg9[%c0_17, %c0_18, %c2_19, %c0_20] : memref<1x20x20x4xf32, #tpu.memory_space<vmem>>, vector<1x20x16x4xf32>
    %c0_21 = arith.constant 0 : index
    %c0_22 = arith.constant 0 : index
    %c3 = arith.constant 3 : index
    %c0_23 = arith.constant 0 : index
    %7 = vector.load %arg9[%c0_21, %c0_22, %c3, %c0_23] : memref<1x20x20x4xf32, #tpu.memory_space<vmem>>, vector<1x20x16x4xf32>
    %c0_24 = arith.constant 0 : index
    %c0_25 = arith.constant 0 : index
    %c4 = arith.constant 4 : index
    %c0_26 = arith.constant 0 : index
    %8 = vector.load %arg9[%c0_24, %c0_25, %c4, %c0_26] : memref<1x20x20x4xf32, #tpu.memory_space<vmem>>, vector<1x20x16x4xf32>
    %9 = tpu.concatenate %4, %5, %6, %7, %8 in 3 : vector<1x20x16x4xf32>, vector<1x20x16x4xf32>, vector<1x20x16x4xf32>, vector<1x20x16x4xf32>, vector<1x20x16x4xf32> -> vector<1x20x16x20xf32>
    %c0_27 = arith.constant 0 : index
    %c0_28 = arith.constant 0 : index
    %c0_29 = arith.constant 0 : index
    %c0_30 = arith.constant 0 : index
    %10 = vector.load %arg12[%c0_27, %c0_28, %c0_29, %c0_30] : memref<1x20x16x20xf32, #tpu.memory_space<vmem>>, vector<1x20x16x20xf32>
    tpu.vector_store %arg12[%c0_27, %c0_28, %c0_29, %c0_30], %9 {strides = array<i32>} : memref<1x20x16x20xf32, #tpu.memory_space<vmem>>, vector<1x20x16x20xf32>,
    %cst_31 = arith.constant 0.000000e+00 : f32
    %11 = vector.broadcast %cst_31 : f32 to vector<256x8xf32>
    %c0_32 = arith.constant 0 : index
    %c0_33 = arith.constant 0 : index
    %c0_34 = arith.constant 0 : index
    %c0_35 = arith.constant 0 : index
    %12 = vector.load %arg12[%c0_32, %c0_33, %c0_34, %c0_35] : memref<1x20x16x20xf32, #tpu.memory_space<vmem>>, vector<1x16x16x20xf32>
    %13 = vector.shape_cast %12 : vector<1x16x16x20xf32> to vector<256x20xf32>
    %c0_36 = arith.constant 0 : index
    %c0_37 = arith.constant 0 : index
    %c0_38 = arith.constant 0 : index
    %14 = vector.load %arg2[%c0_36, %c0_37, %c0_38] : memref<5x20x8xf32, #tpu.memory_space<vmem>>, vector<1x20x8xf32>
    %15 = vector.shape_cast %14 : vector<1x20x8xf32> to vector<20x8xf32>
    %cst_39 = arith.constant dense<0.000000e+00> : vector<256x8xf32>
    %16 = tpu.matmul %13, %15, %cst_39 {dimension_numbers = #tpu.dot_dimension_numbers<[1], [0], [0], [1], [0, 0, 1, 1], [], []>} : vector<256x20xf32>, vector<20x8xf32>, vector<256x8xf32> -> vector<256x8xf32>
    %17 = arith.addf %11, %16 : vector<256x8xf32>
    %c0_40 = arith.constant 0 : index
    %c1_41 = arith.constant 1 : index
    %c0_42 = arith.constant 0 : index
    %c0_43 = arith.constant 0 : index
    %18 = vector.load %arg12[%c0_40, %c1_41, %c0_42, %c0_43] : memref<1x20x16x20xf32, #tpu.memory_space<vmem>>, vector<1x16x16x20xf32>
    %19 = vector.shape_cast %18 : vector<1x16x16x20xf32> to vector<256x20xf32>
    %c1_44 = arith.constant 1 : index
    %c0_45 = arith.constant 0 : index
    %c0_46 = arith.constant 0 : index
    %20 = vector.load %arg2[%c1_44, %c0_45, %c0_46] : memref<5x20x8xf32, #tpu.memory_space<vmem>>, vector<1x20x8xf32>
    %21 = vector.shape_cast %20 : vector<1x20x8xf32> to vector<20x8xf32>
    %cst_47 = arith.constant dense<0.000000e+00> : vector<256x8xf32>
    %22 = tpu.matmul %19, %21, %cst_47 {dimension_numbers = #tpu.dot_dimension_numbers<[1], [0], [0], [1], [0, 0, 1, 1], [], []>} : vector<256x20xf32>, vector<20x8xf32>, vector<256x8xf32> -> vector<256x8xf32>
    %23 = arith.addf %17, %22 : vector<256x8xf32>
    %c0_48 = arith.constant 0 : index
    %c2_49 = arith.constant 2 : index
    %c0_50 = arith.constant 0 : index
    %c0_51 = arith.constant 0 : index
    %24 = vector.load %arg12[%c0_48, %c2_49, %c0_50, %c0_51] : memref<1x20x16x20xf32, #tpu.memory_space<vmem>>, vector<1x16x16x20xf32>
    %25 = vector.shape_cast %24 : vector<1x16x16x20xf32> to vector<256x20xf32>
    %c2_52 = arith.constant 2 : index
    %c0_53 = arith.constant 0 : index
    %c0_54 = arith.constant 0 : index
    %26 = vector.load %arg2[%c2_52, %c0_53, %c0_54] : memref<5x20x8xf32, #tpu.memory_space<vmem>>, vector<1x20x8xf32>
    %27 = vector.shape_cast %26 : vector<1x20x8xf32> to vector<20x8xf32>
    %cst_55 = arith.constant dense<0.000000e+00> : vector<256x8xf32>
    %28 = tpu.matmul %25, %27, %cst_55 {dimension_numbers = #tpu.dot_dimension_numbers<[1], [0], [0], [1], [0, 0, 1, 1], [], []>} : vector<256x20xf32>, vector<20x8xf32>, vector<256x8xf32> -> vector<256x8xf32>
    %29 = arith.addf %23, %28 : vector<256x8xf32>
    %c0_56 = arith.constant 0 : index
    %c3_57 = arith.constant 3 : index
    %c0_58 = arith.constant 0 : index
    %c0_59 = arith.constant 0 : index
    %30 = vector.load %arg12[%c0_56, %c3_57, %c0_58, %c0_59] : memref<1x20x16x20xf32, #tpu.memory_space<vmem>>, vector<1x16x16x20xf32>
    %31 = vector.shape_cast %30 : vector<1x16x16x20xf32> to vector<256x20xf32>
    %c3_60 = arith.constant 3 : index
    %c0_61 = arith.constant 0 : index
    %c0_62 = arith.constant 0 : index
    %32 = vector.load %arg2[%c3_60, %c0_61, %c0_62] : memref<5x20x8xf32, #tpu.memory_space<vmem>>, vector<1x20x8xf32>
    %33 = vector.shape_cast %32 : vector<1x20x8xf32> to vector<20x8xf32>
    %cst_63 = arith.constant dense<0.000000e+00> : vector<256x8xf32>
    %34 = tpu.matmul %31, %33, %cst_63 {dimension_numbers = #tpu.dot_dimension_numbers<[1], [0], [0], [1], [0, 0, 1, 1], [], []>} : vector<256x20xf32>, vector<20x8xf32>, vector<256x8xf32> -> vector<256x8xf32>
    %35 = arith.addf %29, %34 : vector<256x8xf32>
    %c0_64 = arith.constant 0 : index
    %c4_65 = arith.constant 4 : index
    %c0_66 = arith.constant 0 : index
    %c0_67 = arith.constant 0 : index
    %36 = vector.load %arg12[%c0_64, %c4_65, %c0_66, %c0_67] : memref<1x20x16x20xf32, #tpu.memory_space<vmem>>, vector<1x16x16x20xf32>
    %37 = vector.shape_cast %36 : vector<1x16x16x20xf32> to vector<256x20xf32>
    %c4_68 = arith.constant 4 : index
    %c0_69 = arith.constant 0 : index
    %c0_70 = arith.constant 0 : index
    %38 = vector.load %arg2[%c4_68, %c0_69, %c0_70] : memref<5x20x8xf32, #tpu.memory_space<vmem>>, vector<1x20x8xf32>
    %39 = vector.shape_cast %38 : vector<1x20x8xf32> to vector<20x8xf32>
    %cst_71 = arith.constant dense<0.000000e+00> : vector<256x8xf32>
    %40 = tpu.matmul %37, %39, %cst_71 {dimension_numbers = #tpu.dot_dimension_numbers<[1], [0], [0], [1], [0, 0, 1, 1], [], []>} : vector<256x20xf32>, vector<20x8xf32>, vector<256x8xf32> -> vector<256x8xf32>
    %41 = arith.addf %35, %40 : vector<256x8xf32>
    %c0_72 = arith.constant 0 : index
    %c0_73 = arith.constant 0 : index
    %42 = vector.load %arg3[%c0_72, %c0_73] : memref<1x8xf32, #tpu.memory_space<vmem>>, vector<1x8xf32>
    %43 = vector.broadcast %42 : vector<1x8xf32> to vector<256x8xf32>
    %44 = arith.addf %41, %43 : vector<256x8xf32>
    %cst_74 = arith.constant 0.000000e+00 : f32
    %45 = vector.broadcast %cst_74 : f32 to vector<256x8xf32>
    %46 = arith.maximumf %44, %45 : vector<256x8xf32>
    %47 = vector.shape_cast %46 : vector<256x8xf32> to vector<1x16x16x8xf32>
    %c0_75 = arith.constant 0 : index
    %c0_76 = arith.constant 0 : index
    %c0_77 = arith.constant 0 : index
    %c0_78 = arith.constant 0 : index
    %48 = vector.load %arg15[%c0_75, %c0_76, %c0_77, %c0_78] : memref<1x16x16x8xf32, #tpu.memory_space<vmem>>, vector<1x16x16x8xf32>
    tpu.vector_store %arg15[%c0_75, %c0_76, %c0_77, %c0_78], %47 {strides = array<i32>} : memref<1x16x16x8xf32, #tpu.memory_space<vmem>>, vector<1x16x16x8xf32>,
    %cst_79 = arith.constant 0.000000e+00 : f32
    %49 = vector.broadcast %cst_79 : f32 to vector<1x12x12x8xf32>
    %c0_80 = arith.constant 0 : index
    %c0_81 = arith.constant 0 : index
    %c0_82 = arith.constant 0 : index
    %c0_83 = arith.constant 0 : index
    %50 = vector.load %arg10[%c0_80, %c0_81, %c0_82, %c0_83] : memref<1x12x12x8xf32, #tpu.memory_space<vmem>>, vector<1x12x12x8xf32>
    tpu.vector_store %arg10[%c0_80, %c0_81, %c0_82, %c0_83], %49 {strides = array<i32>} : memref<1x12x12x8xf32, #tpu.memory_space<vmem>>, vector<1x12x12x8xf32>,
    %c0_84 = arith.constant 0 : index
    %c0_85 = arith.constant 0 : index
    %c0_86 = arith.constant 0 : index
    %c0_87 = arith.constant 0 : index
    %51 = tpu.strided_load %arg15[%c0_84, %c0_85, %c0_86, %c0_87] {strides = array<i32: 1, 2, 2, 1>} : memref<1x16x16x8xf32, #tpu.memory_space<vmem>>, vector<1x8x8x8xf32>
    %c0_88 = arith.constant 0 : index
    %c0_89 = arith.constant 0 : index
    %c1_90 = arith.constant 1 : index
    %c0_91 = arith.constant 0 : index
    %52 = tpu.strided_load %arg15[%c0_88, %c0_89, %c1_90, %c0_91] {strides = array<i32: 1, 2, 2, 1>} : memref<1x16x16x8xf32, #tpu.memory_space<vmem>>, vector<1x8x8x8xf32>
    %c0_92 = arith.constant 0 : index
    %c1_93 = arith.constant 1 : index
    %c0_94 = arith.constant 0 : index
    %c0_95 = arith.constant 0 : index
    %53 = tpu.strided_load %arg15[%c0_92, %c1_93, %c0_94, %c0_95] {strides = array<i32: 1, 2, 2, 1>} : memref<1x16x16x8xf32, #tpu.memory_space<vmem>>, vector<1x8x8x8xf32>
    %c0_96 = arith.constant 0 : index
    %c1_97 = arith.constant 1 : index
    %c1_98 = arith.constant 1 : index
    %c0_99 = arith.constant 0 : index
    %54 = tpu.strided_load %arg15[%c0_96, %c1_97, %c1_98, %c0_99] {strides = array<i32: 1, 2, 2, 1>} : memref<1x16x16x8xf32, #tpu.memory_space<vmem>>, vector<1x8x8x8xf32>
    %55 = arith.maximumf %51, %52 : vector<1x8x8x8xf32>
    %56 = arith.maximumf %53, %54 : vector<1x8x8x8xf32>
    %57 = arith.maximumf %55, %56 : vector<1x8x8x8xf32>
    %c0_100 = arith.constant 0 : index
    %c2_101 = arith.constant 2 : index
    %c2_102 = arith.constant 2 : index
    %c0_103 = arith.constant 0 : index
    %58 = vector.load %arg10[%c0_100, %c2_101, %c2_102, %c0_103] : memref<1x12x12x8xf32, #tpu.memory_space<vmem>>, vector<1x8x8x8xf32>
    tpu.vector_store %arg10[%c0_100, %c2_101, %c2_102, %c0_103], %57 {strides = array<i32>} : memref<1x12x12x8xf32, #tpu.memory_space<vmem>>, vector<1x8x8x8xf32>,
    %c0_104 = arith.constant 0 : index
    %c0_105 = arith.constant 0 : index
    %c0_106 = arith.constant 0 : index
    %c0_107 = arith.constant 0 : index
    %59 = vector.load %arg10[%c0_104, %c0_105, %c0_106, %c0_107] : memref<1x12x12x8xf32, #tpu.memory_space<vmem>>, vector<1x12x8x8xf32>
    %c0_108 = arith.constant 0 : index
    %c0_109 = arith.constant 0 : index
    %c1_110 = arith.constant 1 : index
    %c0_111 = arith.constant 0 : index
    %60 = vector.load %arg10[%c0_108, %c0_109, %c1_110, %c0_111] : memref<1x12x12x8xf32, #tpu.memory_space<vmem>>, vector<1x12x8x8xf32>
    %c0_112 = arith.constant 0 : index
    %c0_113 = arith.constant 0 : index
    %c2_114 = arith.constant 2 : index
    %c0_115 = arith.constant 0 : index
    %61 = vector.load %arg10[%c0_112, %c0_113, %c2_114, %c0_115] : memref<1x12x12x8xf32, #tpu.memory_space<vmem>>, vector<1x12x8x8xf32>
    %c0_116 = arith.constant 0 : index
    %c0_117 = arith.constant 0 : index
    %c3_118 = arith.constant 3 : index
    %c0_119 = arith.constant 0 : index
    %62 = vector.load %arg10[%c0_116, %c0_117, %c3_118, %c0_119] : memref<1x12x12x8xf32, #tpu.memory_space<vmem>>, vector<1x12x8x8xf32>
    %c0_120 = arith.constant 0 : index
    %c0_121 = arith.constant 0 : index
    %c4_122 = arith.constant 4 : index
    %c0_123 = arith.constant 0 : index
    %63 = vector.load %arg10[%c0_120, %c0_121, %c4_122, %c0_123] : memref<1x12x12x8xf32, #tpu.memory_space<vmem>>, vector<1x12x8x8xf32>
    %64 = tpu.concatenate %59, %60, %61, %62, %63 in 3 : vector<1x12x8x8xf32>, vector<1x12x8x8xf32>, vector<1x12x8x8xf32>, vector<1x12x8x8xf32>, vector<1x12x8x8xf32> -> vector<1x12x8x40xf32>
    %c0_124 = arith.constant 0 : index
    %c0_125 = arith.constant 0 : index
    %c0_126 = arith.constant 0 : index
    %c0_127 = arith.constant 0 : index
    %65 = vector.load %arg13[%c0_124, %c0_125, %c0_126, %c0_127] : memref<1x12x8x40xf32, #tpu.memory_space<vmem>>, vector<1x12x8x40xf32>
    tpu.vector_store %arg13[%c0_124, %c0_125, %c0_126, %c0_127], %64 {strides = array<i32>} : memref<1x12x8x40xf32, #tpu.memory_space<vmem>>, vector<1x12x8x40xf32>,
    %cst_128 = arith.constant 0.000000e+00 : f32
    %66 = vector.broadcast %cst_128 : f32 to vector<64x16xf32>
    %c0_129 = arith.constant 0 : index
    %c0_130 = arith.constant 0 : index
    %c0_131 = arith.constant 0 : index
    %c0_132 = arith.constant 0 : index
    %67 = vector.load %arg13[%c0_129, %c0_130, %c0_131, %c0_132] : memref<1x12x8x40xf32, #tpu.memory_space<vmem>>, vector<1x8x8x40xf32>
    %68 = vector.shape_cast %67 : vector<1x8x8x40xf32> to vector<64x40xf32>
    %c0_133 = arith.constant 0 : index
    %c0_134 = arith.constant 0 : index
    %c0_135 = arith.constant 0 : index
    %69 = vector.load %arg4[%c0_133, %c0_134, %c0_135] : memref<5x40x16xf32, #tpu.memory_space<vmem>>, vector<1x40x16xf32>
    %70 = vector.shape_cast %69 : vector<1x40x16xf32> to vector<40x16xf32>
    %cst_136 = arith.constant dense<0.000000e+00> : vector<64x16xf32>
    %71 = tpu.matmul %68, %70, %cst_136 {dimension_numbers = #tpu.dot_dimension_numbers<[1], [0], [0], [1], [0, 0, 1, 1], [], []>} : vector<64x40xf32>, vector<40x16xf32>, vector<64x16xf32> -> vector<64x16xf32>
    %72 = arith.addf %66, %71 : vector<64x16xf32>
    %c0_137 = arith.constant 0 : index
    %c1_138 = arith.constant 1 : index
    %c0_139 = arith.constant 0 : index
    %c0_140 = arith.constant 0 : index
    %73 = vector.load %arg13[%c0_137, %c1_138, %c0_139, %c0_140] : memref<1x12x8x40xf32, #tpu.memory_space<vmem>>, vector<1x8x8x40xf32>
    %74 = vector.shape_cast %73 : vector<1x8x8x40xf32> to vector<64x40xf32>
    %c1_141 = arith.constant 1 : index
    %c0_142 = arith.constant 0 : index
    %c0_143 = arith.constant 0 : index
    %75 = vector.load %arg4[%c1_141, %c0_142, %c0_143] : memref<5x40x16xf32, #tpu.memory_space<vmem>>, vector<1x40x16xf32>
    %76 = vector.shape_cast %75 : vector<1x40x16xf32> to vector<40x16xf32>
    %cst_144 = arith.constant dense<0.000000e+00> : vector<64x16xf32>
    %77 = tpu.matmul %74, %76, %cst_144 {dimension_numbers = #tpu.dot_dimension_numbers<[1], [0], [0], [1], [0, 0, 1, 1], [], []>} : vector<64x40xf32>, vector<40x16xf32>, vector<64x16xf32> -> vector<64x16xf32>
    %78 = arith.addf %72, %77 : vector<64x16xf32>
    %c0_145 = arith.constant 0 : index
    %c2_146 = arith.constant 2 : index
    %c0_147 = arith.constant 0 : index
    %c0_148 = arith.constant 0 : index
    %79 = vector.load %arg13[%c0_145, %c2_146, %c0_147, %c0_148] : memref<1x12x8x40xf32, #tpu.memory_space<vmem>>, vector<1x8x8x40xf32>
    %80 = vector.shape_cast %79 : vector<1x8x8x40xf32> to vector<64x40xf32>
    %c2_149 = arith.constant 2 : index
    %c0_150 = arith.constant 0 : index
    %c0_151 = arith.constant 0 : index
    %81 = vector.load %arg4[%c2_149, %c0_150, %c0_151] : memref<5x40x16xf32, #tpu.memory_space<vmem>>, vector<1x40x16xf32>
    %82 = vector.shape_cast %81 : vector<1x40x16xf32> to vector<40x16xf32>
    %cst_152 = arith.constant dense<0.000000e+00> : vector<64x16xf32>
    %83 = tpu.matmul %80, %82, %cst_152 {dimension_numbers = #tpu.dot_dimension_numbers<[1], [0], [0], [1], [0, 0, 1, 1], [], []>} : vector<64x40xf32>, vector<40x16xf32>, vector<64x16xf32> -> vector<64x16xf32>
    %84 = arith.addf %78, %83 : vector<64x16xf32>
    %c0_153 = arith.constant 0 : index
    %c3_154 = arith.constant 3 : index
    %c0_155 = arith.constant 0 : index
    %c0_156 = arith.constant 0 : index
    %85 = vector.load %arg13[%c0_153, %c3_154, %c0_155, %c0_156] : memref<1x12x8x40xf32, #tpu.memory_space<vmem>>, vector<1x8x8x40xf32>
    %86 = vector.shape_cast %85 : vector<1x8x8x40xf32> to vector<64x40xf32>
    %c3_157 = arith.constant 3 : index
    %c0_158 = arith.constant 0 : index
    %c0_159 = arith.constant 0 : index
    %87 = vector.load %arg4[%c3_157, %c0_158, %c0_159] : memref<5x40x16xf32, #tpu.memory_space<vmem>>, vector<1x40x16xf32>
    %88 = vector.shape_cast %87 : vector<1x40x16xf32> to vector<40x16xf32>
    %cst_160 = arith.constant dense<0.000000e+00> : vector<64x16xf32>
    %89 = tpu.matmul %86, %88, %cst_160 {dimension_numbers = #tpu.dot_dimension_numbers<[1], [0], [0], [1], [0, 0, 1, 1], [], []>} : vector<64x40xf32>, vector<40x16xf32>, vector<64x16xf32> -> vector<64x16xf32>
    %90 = arith.addf %84, %89 : vector<64x16xf32>
    %c0_161 = arith.constant 0 : index
    %c4_162 = arith.constant 4 : index
    %c0_163 = arith.constant 0 : index
    %c0_164 = arith.constant 0 : index
    %91 = vector.load %arg13[%c0_161, %c4_162, %c0_163, %c0_164] : memref<1x12x8x40xf32, #tpu.memory_space<vmem>>, vector<1x8x8x40xf32>
    %92 = vector.shape_cast %91 : vector<1x8x8x40xf32> to vector<64x40xf32>
    %c4_165 = arith.constant 4 : index
    %c0_166 = arith.constant 0 : index
    %c0_167 = arith.constant 0 : index
    %93 = vector.load %arg4[%c4_165, %c0_166, %c0_167] : memref<5x40x16xf32, #tpu.memory_space<vmem>>, vector<1x40x16xf32>
    %94 = vector.shape_cast %93 : vector<1x40x16xf32> to vector<40x16xf32>
    %cst_168 = arith.constant dense<0.000000e+00> : vector<64x16xf32>
    %95 = tpu.matmul %92, %94, %cst_168 {dimension_numbers = #tpu.dot_dimension_numbers<[1], [0], [0], [1], [0, 0, 1, 1], [], []>} : vector<64x40xf32>, vector<40x16xf32>, vector<64x16xf32> -> vector<64x16xf32>
    %96 = arith.addf %90, %95 : vector<64x16xf32>
    %c0_169 = arith.constant 0 : index
    %c0_170 = arith.constant 0 : index
    %97 = vector.load %arg5[%c0_169, %c0_170] : memref<1x16xf32, #tpu.memory_space<vmem>>, vector<1x16xf32>
    %98 = vector.broadcast %97 : vector<1x16xf32> to vector<64x16xf32>
    %99 = arith.addf %96, %98 : vector<64x16xf32>
    %cst_171 = arith.constant 0.000000e+00 : f32
    %100 = vector.broadcast %cst_171 : f32 to vector<64x16xf32>
    %101 = arith.maximumf %99, %100 : vector<64x16xf32>
    %102 = vector.shape_cast %101 : vector<64x16xf32> to vector<1x8x8x16xf32>
    %c0_172 = arith.constant 0 : index
    %c0_173 = arith.constant 0 : index
    %c0_174 = arith.constant 0 : index
    %c0_175 = arith.constant 0 : index
    %103 = vector.load %arg16[%c0_172, %c0_173, %c0_174, %c0_175] : memref<1x8x8x16xf32, #tpu.memory_space<vmem>>, vector<1x8x8x16xf32>
    tpu.vector_store %arg16[%c0_172, %c0_173, %c0_174, %c0_175], %102 {strides = array<i32>} : memref<1x8x8x16xf32, #tpu.memory_space<vmem>>, vector<1x8x8x16xf32>,
    %cst_176 = arith.constant 0.000000e+00 : f32
    %104 = vector.broadcast %cst_176 : f32 to vector<1x10x14x16xf32>
    %c0_177 = arith.constant 0 : index
    %c0_178 = arith.constant 0 : index
    %c0_179 = arith.constant 0 : index
    %c0_180 = arith.constant 0 : index
    %105 = vector.load %arg11[%c0_177, %c0_178, %c0_179, %c0_180] : memref<1x10x14x16xf32, #tpu.memory_space<vmem>>, vector<1x10x14x16xf32>
    tpu.vector_store %arg11[%c0_177, %c0_178, %c0_179, %c0_180], %104 {strides = array<i32>} : memref<1x10x14x16xf32, #tpu.memory_space<vmem>>, vector<1x10x14x16xf32>,
    %c0_181 = arith.constant 0 : index
    %c0_182 = arith.constant 0 : index
    %c0_183 = arith.constant 0 : index
    %c0_184 = arith.constant 0 : index
    %106 = tpu.strided_load %arg16[%c0_181, %c0_182, %c0_183, %c0_184] {strides = array<i32: 1, 2, 2, 1>} : memref<1x8x8x16xf32, #tpu.memory_space<vmem>>, vector<1x4x4x16xf32>
    %c0_185 = arith.constant 0 : index
    %c0_186 = arith.constant 0 : index
    %c1_187 = arith.constant 1 : index
    %c0_188 = arith.constant 0 : index
    %107 = tpu.strided_load %arg16[%c0_185, %c0_186, %c1_187, %c0_188] {strides = array<i32: 1, 2, 2, 1>} : memref<1x8x8x16xf32, #tpu.memory_space<vmem>>, vector<1x4x4x16xf32>
    %c0_189 = arith.constant 0 : index
    %c1_190 = arith.constant 1 : index
    %c0_191 = arith.constant 0 : index
    %c0_192 = arith.constant 0 : index
    %108 = tpu.strided_load %arg16[%c0_189, %c1_190, %c0_191, %c0_192] {strides = array<i32: 1, 2, 2, 1>} : memref<1x8x8x16xf32, #tpu.memory_space<vmem>>, vector<1x4x4x16xf32>
    %c0_193 = arith.constant 0 : index
    %c1_194 = arith.constant 1 : index
    %c1_195 = arith.constant 1 : index
    %c0_196 = arith.constant 0 : index
    %109 = tpu.strided_load %arg16[%c0_193, %c1_194, %c1_195, %c0_196] {strides = array<i32: 1, 2, 2, 1>} : memref<1x8x8x16xf32, #tpu.memory_space<vmem>>, vector<1x4x4x16xf32>
    %110 = arith.maximumf %106, %107 : vector<1x4x4x16xf32>
    %111 = arith.maximumf %108, %109 : vector<1x4x4x16xf32>
    %112 = arith.maximumf %110, %111 : vector<1x4x4x16xf32>
    %c0_197 = arith.constant 0 : index
    %c3_198 = arith.constant 3 : index
    %c3_199 = arith.constant 3 : index
    %c0_200 = arith.constant 0 : index
    %113 = vector.load %arg11[%c0_197, %c3_198, %c3_199, %c0_200] : memref<1x10x14x16xf32, #tpu.memory_space<vmem>>, vector<1x4x4x16xf32>
    tpu.vector_store %arg11[%c0_197, %c3_198, %c3_199, %c0_200], %112 {strides = array<i32>} : memref<1x10x14x16xf32, #tpu.memory_space<vmem>>, vector<1x4x4x16xf32>,
    %c0_201 = arith.constant 0 : index
    %c0_202 = arith.constant 0 : index
    %c0_203 = arith.constant 0 : index
    %c0_204 = arith.constant 0 : index
    %114 = vector.load %arg11[%c0_201, %c0_202, %c0_203, %c0_204] : memref<1x10x14x16xf32, #tpu.memory_space<vmem>>, vector<1x10x8x16xf32>
    %c0_205 = arith.constant 0 : index
    %c0_206 = arith.constant 0 : index
    %c1_207 = arith.constant 1 : index
    %c0_208 = arith.constant 0 : index
    %115 = vector.load %arg11[%c0_205, %c0_206, %c1_207, %c0_208] : memref<1x10x14x16xf32, #tpu.memory_space<vmem>>, vector<1x10x8x16xf32>
    %c0_209 = arith.constant 0 : index
    %c0_210 = arith.constant 0 : index
    %c2_211 = arith.constant 2 : index
    %c0_212 = arith.constant 0 : index
    %116 = vector.load %arg11[%c0_209, %c0_210, %c2_211, %c0_212] : memref<1x10x14x16xf32, #tpu.memory_space<vmem>>, vector<1x10x8x16xf32>
    %c0_213 = arith.constant 0 : index
    %c0_214 = arith.constant 0 : index
    %c3_215 = arith.constant 3 : index
    %c0_216 = arith.constant 0 : index
    %117 = vector.load %arg11[%c0_213, %c0_214, %c3_215, %c0_216] : memref<1x10x14x16xf32, #tpu.memory_space<vmem>>, vector<1x10x8x16xf32>
    %c0_217 = arith.constant 0 : index
    %c0_218 = arith.constant 0 : index
    %c4_219 = arith.constant 4 : index
    %c0_220 = arith.constant 0 : index
    %118 = vector.load %arg11[%c0_217, %c0_218, %c4_219, %c0_220] : memref<1x10x14x16xf32, #tpu.memory_space<vmem>>, vector<1x10x8x16xf32>
    %c0_221 = arith.constant 0 : index
    %c0_222 = arith.constant 0 : index
    %c5 = arith.constant 5 : index
    %c0_223 = arith.constant 0 : index
    %119 = vector.load %arg11[%c0_221, %c0_222, %c5, %c0_223] : memref<1x10x14x16xf32, #tpu.memory_space<vmem>>, vector<1x10x8x16xf32>
    %c0_224 = arith.constant 0 : index
    %c0_225 = arith.constant 0 : index
    %c6 = arith.constant 6 : index
    %c0_226 = arith.constant 0 : index
    %120 = vector.load %arg11[%c0_224, %c0_225, %c6, %c0_226] : memref<1x10x14x16xf32, #tpu.memory_space<vmem>>, vector<1x10x8x16xf32>
    %121 = tpu.concatenate %114, %115, %116, %117, %118, %119, %120 in 3 : vector<1x10x8x16xf32>, vector<1x10x8x16xf32>, vector<1x10x8x16xf32>, vector<1x10x8x16xf32>, vector<1x10x8x16xf32>, vector<1x10x8x16xf32>, vector<1x10x8x16xf32> -> vector<1x10x8x112xf32>
    %c0_227 = arith.constant 0 : index
    %c0_228 = arith.constant 0 : index
    %c0_229 = arith.constant 0 : index
    %c0_230 = arith.constant 0 : index
    %122 = vector.load %arg14[%c0_227, %c0_228, %c0_229, %c0_230] : memref<1x10x8x112xf32, #tpu.memory_space<vmem>>, vector<1x10x8x112xf32>
    tpu.vector_store %arg14[%c0_227, %c0_228, %c0_229, %c0_230], %121 {strides = array<i32>} : memref<1x10x8x112xf32, #tpu.memory_space<vmem>>, vector<1x10x8x112xf32>,
    %cst_231 = arith.constant 0.000000e+00 : f32
    %123 = vector.broadcast %cst_231 : f32 to vector<32x32xf32>
    %c0_232 = arith.constant 0 : index
    %c0_233 = arith.constant 0 : index
    %c0_234 = arith.constant 0 : index
    %c0_235 = arith.constant 0 : index
    %124 = vector.load %arg14[%c0_232, %c0_233, %c0_234, %c0_235] : memref<1x10x8x112xf32, #tpu.memory_space<vmem>>, vector<1x4x8x112xf32>
    %125 = vector.shape_cast %124 : vector<1x4x8x112xf32> to vector<32x112xf32>
    %c0_236 = arith.constant 0 : index
    %c0_237 = arith.constant 0 : index
    %c0_238 = arith.constant 0 : index
    %126 = vector.load %arg6[%c0_236, %c0_237, %c0_238] : memref<7x112x32xf32, #tpu.memory_space<vmem>>, vector<1x112x32xf32>
    %127 = vector.shape_cast %126 : vector<1x112x32xf32> to vector<112x32xf32>
    %cst_239 = arith.constant dense<0.000000e+00> : vector<32x32xf32>
    %128 = tpu.matmul %125, %127, %cst_239 {dimension_numbers = #tpu.dot_dimension_numbers<[1], [0], [0], [1], [0, 0, 1, 1], [], []>} : vector<32x112xf32>, vector<112x32xf32>, vector<32x32xf32> -> vector<32x32xf32>
    %129 = arith.addf %123, %128 : vector<32x32xf32>
    %c0_240 = arith.constant 0 : index
    %c1_241 = arith.constant 1 : index
    %c0_242 = arith.constant 0 : index
    %c0_243 = arith.constant 0 : index
    %130 = vector.load %arg14[%c0_240, %c1_241, %c0_242, %c0_243] : memref<1x10x8x112xf32, #tpu.memory_space<vmem>>, vector<1x4x8x112xf32>
    %131 = vector.shape_cast %130 : vector<1x4x8x112xf32> to vector<32x112xf32>
    %c1_244 = arith.constant 1 : index
    %c0_245 = arith.constant 0 : index
    %c0_246 = arith.constant 0 : index
    %132 = vector.load %arg6[%c1_244, %c0_245, %c0_246] : memref<7x112x32xf32, #tpu.memory_space<vmem>>, vector<1x112x32xf32>
    %133 = vector.shape_cast %132 : vector<1x112x32xf32> to vector<112x32xf32>
    %cst_247 = arith.constant dense<0.000000e+00> : vector<32x32xf32>
    %134 = tpu.matmul %131, %133, %cst_247 {dimension_numbers = #tpu.dot_dimension_numbers<[1], [0], [0], [1], [0, 0, 1, 1], [], []>} : vector<32x112xf32>, vector<112x32xf32>, vector<32x32xf32> -> vector<32x32xf32>
    %135 = arith.addf %129, %134 : vector<32x32xf32>
    %c0_248 = arith.constant 0 : index
    %c2_249 = arith.constant 2 : index
    %c0_250 = arith.constant 0 : index
    %c0_251 = arith.constant 0 : index
    %136 = vector.load %arg14[%c0_248, %c2_249, %c0_250, %c0_251] : memref<1x10x8x112xf32, #tpu.memory_space<vmem>>, vector<1x4x8x112xf32>
    %137 = vector.shape_cast %136 : vector<1x4x8x112xf32> to vector<32x112xf32>
    %c2_252 = arith.constant 2 : index
    %c0_253 = arith.constant 0 : index
    %c0_254 = arith.constant 0 : index
    %138 = vector.load %arg6[%c2_252, %c0_253, %c0_254] : memref<7x112x32xf32, #tpu.memory_space<vmem>>, vector<1x112x32xf32>
    %139 = vector.shape_cast %138 : vector<1x112x32xf32> to vector<112x32xf32>
    %cst_255 = arith.constant dense<0.000000e+00> : vector<32x32xf32>
    %140 = tpu.matmul %137, %139, %cst_255 {dimension_numbers = #tpu.dot_dimension_numbers<[1], [0], [0], [1], [0, 0, 1, 1], [], []>} : vector<32x112xf32>, vector<112x32xf32>, vector<32x32xf32> -> vector<32x32xf32>
    %141 = arith.addf %135, %140 : vector<32x32xf32>
    %c0_256 = arith.constant 0 : index
    %c3_257 = arith.constant 3 : index
    %c0_258 = arith.constant 0 : index
    %c0_259 = arith.constant 0 : index
    %142 = vector.load %arg14[%c0_256, %c3_257, %c0_258, %c0_259] : memref<1x10x8x112xf32, #tpu.memory_space<vmem>>, vector<1x4x8x112xf32>
    %143 = vector.shape_cast %142 : vector<1x4x8x112xf32> to vector<32x112xf32>
    %c3_260 = arith.constant 3 : index
    %c0_261 = arith.constant 0 : index
    %c0_262 = arith.constant 0 : index
    %144 = vector.load %arg6[%c3_260, %c0_261, %c0_262] : memref<7x112x32xf32, #tpu.memory_space<vmem>>, vector<1x112x32xf32>
    %145 = vector.shape_cast %144 : vector<1x112x32xf32> to vector<112x32xf32>
    %cst_263 = arith.constant dense<0.000000e+00> : vector<32x32xf32>
    %146 = tpu.matmul %143, %145, %cst_263 {dimension_numbers = #tpu.dot_dimension_numbers<[1], [0], [0], [1], [0, 0, 1, 1], [], []>} : vector<32x112xf32>, vector<112x32xf32>, vector<32x32xf32> -> vector<32x32xf32>
    %147 = arith.addf %141, %146 : vector<32x32xf32>
    %c0_264 = arith.constant 0 : index
    %c4_265 = arith.constant 4 : index
    %c0_266 = arith.constant 0 : index
    %c0_267 = arith.constant 0 : index
    %148 = vector.load %arg14[%c0_264, %c4_265, %c0_266, %c0_267] : memref<1x10x8x112xf32, #tpu.memory_space<vmem>>, vector<1x4x8x112xf32>
    %149 = vector.shape_cast %148 : vector<1x4x8x112xf32> to vector<32x112xf32>
    %c4_268 = arith.constant 4 : index
    %c0_269 = arith.constant 0 : index
    %c0_270 = arith.constant 0 : index
    %150 = vector.load %arg6[%c4_268, %c0_269, %c0_270] : memref<7x112x32xf32, #tpu.memory_space<vmem>>, vector<1x112x32xf32>
    %151 = vector.shape_cast %150 : vector<1x112x32xf32> to vector<112x32xf32>
    %cst_271 = arith.constant dense<0.000000e+00> : vector<32x32xf32>
    %152 = tpu.matmul %149, %151, %cst_271 {dimension_numbers = #tpu.dot_dimension_numbers<[1], [0], [0], [1], [0, 0, 1, 1], [], []>} : vector<32x112xf32>, vector<112x32xf32>, vector<32x32xf32> -> vector<32x32xf32>
    %153 = arith.addf %147, %152 : vector<32x32xf32>
    %c0_272 = arith.constant 0 : index
    %c5_273 = arith.constant 5 : index
    %c0_274 = arith.constant 0 : index
    %c0_275 = arith.constant 0 : index
    %154 = vector.load %arg14[%c0_272, %c5_273, %c0_274, %c0_275] : memref<1x10x8x112xf32, #tpu.memory_space<vmem>>, vector<1x4x8x112xf32>
    %155 = vector.shape_cast %154 : vector<1x4x8x112xf32> to vector<32x112xf32>
    %c5_276 = arith.constant 5 : index
    %c0_277 = arith.constant 0 : index
    %c0_278 = arith.constant 0 : index
    %156 = vector.load %arg6[%c5_276, %c0_277, %c0_278] : memref<7x112x32xf32, #tpu.memory_space<vmem>>, vector<1x112x32xf32>
    %157 = vector.shape_cast %156 : vector<1x112x32xf32> to vector<112x32xf32>
    %cst_279 = arith.constant dense<0.000000e+00> : vector<32x32xf32>
    %158 = tpu.matmul %155, %157, %cst_279 {dimension_numbers = #tpu.dot_dimension_numbers<[1], [0], [0], [1], [0, 0, 1, 1], [], []>} : vector<32x112xf32>, vector<112x32xf32>, vector<32x32xf32> -> vector<32x32xf32>
    %159 = arith.addf %153, %158 : vector<32x32xf32>
    %c0_280 = arith.constant 0 : index
    %c6_281 = arith.constant 6 : index
    %c0_282 = arith.constant 0 : index
    %c0_283 = arith.constant 0 : index
    %160 = vector.load %arg14[%c0_280, %c6_281, %c0_282, %c0_283] : memref<1x10x8x112xf32, #tpu.memory_space<vmem>>, vector<1x4x8x112xf32>
    %161 = vector.shape_cast %160 : vector<1x4x8x112xf32> to vector<32x112xf32>
    %c6_284 = arith.constant 6 : index
    %c0_285 = arith.constant 0 : index
    %c0_286 = arith.constant 0 : index
    %162 = vector.load %arg6[%c6_284, %c0_285, %c0_286] : memref<7x112x32xf32, #tpu.memory_space<vmem>>, vector<1x112x32xf32>
    %163 = vector.shape_cast %162 : vector<1x112x32xf32> to vector<112x32xf32>
    %cst_287 = arith.constant dense<0.000000e+00> : vector<32x32xf32>
    %164 = tpu.matmul %161, %163, %cst_287 {dimension_numbers = #tpu.dot_dimension_numbers<[1], [0], [0], [1], [0, 0, 1, 1], [], []>} : vector<32x112xf32>, vector<112x32xf32>, vector<32x32xf32> -> vector<32x32xf32>
    %165 = arith.addf %159, %164 : vector<32x32xf32>
    %c0_288 = arith.constant 0 : index
    %c0_289 = arith.constant 0 : index
    %166 = vector.load %arg7[%c0_288, %c0_289] : memref<1x32xf32, #tpu.memory_space<vmem>>, vector<1x32xf32>
    %167 = vector.broadcast %166 : vector<1x32xf32> to vector<32x32xf32>
    %168 = arith.addf %165, %167 : vector<32x32xf32>
    %cst_290 = arith.constant 0.000000e+00 : f32
    %169 = vector.broadcast %cst_290 : f32 to vector<32x32xf32>
    %170 = arith.maximumf %168, %169 : vector<32x32xf32>
    %171 = vector.shape_cast %170 : vector<32x32xf32> to vector<1x4x8x32xf32>
    %172 = vector.extract_strided_slice %171 {offsets = [0, 0, 0, 0], sizes = [1, 4, 4, 32], strides = [1, 1, 1, 1]} : vector<1x4x8x32xf32> to vector<1x4x4x32xf32>
    %c0_291 = arith.constant 0 : index
    %c0_292 = arith.constant 0 : index
    %c0_293 = arith.constant 0 : index
    %c0_294 = arith.constant 0 : index
    %173 = vector.load %arg8[%c0_291, %c0_292, %c0_293, %c0_294] : memref<1x4x4x32xf32, #tpu.memory_space<vmem>>, vector<1x4x4x32xf32>
    tpu.vector_store %arg8[%c0_291, %c0_292, %c0_293, %c0_294], %172 {strides = array<i32>} : memref<1x4x4x32xf32, #tpu.memory_space<vmem>>, vector<1x4x4x32xf32>,
    return
  }
  func.func @transform_0(%arg0: i32) -> (i32, i32, i32, i32) {
    %c0_i32 = arith.constant 0 : i32
    %c0_i32_0 = arith.constant 0 : i32
    %c0_i32_1 = arith.constant 0 : i32
    %c0_i32_2 = arith.constant 0 : i32
    return %arg0, %c0_i32, %c0_i32_0, %c0_i32_1 : i32, i32, i32, i32
  }
  func.func @transform_1(%arg0: i32) -> (i32, i32, i32) {
    %c0_i32 = arith.constant 0 : i32
    %c0_i32_0 = arith.constant 0 : i32
    %c0_i32_1 = arith.constant 0 : i32
    %c0_i32_2 = arith.constant 0 : i32
    return %c0_i32, %c0_i32_0, %c0_i32_1 : i32, i32, i32
  }
  func.func @transform_2(%arg0: i32) -> (i32, i32) {
    %c0_i32 = arith.constant 0 : i32
    %c0_i32_0 = arith.constant 0 : i32
    %c0_i32_1 = arith.constant 0 : i32
    return %c0_i32, %c0_i32_0 : i32, i32
  }
  func.func @transform_3(%arg0: i32) -> (i32, i32, i32) {
    %c0_i32 = arith.constant 0 : i32
    %c0_i32_0 = arith.constant 0 : i32
    %c0_i32_1 = arith.constant 0 : i32
    %c0_i32_2 = arith.constant 0 : i32
    return %c0_i32, %c0_i32_0, %c0_i32_1 : i32, i32, i32
  }
  func.func @transform_4(%arg0: i32) -> (i32, i32) {
    %c0_i32 = arith.constant 0 : i32
    %c0_i32_0 = arith.constant 0 : i32
    %c0_i32_1 = arith.constant 0 : i32
    return %c0_i32, %c0_i32_0 : i32, i32
  }
  func.func @transform_5(%arg0: i32) -> (i32, i32, i32) {
    %c0_i32 = arith.constant 0 : i32
    %c0_i32_0 = arith.constant 0 : i32
    %c0_i32_1 = arith.constant 0 : i32
    %c0_i32_2 = arith.constant 0 : i32
    return %c0_i32, %c0_i32_0, %c0_i32_1 : i32, i32, i32
  }
  func.func @transform_6(%arg0: i32) -> (i32, i32) {
    %c0_i32 = arith.constant 0 : i32
    %c0_i32_0 = arith.constant 0 : i32
    %c0_i32_1 = arith.constant 0 : i32
    return %c0_i32, %c0_i32_0 : i32, i32
  }
  func.func @transform_7(%arg0: i32) -> (i32, i32, i32, i32) {
    %c0_i32 = arith.constant 0 : i32
    %c0_i32_0 = arith.constant 0 : i32
    %c0_i32_1 = arith.constant 0 : i32
    %c0_i32_2 = arith.constant 0 : i32
    return %arg0, %c0_i32, %c0_i32_0, %c0_i32_1 : i32, i32, i32, i32
  }
}

</mosaic_0001>

<llo_original>
// kernel: motion_encoder_forward.1
$region0: #{motion_encoder_forward.1}
  #allocation0 [shape = 'u32[]', space=smem, size = 0x4, offset = 0x4, fixed_abs, tag = 'smem constant byte address 0x4 - core index']
  #allocation1 [shape = 'u32[144,128]{1,0:T(1,128)}', space=vmem, size = 0x12000, scoped, tag = 'internal scratch']
  #allocation2 [shape = 'f32[1,20,20,4]{3,2,1,0:T(8,128)}', space=vmem, size = 0x3c000, scoped, tag = 'scratch operand']
  #allocation3 [shape = 'f32[1,12,12,8]{3,2,1,0:T(8,128)}', space=vmem, size = 0x18000, scoped, tag = 'scratch operand']
  #allocation4 [shape = 'f32[1,10,14,16]{3,2,1,0:T(8,128)}', space=vmem, size = 0x14000, scoped, tag = 'scratch operand']
  #allocation5 [shape = 'f32[1,20,16,20]{3,2,1,0:T(8,128)}', space=vmem, size = 0x28000, scoped, tag = 'scratch operand']
  #allocation6 [shape = 'f32[1,12,8,40]{3,2,1,0:T(8,128)}', space=vmem, size = 0xc000, scoped, tag = 'scratch operand']
  #allocation7 [shape = 'f32[1,10,8,112]{3,2,1,0:T(8,128)}', space=vmem, size = 0xa000, scoped, tag = 'scratch operand']
  #allocation8 [shape = 'f32[1,16,16,8]{3,2,1,0:T(8,128)}', space=vmem, size = 0x20000, scoped, tag = 'scratch operand']
  #allocation9 [shape = 'f32[1,8,8,16]{3,2,1,0:T(8,128)}', space=vmem, size = 0x8000, scoped, tag = 'scratch operand']
  %s0 = inlined_call_operand.vmem [shape: f32[2,16,16,4], index: 0, kind: input, shape index: {}]
  %s1 = inlined_call_operand.vmem [shape: f32[5,20,8], index: 1, kind: input, shape index: {}]
  %s2 = inlined_call_operand.vmem [shape: f32[1,8], index: 2, kind: input, shape index: {}]
  %s3 = inlined_call_operand.hbm [shape: f32[5,40,16], index: 3, kind: input, shape index: {}]
  %s4 = inlined_call_operand.vmem [shape: f32[1,16], index: 4, kind: input, shape index: {}]
  %s5 = inlined_call_operand.vmem [shape: f32[7,112,32], index: 5, kind: input, shape index: {}]
  %s6 = inlined_call_operand.vmem [shape: f32[1,32], index: 6, kind: input, shape index: {}]
  %s7 = inlined_call_operand.hbm [shape: f32[2,4,4,32], index: 7, kind: output, shape index: {}]
  %s8 = sld [smem:[#allocation0]]
  $region65: #{motion_encoder_forward.1} parent=0
    _
  %s10 = ssub.s32 1, %s8
  %s11 = scalar_select 0, %s10, %s8
  $region1: #{motion_encoder_forward.1} parent=0
    #allocation10 [shape = 'u8[102400]{0}', space=vmem, size = 0x19000, scoped, tag = 'input window, operand 3, single buffered']
    #allocation11 [shape = 's32[2]{0}', space=sflag, size = 0x8, scoped, tag = 'scoped memory for motion_encoder_forward.1']
    #allocation12 [shape = 's32[2]{0}', space=sflag, size = 0x8, scoped, tag = 'scoped memory for motion_encoder_forward.1']
    #allocation13 [shape = 'u8[16384]{0}', space=vmem, size = 0x4000, scoped, tag = 'output window, operand 0']
    %12 = vsyncpa [#allocation11], 0
    %13 = vsyncpa [#allocation12], 0
    %s14 = scalar_lea.sflag [#allocation12], 1
    %15 = vsyncpa %s14, 0
    loop: start=0, step=1, limit=4
    $region2: #{motion_encoder_forward.1} parent=1 // loop_pre_header
      _
    $region3: #{motion_encoder_forward.1} parent=1 // loop_header
      %s17 = sphi 0, %s21
      %p18 = scmp.ge.s32.totalorder %s17, 4
      %s27 = sphi 0, %s29
      %s30 = sphi 0, %s27
      %s31 = sphi 0, %s30
      %s47 = sphi 0, %s31
      %s51 = sphi 0, %s51
      %s53 = sphi 0, %s51
      %s54 = sphi 0, %s53
      %s68 = sphi 0, %s54
      %s72 = sphi 0, %s72
      %s74 = sphi 0, %s72
      %s75 = sphi 0, %s74
      %s89 = sphi 0, %s75
      %s93 = sphi 0, %s93
      %s95 = sphi 0, %s93
      %s96 = sphi 0, %s95
      %s110 = sphi 0, %s96
      %s114 = sphi 0, %s114
      %s116 = sphi 0, %s114
      %s117 = sphi 0, %s116
      %s131 = sphi 0, %s117
      %s135 = sphi 0, %s135
      %s137 = sphi 0, %s135
      %s138 = sphi 0, %s137
      %s152 = sphi 0, %s138
      %s156 = sphi 0, %s156
      %s158 = sphi 0, %s156
      %s159 = sphi 0, %s158
      %s173 = sphi 0, %s159
      %s179 = sphi 0, %s181
      %s182 = sphi 0, %s179
      %s183 = sphi 0, %s182
      %s199 = sphi 0, %s183
    $region4: #{motion_encoder_forward.1} parent=1 // loop_header_branch
      %20 = sbr.rel (%p18) target = $region8
    $region5: #{motion_encoder_forward.1} parent=1 // loop_body
      %s22 = ssub.s32 %s17, 1
      %s23 = ssub.s32 %s17, 2
      %s24 = sadd.s32 %s17, 1
      %s25 = ssub.s32 %s17, %s24
      %p26 = scmp.eq.s32.totalorder %s25, 0
      %s28 = sadd.s32 %s27, 1
      %s29 = scalar_select %p26, %s27, %s28
      %p32 = pneg %p26
      %p33 = scmp.eq.s32.totalorder %s17, 1
      %p34 = por %p32, %p33
      %p35 = scmp.ne.s32.totalorder %s27, %s30
      %p36 = scmp.eq.s32.totalorder %s17, 0
      %p37 = por %p35, %p36
      %p38 = scmp.ne.s32.totalorder %s27, %s30
      %p39 = scmp.eq.s32.totalorder %s22, 1
      %p40 = por %p38, %p39
      %p41 = scmp.ne.s32.totalorder %s30, %s31
      %p42 = scmp.eq.s32.totalorder %s22, 0
      %p43 = por %p41, %p42
      %p44 = scmp.ne.s32.totalorder %s30, %s31
      %p45 = scmp.eq.s32.totalorder %s23, 1
      %p46 = por %p44, %p45
      %p48 = scmp.ne.s32.totalorder %s31, %s47
      %p49 = scmp.eq.s32.totalorder %s23, 0
      %p50 = por %p48, %p49
      %s52 = sadd.s32 %s51, 1
      %p55 = scmp.eq.s32.totalorder %s17, 1
      %p56 = scmp.ne.s32.totalorder %s51, %s53
      %p57 = scmp.eq.s32.totalorder %s17, 0
      %p58 = por %p56, %p57
      %p59 = scmp.ne.s32.totalorder %s51, %s53
      %p60 = scmp.eq.s32.totalorder %s22, 1
      %p61 = por %p59, %p60
      %p62 = scmp.ne.s32.totalorder %s53, %s54
      %p63 = scmp.eq.s32.totalorder %s22, 0
      %p64 = por %p62, %p63
      %p65 = scmp.ne.s32.totalorder %s53, %s54
      %p66 = scmp.eq.s32.totalorder %s23, 1
      %p67 = por %p65, %p66
      %p69 = scmp.ne.s32.totalorder %s54, %s68
      %p70 = scmp.eq.s32.totalorder %s23, 0
      %p71 = por %p69, %p70
      %s73 = sadd.s32 %s72, 1
      %p76 = scmp.eq.s32.totalorder %s17, 1
      %p77 = scmp.ne.s32.totalorder %s72, %s74
      %p78 = scmp.eq.s32.totalorder %s17, 0
      %p79 = por %p77, %p78
      %p80 = scmp.ne.s32.totalorder %s72, %s74
      %p81 = scmp.eq.s32.totalorder %s22, 1
      %p82 = por %p80, %p81
      %p83 = scmp.ne.s32.totalorder %s74, %s75
      %p84 = scmp.eq.s32.totalorder %s22, 0
      %p85 = por %p83, %p84
      %p86 = scmp.ne.s32.totalorder %s74, %s75
      %p87 = scmp.eq.s32.totalorder %s23, 1
      %p88 = por %p86, %p87
      %p90 = scmp.ne.s32.totalorder %s75, %s89
      %p91 = scmp.eq.s32.totalorder %s23, 0
      %p92 = por %p90, %p91
      %s94 = sadd.s32 %s93, 1
      %p97 = scmp.eq.s32.totalorder %s17, 1
      %p98 = scmp.ne.s32.totalorder %s93, %s95
      %p99 = scmp.eq.s32.totalorder %s17, 0
      %p100 = por %p98, %p99
      %p101 = scmp.ne.s32.totalorder %s93, %s95
      %p102 = scmp.eq.s32.totalorder %s22, 1
      %p103 = por %p101, %p102
      %p104 = scmp.ne.s32.totalorder %s95, %s96
      %p105 = scmp.eq.s32.totalorder %s22, 0
      %p106 = por %p104, %p105
      %p107 = scmp.ne.s32.totalorder %s95, %s96
      %p108 = scmp.eq.s32.totalorder %s23, 1
      %p109 = por %p107, %p108
      %p111 = scmp.ne.s32.totalorder %s96, %s110
      %p112 = scmp.eq.s32.totalorder %s23, 0
      %p113 = por %p111, %p112
      %s115 = sadd.s32 %s114, 1
      %p118 = scmp.eq.s32.totalorder %s17, 1
      %p119 = scmp.ne.s32.totalorder %s114, %s116
      %p120 = scmp.eq.s32.totalorder %s17, 0
      %p121 = por %p119, %p120
      %p122 = scmp.ne.s32.totalorder %s114, %s116
      %p123 = scmp.eq.s32.totalorder %s22, 1
      %p124 = por %p122, %p123
      %p125 = scmp.ne.s32.totalorder %s116, %s117
      %p126 = scmp.eq.s32.totalorder %s22, 0
      %p127 = por %p125, %p126
      %p128 = scmp.ne.s32.totalorder %s116, %s117
      %p129 = scmp.eq.s32.totalorder %s23, 1
      %p130 = por %p128, %p129
      %p132 = scmp.ne.s32.totalorder %s117, %s131
      %p133 = scmp.eq.s32.totalorder %s23, 0
      %p134 = por %p132, %p133
      %s136 = sadd.s32 %s135, 1
      %p139 = scmp.eq.s32.totalorder %s17, 1
      %p140 = scmp.ne.s32.totalorder %s135, %s137
      %p141 = scmp.eq.s32.totalorder %s17, 0
      %p142 = por %p140, %p141
      %p143 = scmp.ne.s32.totalorder %s135, %s137
      %p144 = scmp.eq.s32.totalorder %s22, 1
      %p145 = por %p143, %p144
      %p146 = scmp.ne.s32.totalorder %s137, %s138
      %p147 = scmp.eq.s32.totalorder %s22, 0
      %p148 = por %p146, %p147
      %p149 = scmp.ne.s32.totalorder %s137, %s138
      %p150 = scmp.eq.s32.totalorder %s23, 1
      %p151 = por %p149, %p150
      %p153 = scmp.ne.s32.totalorder %s138, %s152
      %p154 = scmp.eq.s32.totalorder %s23, 0
      %p155 = por %p153, %p154
      %s157 = sadd.s32 %s156, 1
      %p160 = scmp.eq.s32.totalorder %s17, 1
      %p161 = scmp.ne.s32.totalorder %s156, %s158
      %p162 = scmp.eq.s32.totalorder %s17, 0
      %p163 = por %p161, %p162
      %p164 = scmp.ne.s32.totalorder %s156, %s158
      %p165 = scmp.eq.s32.totalorder %s22, 1
      %p166 = por %p164, %p165
      %p167 = scmp.ne.s32.totalorder %s158, %s159
      %p168 = scmp.eq.s32.totalorder %s22, 0
      %p169 = por %p167, %p168
      %p170 = scmp.ne.s32.totalorder %s158, %s159
      %p171 = scmp.eq.s32.totalorder %s23, 1
      %p172 = por %p170, %p171
      %p174 = scmp.ne.s32.totalorder %s159, %s173
      %p175 = scmp.eq.s32.totalorder %s23, 0
      %p176 = por %p174, %p175
      %s177 = ssub.s32 %s17, %s24
      %p178 = scmp.eq.s32.totalorder %s177, 0
      %s180 = sadd.s32 %s179, 1
      %s181 = scalar_select %p178, %s179, %s180
      %p184 = pneg %p178
      %p185 = scmp.eq.s32.totalorder %s17, 1
      %p186 = por %p184, %p185
      %p187 = scmp.ne.s32.totalorder %s179, %s182
      %p188 = scmp.eq.s32.totalorder %s17, 0
      %p189 = por %p187, %p188
      %p190 = scmp.ne.s32.totalorder %s179, %s182
      %p191 = scmp.eq.s32.totalorder %s22, 1
      %p192 = por %p190, %p191
      %p193 = scmp.ne.s32.totalorder %s182, %s183
      %p194 = scmp.eq.s32.totalorder %s22, 0
      %p195 = por %p193, %p194
      %p196 = scmp.ne.s32.totalorder %s182, %s183
      %p197 = scmp.eq.s32.totalorder %s23, 1
      %p198 = por %p196, %p197
      %p200 = scmp.ne.s32.totalorder %s183, %s199
      %p201 = scmp.eq.s32.totalorder %s23, 0
      %p202 = por %p200, %p201
      %p203 = scmp.le.s32.totalorder 1, %s17
      %p204 = scmp.lt.s32.totalorder %s17, 3
      %p205 = pnand %p203, %p204
      %p206 = pneg %p205
      // Predicated region
      $region9: #{motion_encoder_forward.1} parent=5 // pred_check
        _
      $region10: #{motion_encoder_forward.1} parent=5 // pred_check_branch
        %208 = sbr.rel (%p205) target = $region12
      $region11: #{motion_encoder_forward.1} parent=5 // pred_region
        %s209 = ssub.s32 %s17, 1
        // Predicated region
        $region13: #{motion_encoder_forward.1} parent=11 // pred_check
          %p210 = pneg %p64
        $region14: #{motion_encoder_forward.1} parent=11 // pred_check_branch
          %212 = sbr.rel (%p210) target = $region16
        $region15: #{motion_encoder_forward.1} parent=11 // pred_region
          _
        $region16: #{motion_encoder_forward.1} parent=11 // pred_fallthru
          _
        // Predicated region
        $region17: #{motion_encoder_forward.1} parent=11 // pred_check
          %p213 = pneg %p85
        $region18: #{motion_encoder_forward.1} parent=11 // pred_check_branch
          %215 = sbr.rel (%p213) target = $region20
        $region19: #{motion_encoder_forward.1} parent=11 // pred_region
          _
        $region20: #{motion_encoder_forward.1} parent=11 // pred_fallthru
          _
        // Predicated region
        $region21: #{motion_encoder_forward.1} parent=11 // pred_check
          %p216 = pneg %p106
        $region22: #{motion_encoder_forward.1} parent=11 // pred_check_branch
          %218 = sbr.rel (%p216) target = $region24
        $region23: #{motion_encoder_forward.1} parent=11 // pred_region
          %s220 = ssub.s32 3200, 3200
          %221 = vsyncadd [#allocation11], %s220
          %s222 = sshll.u32 [#allocation10], 4
          %s223 = int_to_ptr.vmem [resolvable:$true] %s222
          %228 = dma.hbm_to_vmem [thread:$0]  %s3, 3200, %s223, [#allocation11], 128, 128, 8
        $region24: #{motion_encoder_forward.1} parent=11 // pred_fallthru
          _
        // Predicated region
        $region25: #{motion_encoder_forward.1} parent=11 // pred_check
          %p229 = pneg %p127
        $region26: #{motion_encoder_forward.1} parent=11 // pred_check_branch
          %231 = sbr.rel (%p229) target = $region28
        $region27: #{motion_encoder_forward.1} parent=11 // pred_region
          _
        $region28: #{motion_encoder_forward.1} parent=11 // pred_fallthru
          _
        // Predicated region
        $region29: #{motion_encoder_forward.1} parent=11 // pred_check
          %p232 = pneg %p148
        $region30: #{motion_encoder_forward.1} parent=11 // pred_check_branch
          %234 = sbr.rel (%p232) target = $region32
        $region31: #{motion_encoder_forward.1} parent=11 // pred_region
          _
        $region32: #{motion_encoder_forward.1} parent=11 // pred_fallthru
          _
        // Predicated region
        $region33: #{motion_encoder_forward.1} parent=11 // pred_check
          %p235 = pneg %p169
        $region34: #{motion_encoder_forward.1} parent=11 // pred_check_branch
          %237 = sbr.rel (%p235) target = $region36
        $region35: #{motion_encoder_forward.1} parent=11 // pred_region
          _
        $region36: #{motion_encoder_forward.1} parent=11 // pred_fallthru
          _
      $region12: #{motion_encoder_forward.1} parent=5 // pred_fallthru
        _
      %p238 = scmp.lt.s32.totalorder %s17, 2
      // Predicated region
      $region37: #{motion_encoder_forward.1} parent=5 // pred_check
        %p239 = pneg %p238
      $region38: #{motion_encoder_forward.1} parent=5 // pred_check_branch
        %241 = sbr.rel (%p239) target = $region40
      $region39: #{motion_encoder_forward.1} parent=5 // pred_region
        // Predicated region
        $region41: #{motion_encoder_forward.1} parent=39 // pred_check
          %p242 = pneg %p37
        $region42: #{motion_encoder_forward.1} parent=39 // pred_check_branch
          %244 = sbr.rel (%p242) target = $region44
        $region43: #{motion_encoder_forward.1} parent=39 // pred_region
          %p245 = scmp.lt.s32.totalorder %s17, 1
          %s246 = scalar_select %p245, %s17, 1
          %s247 = smul.addr %s246, 32
          %s248 = smul.addr %s247, 8
          %s249 = scalar_lea.vmem %s0, %s248
        $region44: #{motion_encoder_forward.1} parent=39 // pred_fallthru
          _
      $region40: #{motion_encoder_forward.1} parent=5 // pred_fallthru
        _
      %p250 = scmp.le.s32.totalorder 1, %s17
      %p251 = scmp.lt.s32.totalorder %s17, 3
      %p252 = pnand %p250, %p251
      %p253 = pneg %p252
      // Predicated region
      $region45: #{motion_encoder_forward.1} parent=5 // pred_check
        _
      $region46: #{motion_encoder_forward.1} parent=5 // pred_check_branch
        %255 = sbr.rel (%p252) target = $region48
      $region47: #{motion_encoder_forward.1} parent=5 // pred_region
        %s256 = ssub.s32 %s17, 1
        // Predicated region
        $region49: #{motion_encoder_forward.1} parent=47 // pred_check
          %p257 = pneg %p106
        $region50: #{motion_encoder_forward.1} parent=47 // pred_check_branch
          %259 = sbr.rel (%p257) target = $region52
        $region51: #{motion_encoder_forward.1} parent=47 // pred_region
          %260 = dma.done [#allocation11], 3200
        $region52: #{motion_encoder_forward.1} parent=47 // pred_fallthru
          _
        %p261 = scmp.lt.s32.totalorder %s22, 1
        %s262 = scalar_select %p261, %s22, 1
        %s263 = smul.addr %s262, 32
        %s264 = smul.addr %s263, 8
        %s265 = scalar_lea.vmem %s0, %s264
        %p266 = pneg %p43
        %p267 = pneg %p40
        %p268 = pneg %p64
        %p269 = pneg %p61
        %p270 = pneg %p85
        %p271 = pneg %p82
        %p272 = pneg %p106
        %p273 = pneg %p103
        %p274 = pneg %p127
        %p275 = pneg %p124
        %p276 = pneg %p148
        %p277 = pneg %p145
        %p278 = pneg %p169
        %p279 = pneg %p166
        %p280 = pneg %p195
        %p281 = pneg %p192
        %s282 = sand.u32 %s182, 1
        %s283 = scalar_lea.sflag [#allocation12], %s282
        %s284 = sand.u32 %s182, 1
        %s285 = smul.addr %s284, 16
        %s286 = scalar_lea.vmem [#allocation13], %s285
        %p287 = scmp.lt.s32.totalorder %s22, 1
        %s288 = scalar_select %p287, %s22, 1
        %s289 = smul.addr %s288, 32
        %s290 = smul.addr %s289, 8
        %s291 = scalar_lea.vmem %s0, %s290
        %vm292 = vcmask 31744
        %293 = vst.msk [vmem:[#allocation2] sm:$0xff] %vm292, 0.0
        %294 = vst.msk [vmem:[#allocation2 + $0x8] sm:$0xff] %vm292, 0.0
        %vm295 = vcmask 27648
        %296 = vst.msk [vmem:[#allocation2 + $0x10] sm:$0xf] %vm295, 0.0
        %297 = vst.msk [vmem:[#allocation2 + $0x18] sm:$0xff] %vm292, 0.0
        %298 = vst.msk [vmem:[#allocation2 + $0x20] sm:$0xff] %vm292, 0.0
        %299 = vst.msk [vmem:[#allocation2 + $0x28] sm:$0xf] %vm295, 0.0
        %300 = vst.msk [vmem:[#allocation2 + $0x30] sm:$0xff] %vm292, 0.0
        %301 = vst.msk [vmem:[#allocation2 + $0x38] sm:$0xff] %vm292, 0.0
        %302 = vst.msk [vmem:[#allocation2 + $0x40] sm:$0xf] %vm295, 0.0
        %303 = vst.msk [vmem:[#allocation2 + $0x48] sm:$0xff] %vm292, 0.0
        %304 = vst.msk [vmem:[#allocation2 + $0x50] sm:$0xff] %vm292, 0.0
        %305 = vst.msk [vmem:[#allocation2 + $0x58] sm:$0xf] %vm295, 0.0
        %306 = vst.msk [vmem:[#allocation2 + $0x60] sm:$0xff] %vm292, 0.0
        %307 = vst.msk [vmem:[#allocation2 + $0x68] sm:$0xff] %vm292, 0.0
        %308 = vst.msk [vmem:[#allocation2 + $0x70] sm:$0xf] %vm295, 0.0
        %309 = vst.msk [vmem:[#allocation2 + $0x78] sm:$0xff] %vm292, 0.0
        %310 = vst.msk [vmem:[#allocation2 + $0x80] sm:$0xff] %vm292, 0.0
        %311 = vst.msk [vmem:[#allocation2 + $0x88] sm:$0xf] %vm295, 0.0
        %312 = vst.msk [vmem:[#allocation2 + $0x90] sm:$0xff] %vm292, 0.0
        %313 = vst.msk [vmem:[#allocation2 + $0x98] sm:$0xff] %vm292, 0.0
        %314 = vst.msk [vmem:[#allocation2 + $0xa0] sm:$0xf] %vm295, 0.0
        %315 = vst.msk [vmem:[#allocation2 + $0xa8] sm:$0xff] %vm292, 0.0
        %316 = vst.msk [vmem:[#allocation2 + $0xb0] sm:$0xff] %vm292, 0.0
        %317 = vst.msk [vmem:[#allocation2 + $0xb8] sm:$0xf] %vm295, 0.0
        %318 = vst.msk [vmem:[#allocation2 + $0xc0] sm:$0xff] %vm292, 0.0
        %319 = vst.msk [vmem:[#allocation2 + $0xc8] sm:$0xff] %vm292, 0.0
        %320 = vst.msk [vmem:[#allocation2 + $0xd0] sm:$0xf] %vm295, 0.0
        %321 = vst.msk [vmem:[#allocation2 + $0xd8] sm:$0xff] %vm292, 0.0
        %322 = vst.msk [vmem:[#allocation2 + $0xe0] sm:$0xff] %vm292, 0.0
        %323 = vst.msk [vmem:[#allocation2 + $0xe8] sm:$0xf] %vm295, 0.0
        %324 = vst.msk [vmem:[#allocation2 + $0xf0] sm:$0xff] %vm292, 0.0
        %325 = vst.msk [vmem:[#allocation2 + $0xf8] sm:$0xff] %vm292, 0.0
        %326 = vst.msk [vmem:[#allocation2 + $0x100] sm:$0xf] %vm295, 0.0
        %327 = vst.msk [vmem:[#allocation2 + $0x108] sm:$0xff] %vm292, 0.0
        %328 = vst.msk [vmem:[#allocation2 + $0x110] sm:$0xff] %vm292, 0.0
        %329 = vst.msk [vmem:[#allocation2 + $0x118] sm:$0xf] %vm295, 0.0
        %330 = vst.msk [vmem:[#allocation2 + $0x120] sm:$0xff] %vm292, 0.0
        %331 = vst.msk [vmem:[#allocation2 + $0x128] sm:$0xff] %vm292, 0.0
        %332 = vst.msk [vmem:[#allocation2 + $0x130] sm:$0xf] %vm295, 0.0
        %333 = vst.msk [vmem:[#allocation2 + $0x138] sm:$0xff] %vm292, 0.0
        %334 = vst.msk [vmem:[#allocation2 + $0x140] sm:$0xff] %vm292, 0.0
        %335 = vst.msk [vmem:[#allocation2 + $0x148] sm:$0xf] %vm295, 0.0
        %336 = vst.msk [vmem:[#allocation2 + $0x150] sm:$0xff] %vm292, 0.0
        %337 = vst.msk [vmem:[#allocation2 + $0x158] sm:$0xff] %vm292, 0.0
        %338 = vst.msk [vmem:[#allocation2 + $0x160] sm:$0xf] %vm295, 0.0
        %339 = vst.msk [vmem:[#allocation2 + $0x168] sm:$0xff] %vm292, 0.0
        %340 = vst.msk [vmem:[#allocation2 + $0x170] sm:$0xff] %vm292, 0.0
        %341 = vst.msk [vmem:[#allocation2 + $0x178] sm:$0xf] %vm295, 0.0
        %342 = vst.msk [vmem:[#allocation2 + $0x180] sm:$0xff] %vm292, 0.0
        %343 = vst.msk [vmem:[#allocation2 + $0x188] sm:$0xff] %vm292, 0.0
        %344 = vst.msk [vmem:[#allocation2 + $0x190] sm:$0xf] %vm295, 0.0
        %345 = vst.msk [vmem:[#allocation2 + $0x198] sm:$0xff] %vm292, 0.0
        %346 = vst.msk [vmem:[#allocation2 + $0x1a0] sm:$0xff] %vm292, 0.0
        %347 = vst.msk [vmem:[#allocation2 + $0x1a8] sm:$0xf] %vm295, 0.0
        %348 = vst.msk [vmem:[#allocation2 + $0x1b0] sm:$0xff] %vm292, 0.0
        %349 = vst.msk [vmem:[#allocation2 + $0x1b8] sm:$0xff] %vm292, 0.0
        %350 = vst.msk [vmem:[#allocation2 + $0x1c0] sm:$0xf] %vm295, 0.0
        %351 = vst.msk [vmem:[#allocation2 + $0x1c8] sm:$0xff] %vm292, 0.0
        %352 = vst.msk [vmem:[#allocation2 + $0x1d0] sm:$0xff] %vm292, 0.0
        %353 = vst.msk [vmem:[#allocation2 + $0x1d8] sm:$0xf] %vm295, 0.0
        %v354 = vld [vmem:[%s291] sm:$0xff]
        %v355 = vld [vmem:[%s291 + $0x8] sm:$0xff]
        %v356 = vld [vmem:[%s291 + $0x10] sm:$0xff]
        %v357 = vld [vmem:[%s291 + $0x18] sm:$0xff]
        %v358 = vld [vmem:[%s291 + $0x20] sm:$0xff]
        %v359 = vld [vmem:[%s291 + $0x28] sm:$0xff]
        %v360 = vld [vmem:[%s291 + $0x30] sm:$0xff]
        %v361 = vld [vmem:[%s291 + $0x38] sm:$0xff]
        %v362 = vld [vmem:[%s291 + $0x40] sm:$0xff]
        %v363 = vld [vmem:[%s291 + $0x48] sm:$0xff]
        %v364 = vld [vmem:[%s291 + $0x50] sm:$0xff]
        %v365 = vld [vmem:[%s291 + $0x58] sm:$0xff]
        %v366 = vld [vmem:[%s291 + $0x60] sm:$0xff]
        %v367 = vld [vmem:[%s291 + $0x68] sm:$0xff]
        %v368 = vld [vmem:[%s291 + $0x70] sm:$0xff]
        %v369 = vld [vmem:[%s291 + $0x78] sm:$0xff]
        %v370 = vld [vmem:[%s291 + $0x80] sm:$0xff]
        %v371 = vld [vmem:[%s291 + $0x88] sm:$0xff]
        %v372 = vld [vmem:[%s291 + $0x90] sm:$0xff]
        %v373 = vld [vmem:[%s291 + $0x98] sm:$0xff]
        %v374 = vld [vmem:[%s291 + $0xa0] sm:$0xff]
        %v375 = vld [vmem:[%s291 + $0xa8] sm:$0xff]
        %v376 = vld [vmem:[%s291 + $0xb0] sm:$0xff]
        %v377 = vld [vmem:[%s291 + $0xb8] sm:$0xff]
        %v378 = vld [vmem:[%s291 + $0xc0] sm:$0xff]
        %v379 = vld [vmem:[%s291 + $0xc8] sm:$0xff]
        %v380 = vld [vmem:[%s291 + $0xd0] sm:$0xff]
        %v381 = vld [vmem:[%s291 + $0xd8] sm:$0xff]
        %v382 = vld [vmem:[%s291 + $0xe0] sm:$0xff]
        %v383 = vld [vmem:[%s291 + $0xe8] sm:$0xff]
        %v384 = vld [vmem:[%s291 + $0xf0] sm:$0xff]
        %v385 = vld [vmem:[%s291 + $0xf8] sm:$0xff]
        %s386 = scalar_lea.vmem [#allocation2], 48
        %387 = vst.msk [vmem:[%s386 + $0x2] sm:$0xff] %vm292, %v354
        %388 = vst.msk [vmem:[%s386 + $0xa] sm:$0xff] %vm292, %v355
        %389 = vst.msk [vmem:[%s386 + $0x1a] sm:$0xff] %vm292, %v356
        %390 = vst.msk [vmem:[%s386 + $0x22] sm:$0xff] %vm292, %v357
        %391 = vst.msk [vmem:[%s386 + $0x32] sm:$0xff] %vm292, %v358
        %392 = vst.msk [vmem:[%s386 + $0x3a] sm:$0xff] %vm292, %v359
        %393 = vst.msk [vmem:[%s386 + $0x4a] sm:$0xff] %vm292, %v360
        %394 = vst.msk [vmem:[%s386 + $0x52] sm:$0xff] %vm292, %v361
        %395 = vst.msk [vmem:[%s386 + $0x62] sm:$0xff] %vm292, %v362
        %396 = vst.msk [vmem:[%s386 + $0x6a] sm:$0xff] %vm292, %v363
        %397 = vst.msk [vmem:[%s386 + $0x7a] sm:$0xff] %vm292, %v364
        %398 = vst.msk [vmem:[%s386 + $0x82] sm:$0xff] %vm292, %v365
        %399 = vst.msk [vmem:[%s386 + $0x92] sm:$0xff] %vm292, %v366
        %400 = vst.msk [vmem:[%s386 + $0x9a] sm:$0xff] %vm292, %v367
        %401 = vst.msk [vmem:[%s386 + $0xaa] sm:$0xff] %vm292, %v368
        %402 = vst.msk [vmem:[%s386 + $0xb2] sm:$0xff] %vm292, %v369
        %403 = vst.msk [vmem:[%s386 + $0xc2] sm:$0xff] %vm292, %v370
        %404 = vst.msk [vmem:[%s386 + $0xca] sm:$0xff] %vm292, %v371
        %405 = vst.msk [vmem:[%s386 + $0xda] sm:$0xff] %vm292, %v372
        %406 = vst.msk [vmem:[%s386 + $0xe2] sm:$0xff] %vm292, %v373
        %407 = vst.msk [vmem:[%s386 + $0xf2] sm:$0xff] %vm292, %v374
        %408 = vst.msk [vmem:[%s386 + $0xfa] sm:$0xff] %vm292, %v375
        %409 = vst.msk [vmem:[%s386 + $0x10a] sm:$0xff] %vm292, %v376
        %410 = vst.msk [vmem:[%s386 + $0x112] sm:$0xff] %vm292, %v377
        %411 = vst.msk [vmem:[%s386 + $0x122] sm:$0xff] %vm292, %v378
        %412 = vst.msk [vmem:[%s386 + $0x12a] sm:$0xff] %vm292, %v379
        %413 = vst.msk [vmem:[%s386 + $0x13a] sm:$0xff] %vm292, %v380
        %414 = vst.msk [vmem:[%s386 + $0x142] sm:$0xff] %vm292, %v381
        %415 = vst.msk [vmem:[%s386 + $0x152] sm:$0xff] %vm292, %v382
        %416 = vst.msk [vmem:[%s386 + $0x15a] sm:$0xff] %vm292, %v383
        %417 = vst.msk [vmem:[%s386 + $0x16a] sm:$0xff] %vm292, %v384
        %418 = vst.msk [vmem:[%s386 + $0x172] sm:$0xff] %vm292, %v385
        %v419 = vld [vmem:[#allocation2] sm:$0xff]
        %v420 = vld [vmem:[#allocation2 + $0x8] sm:$0xff]
        %v421 = vld [vmem:[#allocation2 + $0x18] sm:$0xff]
        %v422 = vld [vmem:[#allocation2 + $0x20] sm:$0xff]
        %v423 = vld [vmem:[#allocation2 + $0x30] sm:$0xff]
        %v424 = vld [vmem:[#allocation2 + $0x38] sm:$0xff]
        %v425 = vld [vmem:[#allocation2 + $0x48] sm:$0xff]
        %v426 = vld [vmem:[#allocation2 + $0x50] sm:$0xff]
        %v427 = vld [vmem:[#allocation2 + $0x60] sm:$0xff]
        %v428 = vld [vmem:[#allocation2 + $0x68] sm:$0xff]
        %v429 = vld [vmem:[#allocation2 + $0x78] sm:$0xff]
        %v430 = vld [vmem:[#allocation2 + $0x80] sm:$0xff]
        %v431 = vld [vmem:[#allocation2 + $0x90] sm:$0xff]
        %v432 = vld [vmem:[#allocation2 + $0x98] sm:$0xff]
        %v433 = vld [vmem:[#allocation2 + $0xa8] sm:$0xff]
        %v434 = vld [vmem:[#allocation2 + $0xb0] sm:$0xff]
        %v435 = vld [vmem:[#allocation2 + $0xc0] sm:$0xff]
        %v436 = vld [vmem:[#allocation2 + $0xc8] sm:$0xff]
        %v437 = vld [vmem:[#allocation2 + $0xd8] sm:$0xff]
        %v438 = vld [vmem:[#allocation2 + $0xe0] sm:$0xff]
        %v439 = vld [vmem:[#allocation2 + $0xf0] sm:$0xff]
        %v440 = vld [vmem:[#allocation2 + $0xf8] sm:$0xff]
        %v441 = vld [vmem:[#allocation2 + $0x108] sm:$0xff]
        %v442 = vld [vmem:[#allocation2 + $0x110] sm:$0xff]
        %v443 = vld [vmem:[#allocation2 + $0x120] sm:$0xff]
        %v444 = vld [vmem:[#allocation2 + $0x128] sm:$0xff]
        %v445 = vld [vmem:[#allocation2 + $0x138] sm:$0xff]
        %v446 = vld [vmem:[#allocation2 + $0x140] sm:$0xff]
        %v447 = vld [vmem:[#allocation2 + $0x150] sm:$0xff]
        %v448 = vld [vmem:[#allocation2 + $0x158] sm:$0xff]
        %v449 = vld [vmem:[#allocation2 + $0x168] sm:$0xff]
        %v450 = vld [vmem:[#allocation2 + $0x170] sm:$0xff]
        %v451 = vld [vmem:[#allocation2 + $0x180] sm:$0xff]
        %v452 = vld [vmem:[#allocation2 + $0x188] sm:$0xff]
        %v453 = vld [vmem:[#allocation2 + $0x198] sm:$0xff]
        %v454 = vld [vmem:[#allocation2 + $0x1a0] sm:$0xff]
        %v455 = vld [vmem:[#allocation2 + $0x1b0] sm:$0xff]
        %v456 = vld [vmem:[#allocation2 + $0x1b8] sm:$0xff]
        %v457 = vld [vmem:[#allocation2 + $0x1c8] sm:$0xff]
        %v458 = vld [vmem:[#allocation2 + $0x1d0] sm:$0xff]
        %v459 = vld [vmem:[#allocation2 + $0x1] sm:$0xff]
        %v460 = vld [vmem:[#allocation2 + $0x9] sm:$0xff]
        %v461 = vld [vmem:[#allocation2 + $0x19] sm:$0xff]
        %v462 = vld [vmem:[#allocation2 + $0x21] sm:$0xff]
        %v463 = vld [vmem:[#allocation2 + $0x31] sm:$0xff]
        %v464 = vld [vmem:[#allocation2 + $0x39] sm:$0xff]
        %v465 = vld [vmem:[#allocation2 + $0x49] sm:$0xff]
        %v466 = vld [vmem:[#allocation2 + $0x51] sm:$0xff]
        %v467 = vld [vmem:[#allocation2 + $0x61] sm:$0xff]
        %v468 = vld [vmem:[#allocation2 + $0x69] sm:$0xff]
        %v469 = vld [vmem:[#allocation2 + $0x79] sm:$0xff]
        %v470 = vld [vmem:[#allocation2 + $0x81] sm:$0xff]
        %v471 = vld [vmem:[#allocation2 + $0x91] sm:$0xff]
        %v472 = vld [vmem:[#allocation2 + $0x99] sm:$0xff]
        %v473 = vld [vmem:[#allocation2 + $0xa9] sm:$0xff]
        %v474 = vld [vmem:[#allocation2 + $0xb1] sm:$0xff]
        %v475 = vld [vmem:[#allocation2 + $0xc1] sm:$0xff]
        %v476 = vld [vmem:[#allocation2 + $0xc9] sm:$0xff]
        %v477 = vld [vmem:[#allocation2 + $0xd9] sm:$0xff]
        %v478 = vld [vmem:[#allocation2 + $0xe1] sm:$0xff]
        %v479 = vld [vmem:[#allocation2 + $0xf1] sm:$0xff]
        %v480 = vld [vmem:[#allocation2 + $0xf9] sm:$0xff]
        %v481 = vld [vmem:[#allocation2 + $0x109] sm:$0xff]
        %v482 = vld [vmem:[#allocation2 + $0x111] sm:$0xff]
        %v483 = vld [vmem:[#allocation2 + $0x121] sm:$0xff]
        %v484 = vld [vmem:[#allocation2 + $0x129] sm:$0xff]
        %v485 = vld [vmem:[#allocation2 + $0x139] sm:$0xff]
        %v486 = vld [vmem:[#allocation2 + $0x141] sm:$0xff]
        %v487 = vld [vmem:[#allocation2 + $0x151] sm:$0xff]
        %v488 = vld [vmem:[#allocation2 + $0x159] sm:$0xff]
        %v489 = vld [vmem:[#allocation2 + $0x169] sm:$0xff]
        %v490 = vld [vmem:[#allocation2 + $0x171] sm:$0xff]
        %v491 = vld [vmem:[#allocation2 + $0x181] sm:$0xff]
        %v492 = vld [vmem:[#allocation2 + $0x189] sm:$0xff]
        %v493 = vld [vmem:[#allocation2 + $0x199] sm:$0xff]
        %v494 = vld [vmem:[#allocation2 + $0x1a1] sm:$0xff]
        %v495 = vld [vmem:[#allocation2 + $0x1b1] sm:$0xff]
        %v496 = vld [vmem:[#allocation2 + $0x1b9] sm:$0xff]
        %v497 = vld [vmem:[#allocation2 + $0x1c9] sm:$0xff]
        %v498 = vld [vmem:[#allocation2 + $0x1d1] sm:$0xff]
        %v499 = vld [vmem:[#allocation2 + $0x2] sm:$0xff]
        %v500 = vld [vmem:[#allocation2 + $0xa] sm:$0xff]
        %v501 = vld [vmem:[#allocation2 + $0x1a] sm:$0xff]
        %v502 = vld [vmem:[#allocation2 + $0x22] sm:$0xff]
        %v503 = vld [vmem:[#allocation2 + $0x32] sm:$0xff]
        %v504 = vld [vmem:[#allocation2 + $0x3a] sm:$0xff]
        %v505 = vld [vmem:[#allocation2 + $0x4a] sm:$0xff]
        %v506 = vld [vmem:[#allocation2 + $0x52] sm:$0xff]
        %v507 = vld [vmem:[#allocation2 + $0x62] sm:$0xff]
        %v508 = vld [vmem:[#allocation2 + $0x6a] sm:$0xff]
        %v509 = vld [vmem:[#allocation2 + $0x7a] sm:$0xff]
        %v510 = vld [vmem:[#allocation2 + $0x82] sm:$0xff]
        %v511 = vld [vmem:[#allocation2 + $0x92] sm:$0xff]
        %v512 = vld [vmem:[#allocation2 + $0x9a] sm:$0xff]
        %v513 = vld [vmem:[#allocation2 + $0xaa] sm:$0xff]
        %v514 = vld [vmem:[#allocation2 + $0xb2] sm:$0xff]
        %v515 = vld [vmem:[#allocation2 + $0xc2] sm:$0xff]
        %v516 = vld [vmem:[#allocation2 + $0xca] sm:$0xff]
        %v517 = vld [vmem:[#allocation2 + $0xda] sm:$0xff]
        %v518 = vld [vmem:[#allocation2 + $0xe2] sm:$0xff]
        %v519 = vld [vmem:[#allocation2 + $0xf2] sm:$0xff]
        %v520 = vld [vmem:[#allocation2 + $0xfa] sm:$0xff]
        %v521 = vld [vmem:[#allocation2 + $0x10a] sm:$0xff]
        %v522 = vld [vmem:[#allocation2 + $0x112] sm:$0xff]
        %v523 = vld [vmem:[#allocation2 + $0x122] sm:$0xff]
        %v524 = vld [vmem:[#allocation2 + $0x12a] sm:$0xff]
        %v525 = vld [vmem:[#allocation2 + $0x13a] sm:$0xff]
        %v526 = vld [vmem:[#allocation2 + $0x142] sm:$0xff]
        %v527 = vld [vmem:[#allocation2 + $0x152] sm:$0xff]
        %v528 = vld [vmem:[#allocation2 + $0x15a] sm:$0xff]
        %v529 = vld [vmem:[#allocation2 + $0x16a] sm:$0xff]
        %v530 = vld [vmem:[#allocation2 + $0x172] sm:$0xff]
        %v531 = vld [vmem:[#allocation2 + $0x182] sm:$0xff]
        %v532 = vld [vmem:[#allocation2 + $0x18a] sm:$0xff]
        %v533 = vld [vmem:[#allocation2 + $0x19a] sm:$0xff]
        %v534 = vld [vmem:[#allocation2 + $0x1a2] sm:$0xff]
        %v535 = vld [vmem:[#allocation2 + $0x1b2] sm:$0xff]
        %v536 = vld [vmem:[#allocation2 + $0x1ba] sm:$0xff]
        %v537 = vld [vmem:[#allocation2 + $0x1ca] sm:$0xff]
        %v538 = vld [vmem:[#allocation2 + $0x1d2] sm:$0xff]
        %v539 = vld [vmem:[#allocation2 + $0x3] sm:$0xff]
        %v540 = vld [vmem:[#allocation2 + $0xb] sm:$0xff]
        %v541 = vld [vmem:[#allocation2 + $0x1b] sm:$0xff]
        %v542 = vld [vmem:[#allocation2 + $0x23] sm:$0xff]
        %v543 = vld [vmem:[#allocation2 + $0x33] sm:$0xff]
        %v544 = vld [vmem:[#allocation2 + $0x3b] sm:$0xff]
        %v545 = vld [vmem:[#allocation2 + $0x4b] sm:$0xff]
        %v546 = vld [vmem:[#allocation2 + $0x53] sm:$0xff]
        %v547 = vld [vmem:[#allocation2 + $0x63] sm:$0xff]
        %v548 = vld [vmem:[#allocation2 + $0x6b] sm:$0xff]
        %v549 = vld [vmem:[#allocation2 + $0x7b] sm:$0xff]
        %v550 = vld [vmem:[#allocation2 + $0x83] sm:$0xff]
        %v551 = vld [vmem:[#allocation2 + $0x93] sm:$0xff]
        %v552 = vld [vmem:[#allocation2 + $0x9b] sm:$0xff]
        %v553 = vld [vmem:[#allocation2 + $0xab] sm:$0xff]
        %v554 = vld [vmem:[#allocation2 + $0xb3] sm:$0xff]
        %v555 = vld [vmem:[#allocation2 + $0xc3] sm:$0xff]
        %v556 = vld [vmem:[#allocation2 + $0xcb] sm:$0xff]
        %v557 = vld [vmem:[#allocation2 + $0xdb] sm:$0xff]
        %v558 = vld [vmem:[#allocation2 + $0xe3] sm:$0xff]
        %v559 = vld [vmem:[#allocation2 + $0xf3] sm:$0xff]
        %v560 = vld [vmem:[#allocation2 + $0xfb] sm:$0xff]
        %v561 = vld [vmem:[#allocation2 + $0x10b] sm:$0xff]
        %v562 = vld [vmem:[#allocation2 + $0x113] sm:$0xff]
        %v563 = vld [vmem:[#allocation2 + $0x123] sm:$0xff]
        %v564 = vld [vmem:[#allocation2 + $0x12b] sm:$0xff]
        %v565 = vld [vmem:[#allocation2 + $0x13b] sm:$0xff]
        %v566 = vld [vmem:[#allocation2 + $0x143] sm:$0xff]
        %v567 = vld [vmem:[#allocation2 + $0x153] sm:$0xff]
        %v568 = vld [vmem:[#allocation2 + $0x15b] sm:$0xff]
        %v569 = vld [vmem:[#allocation2 + $0x16b] sm:$0xff]
        %v570 = vld [vmem:[#allocation2 + $0x173] sm:$0xff]
        %v571 = vld [vmem:[#allocation2 + $0x183] sm:$0xff]
        %v572 = vld [vmem:[#allocation2 + $0x18b] sm:$0xff]
        %v573 = vld [vmem:[#allocation2 + $0x19b] sm:$0xff]
        %v574 = vld [vmem:[#allocation2 + $0x1a3] sm:$0xff]
        %v575 = vld [vmem:[#allocation2 + $0x1b3] sm:$0xff]
        %v576 = vld [vmem:[#allocation2 + $0x1bb] sm:$0xff]
        %v577 = vld [vmem:[#allocation2 + $0x1cb] sm:$0xff]
        %v578 = vld [vmem:[#allocation2 + $0x1d3] sm:$0xff]
        %v579 = vld [vmem:[#allocation2 + $0x4] sm:$0xff]
        %v580 = vld [vmem:[#allocation2 + $0xc] sm:$0xff]
        %v581 = vld [vmem:[#allocation2 + $0x1c] sm:$0xff]
        %v582 = vld [vmem:[#allocation2 + $0x24] sm:$0xff]
        %v583 = vld [vmem:[#allocation2 + $0x34] sm:$0xff]
        %v584 = vld [vmem:[#allocation2 + $0x3c] sm:$0xff]
        %v585 = vld [vmem:[#allocation2 + $0x4c] sm:$0xff]
        %v586 = vld [vmem:[#allocation2 + $0x54] sm:$0xff]
        %v587 = vld [vmem:[#allocation2 + $0x64] sm:$0xff]
        %v588 = vld [vmem:[#allocation2 + $0x6c] sm:$0xff]
        %v589 = vld [vmem:[#allocation2 + $0x7c] sm:$0xff]
        %v590 = vld [vmem:[#allocation2 + $0x84] sm:$0xff]
        %v591 = vld [vmem:[#allocation2 + $0x94] sm:$0xff]
        %v592 = vld [vmem:[#allocation2 + $0x9c] sm:$0xff]
        %v593 = vld [vmem:[#allocation2 + $0xac] sm:$0xff]
        %v594 = vld [vmem:[#allocation2 + $0xb4] sm:$0xff]
        %v595 = vld [vmem:[#allocation2 + $0xc4] sm:$0xff]
        %v596 = vld [vmem:[#allocation2 + $0xcc] sm:$0xff]
        %v597 = vld [vmem:[#allocation2 + $0xdc] sm:$0xff]
        %v598 = vld [vmem:[#allocation2 + $0xe4] sm:$0xff]
        %v599 = vld [vmem:[#allocation2 + $0xf4] sm:$0xff]
        %v600 = vld [vmem:[#allocation2 + $0xfc] sm:$0xff]
        %v601 = vld [vmem:[#allocation2 + $0x10c] sm:$0xff]
        %v602 = vld [vmem:[#allocation2 + $0x114] sm:$0xff]
        %v603 = vld [vmem:[#allocation2 + $0x124] sm:$0xff]
        %v604 = vld [vmem:[#allocation2 + $0x12c] sm:$0xff]
        %v605 = vld [vmem:[#allocation2 + $0x13c] sm:$0xff]
        %v606 = vld [vmem:[#allocation2 + $0x144] sm:$0xff]
        %v607 = vld [vmem:[#allocation2 + $0x154] sm:$0xff]
        %v608 = vld [vmem:[#allocation2 + $0x15c] sm:$0xff]
        %v609 = vld [vmem:[#allocation2 + $0x16c] sm:$0xff]
        %v610 = vld [vmem:[#allocation2 + $0x174] sm:$0xff]
        %v611 = vld [vmem:[#allocation2 + $0x184] sm:$0xff]
        %v612 = vld [vmem:[#allocation2 + $0x18c] sm:$0xff]
        %v613 = vld [vmem:[#allocation2 + $0x19c] sm:$0xff]
        %v614 = vld [vmem:[#allocation2 + $0x1a4] sm:$0xff]
        %v615 = vld [vmem:[#allocation2 + $0x1b4] sm:$0xff]
        %v616 = vld [vmem:[#allocation2 + $0x1bc] sm:$0xff]
        %v617 = vld [vmem:[#allocation2 + $0x1cc] sm:$0xff]
        %v618 = vld [vmem:[#allocation2 + $0x1d4] sm:$0xff]
        %659 = vrot.lane.b32.xlu0 %v459, 4
        %v660 = vpop.permute.xlu0 %659
        %661 = vrot.lane.b32.xlu0 %v460, 4
        %v662 = vpop.permute.xlu0 %661
        %663 = vrot.lane.b32.xlu0 %v461, 4
        %v664 = vpop.permute.xlu0 %663
        %665 = vrot.lane.b32.xlu0 %v462, 4
        %v666 = vpop.permute.xlu0 %665
        %667 = vrot.lane.b32.xlu0 %v463, 4
        %v668 = vpop.permute.xlu0 %667
        %669 = vrot.lane.b32.xlu0 %v464, 4
        %v670 = vpop.permute.xlu0 %669
        %671 = vrot.lane.b32.xlu0 %v465, 4
        %v672 = vpop.permute.xlu0 %671
        %673 = vrot.lane.b32.xlu0 %v466, 4
        %v674 = vpop.permute.xlu0 %673
        %675 = vrot.lane.b32.xlu0 %v467, 4
        %v676 = vpop.permute.xlu0 %675
        %677 = vrot.lane.b32.xlu0 %v468, 4
        %v678 = vpop.permute.xlu0 %677
        %679 = vrot.lane.b32.xlu0 %v469, 4
        %v680 = vpop.permute.xlu0 %679
        %681 = vrot.lane.b32.xlu0 %v470, 4
        %v682 = vpop.permute.xlu0 %681
        %683 = vrot.lane.b32.xlu0 %v471, 4
        %v684 = vpop.permute.xlu0 %683
        %685 = vrot.lane.b32.xlu0 %v472, 4
        %v686 = vpop.permute.xlu0 %685
        %687 = vrot.lane.b32.xlu0 %v473, 4
        %v688 = vpop.permute.xlu0 %687
        %689 = vrot.lane.b32.xlu0 %v474, 4
        %v690 = vpop.permute.xlu0 %689
        %691 = vrot.lane.b32.xlu0 %v475, 4
        %v692 = vpop.permute.xlu0 %691
        %693 = vrot.lane.b32.xlu0 %v476, 4
        %v694 = vpop.permute.xlu0 %693
        %695 = vrot.lane.b32.xlu0 %v477, 4
        %v696 = vpop.permute.xlu0 %695
        %697 = vrot.lane.b32.xlu0 %v478, 4
        %v698 = vpop.permute.xlu0 %697
        %699 = vrot.lane.b32.xlu0 %v479, 4
        %v700 = vpop.permute.xlu0 %699
        %701 = vrot.lane.b32.xlu0 %v480, 4
        %v702 = vpop.permute.xlu0 %701
        %703 = vrot.lane.b32.xlu0 %v481, 4
        %v704 = vpop.permute.xlu0 %703
        %705 = vrot.lane.b32.xlu0 %v482, 4
        %v706 = vpop.permute.xlu0 %705
        %707 = vrot.lane.b32.xlu0 %v483, 4
        %v708 = vpop.permute.xlu0 %707
        %709 = vrot.lane.b32.xlu0 %v484, 4
        %v710 = vpop.permute.xlu0 %709
        %711 = vrot.lane.b32.xlu0 %v485, 4
        %v712 = vpop.permute.xlu0 %711
        %713 = vrot.lane.b32.xlu0 %v486, 4
        %v714 = vpop.permute.xlu0 %713
        %715 = vrot.lane.b32.xlu0 %v487, 4
        %v716 = vpop.permute.xlu0 %715
        %717 = vrot.lane.b32.xlu0 %v488, 4
        %v718 = vpop.permute.xlu0 %717
        %719 = vrot.lane.b32.xlu0 %v489, 4
        %v720 = vpop.permute.xlu0 %719
        %721 = vrot.lane.b32.xlu0 %v490, 4
        %v722 = vpop.permute.xlu0 %721
        %723 = vrot.lane.b32.xlu0 %v491, 4
        %v724 = vpop.permute.xlu0 %723
        %725 = vrot.lane.b32.xlu0 %v492, 4
        %v726 = vpop.permute.xlu0 %725
        %727 = vrot.lane.b32.xlu0 %v493, 4
        %v728 = vpop.permute.xlu0 %727
        %729 = vrot.lane.b32.xlu0 %v494, 4
        %v730 = vpop.permute.xlu0 %729
        %731 = vrot.lane.b32.xlu0 %v495, 4
        %v732 = vpop.permute.xlu0 %731
        %733 = vrot.lane.b32.xlu0 %v496, 4
        %v734 = vpop.permute.xlu0 %733
        %735 = vrot.lane.b32.xlu0 %v497, 4
        %v736 = vpop.permute.xlu0 %735
        %737 = vrot.lane.b32.xlu0 %v498, 4
        %v738 = vpop.permute.xlu0 %737
        %819 = vrot.lane.b32.xlu0 %v499, 8
        %v820 = vpop.permute.xlu0 %819
        %821 = vrot.lane.b32.xlu0 %v500, 8
        %v822 = vpop.permute.xlu0 %821
        %823 = vrot.lane.b32.xlu0 %v501, 8
        %v824 = vpop.permute.xlu0 %823
        %825 = vrot.lane.b32.xlu0 %v502, 8
        %v826 = vpop.permute.xlu0 %825
        %827 = vrot.lane.b32.xlu0 %v503, 8
        %v828 = vpop.permute.xlu0 %827
        %829 = vrot.lane.b32.xlu0 %v504, 8
        %v830 = vpop.permute.xlu0 %829
        %831 = vrot.lane.b32.xlu0 %v505, 8
        %v832 = vpop.permute.xlu0 %831
        %833 = vrot.lane.b32.xlu0 %v506, 8
        %v834 = vpop.permute.xlu0 %833
        %835 = vrot.lane.b32.xlu0 %v507, 8
        %v836 = vpop.permute.xlu0 %835
        %837 = vrot.lane.b32.xlu0 %v508, 8
        %v838 = vpop.permute.xlu0 %837
        %839 = vrot.lane.b32.xlu0 %v509, 8
        %v840 = vpop.permute.xlu0 %839
        %841 = vrot.lane.b32.xlu0 %v510, 8
        %v842 = vpop.permute.xlu0 %841
        %843 = vrot.lane.b32.xlu0 %v511, 8
        %v844 = vpop.permute.xlu0 %843
        %845 = vrot.lane.b32.xlu0 %v512, 8
        %v846 = vpop.permute.xlu0 %845
        %847 = vrot.lane.b32.xlu0 %v513, 8
        %v848 = vpop.permute.xlu0 %847
        %849 = vrot.lane.b32.xlu0 %v514, 8
        %v850 = vpop.permute.xlu0 %849
        %851 = vrot.lane.b32.xlu0 %v515, 8
        %v852 = vpop.permute.xlu0 %851
        %853 = vrot.lane.b32.xlu0 %v516, 8
        %v854 = vpop.permute.xlu0 %853
        %855 = vrot.lane.b32.xlu0 %v517, 8
        %v856 = vpop.permute.xlu0 %855
        %857 = vrot.lane.b32.xlu0 %v518, 8
        %v858 = vpop.permute.xlu0 %857
        %859 = vrot.lane.b32.xlu0 %v519, 8
        %v860 = vpop.permute.xlu0 %859
        %861 = vrot.lane.b32.xlu0 %v520, 8
        %v862 = vpop.permute.xlu0 %861
        %863 = vrot.lane.b32.xlu0 %v521, 8
        %v864 = vpop.permute.xlu0 %863
        %865 = vrot.lane.b32.xlu0 %v522, 8
        %v866 = vpop.permute.xlu0 %865
        %867 = vrot.lane.b32.xlu0 %v523, 8
        %v868 = vpop.permute.xlu0 %867
        %869 = vrot.lane.b32.xlu0 %v524, 8
        %v870 = vpop.permute.xlu0 %869
        %871 = vrot.lane.b32.xlu0 %v525, 8
        %v872 = vpop.permute.xlu0 %871
        %873 = vrot.lane.b32.xlu0 %v526, 8
        %v874 = vpop.permute.xlu0 %873
        %875 = vrot.lane.b32.xlu0 %v527, 8
        %v876 = vpop.permute.xlu0 %875
        %877 = vrot.lane.b32.xlu0 %v528, 8
        %v878 = vpop.permute.xlu0 %877
        %879 = vrot.lane.b32.xlu0 %v529, 8
        %v880 = vpop.permute.xlu0 %879
        %881 = vrot.lane.b32.xlu0 %v530, 8
        %v882 = vpop.permute.xlu0 %881
        %883 = vrot.lane.b32.xlu0 %v531, 8
        %v884 = vpop.permute.xlu0 %883
        %885 = vrot.lane.b32.xlu0 %v532, 8
        %v886 = vpop.permute.xlu0 %885
        %887 = vrot.lane.b32.xlu0 %v533, 8
        %v888 = vpop.permute.xlu0 %887
        %889 = vrot.lane.b32.xlu0 %v534, 8
        %v890 = vpop.permute.xlu0 %889
        %891 = vrot.lane.b32.xlu0 %v535, 8
        %v892 = vpop.permute.xlu0 %891
        %893 = vrot.lane.b32.xlu0 %v536, 8
        %v894 = vpop.permute.xlu0 %893
        %895 = vrot.lane.b32.xlu0 %v537, 8
        %v896 = vpop.permute.xlu0 %895
        %897 = vrot.lane.b32.xlu0 %v538, 8
        %v898 = vpop.permute.xlu0 %897
        %979 = vrot.lane.b32.xlu0 %v539, 12
        %v980 = vpop.permute.xlu0 %979
        %981 = vrot.lane.b32.xlu0 %v540, 12
        %v982 = vpop.permute.xlu0 %981
        %983 = vrot.lane.b32.xlu0 %v541, 12
        %v984 = vpop.permute.xlu0 %983
        %985 = vrot.lane.b32.xlu0 %v542, 12
        %v986 = vpop.permute.xlu0 %985
        %987 = vrot.lane.b32.xlu0 %v543, 12
        %v988 = vpop.permute.xlu0 %987
        %989 = vrot.lane.b32.xlu0 %v544, 12
        %v990 = vpop.permute.xlu0 %989
        %991 = vrot.lane.b32.xlu0 %v545, 12
        %v992 = vpop.permute.xlu0 %991
        %993 = vrot.lane.b32.xlu0 %v546, 12
        %v994 = vpop.permute.xlu0 %993
        %995 = vrot.lane.b32.xlu0 %v547, 12
        %v996 = vpop.permute.xlu0 %995
        %997 = vrot.lane.b32.xlu0 %v548, 12
        %v998 = vpop.permute.xlu0 %997
        %999 = vrot.lane.b32.xlu0 %v549, 12
        %v1000 = vpop.permute.xlu0 %999
        %1001 = vrot.lane.b32.xlu0 %v550, 12
        %v1002 = vpop.permute.xlu0 %1001
        %1003 = vrot.lane.b32.xlu0 %v551, 12
        %v1004 = vpop.permute.xlu0 %1003
        %1005 = vrot.lane.b32.xlu0 %v552, 12
        %v1006 = vpop.permute.xlu0 %1005
        %1007 = vrot.lane.b32.xlu0 %v553, 12
        %v1008 = vpop.permute.xlu0 %1007
        %1009 = vrot.lane.b32.xlu0 %v554, 12
        %v1010 = vpop.permute.xlu0 %1009
        %1011 = vrot.lane.b32.xlu0 %v555, 12
        %v1012 = vpop.permute.xlu0 %1011
        %1013 = vrot.lane.b32.xlu0 %v556, 12
        %v1014 = vpop.permute.xlu0 %1013
        %1015 = vrot.lane.b32.xlu0 %v557, 12
        %v1016 = vpop.permute.xlu0 %1015
        %1017 = vrot.lane.b32.xlu0 %v558, 12
        %v1018 = vpop.permute.xlu0 %1017
        %1019 = vrot.lane.b32.xlu0 %v559, 12
        %v1020 = vpop.permute.xlu0 %1019
        %1021 = vrot.lane.b32.xlu0 %v560, 12
        %v1022 = vpop.permute.xlu0 %1021
        %1023 = vrot.lane.b32.xlu0 %v561, 12
        %v1024 = vpop.permute.xlu0 %1023
        %1025 = vrot.lane.b32.xlu0 %v562, 12
        %v1026 = vpop.permute.xlu0 %1025
        %1027 = vrot.lane.b32.xlu0 %v563, 12
        %v1028 = vpop.permute.xlu0 %1027
        %1029 = vrot.lane.b32.xlu0 %v564, 12
        %v1030 = vpop.permute.xlu0 %1029
        %1031 = vrot.lane.b32.xlu0 %v565, 12
        %v1032 = vpop.permute.xlu0 %1031
        %1033 = vrot.lane.b32.xlu0 %v566, 12
        %v1034 = vpop.permute.xlu0 %1033
        %1035 = vrot.lane.b32.xlu0 %v567, 12
        %v1036 = vpop.permute.xlu0 %1035
        %1037 = vrot.lane.b32.xlu0 %v568, 12
        %v1038 = vpop.permute.xlu0 %1037
        %1039 = vrot.lane.b32.xlu0 %v569, 12
        %v1040 = vpop.permute.xlu0 %1039
        %1041 = vrot.lane.b32.xlu0 %v570, 12
        %v1042 = vpop.permute.xlu0 %1041
        %1043 = vrot.lane.b32.xlu0 %v571, 12
        %v1044 = vpop.permute.xlu0 %1043
        %1045 = vrot.lane.b32.xlu0 %v572, 12
        %v1046 = vpop.permute.xlu0 %1045
        %1047 = vrot.lane.b32.xlu0 %v573, 12
        %v1048 = vpop.permute.xlu0 %1047
        %1049 = vrot.lane.b32.xlu0 %v574, 12
        %v1050 = vpop.permute.xlu0 %1049
        %1051 = vrot.lane.b32.xlu0 %v575, 12
        %v1052 = vpop.permute.xlu0 %1051
        %1053 = vrot.lane.b32.xlu0 %v576, 12
        %v1054 = vpop.permute.xlu0 %1053
        %1055 = vrot.lane.b32.xlu0 %v577, 12
        %v1056 = vpop.permute.xlu0 %1055
        %1057 = vrot.lane.b32.xlu0 %v578, 12
        %v1058 = vpop.permute.xlu0 %1057
        %1139 = vrot.lane.b32.xlu0 %v579, 16
        %v1140 = vpop.permute.xlu0 %1139
        %1141 = vrot.lane.b32.xlu0 %v580, 16
        %v1142 = vpop.permute.xlu0 %1141
        %1143 = vrot.lane.b32.xlu0 %v581, 16
        %v1144 = vpop.permute.xlu0 %1143
        %1145 = vrot.lane.b32.xlu0 %v582, 16
        %v1146 = vpop.permute.xlu0 %1145
        %1147 = vrot.lane.b32.xlu0 %v583, 16
        %v1148 = vpop.permute.xlu0 %1147
        %1149 = vrot.lane.b32.xlu0 %v584, 16
        %v1150 = vpop.permute.xlu0 %1149
        %1151 = vrot.lane.b32.xlu0 %v585, 16
        %v1152 = vpop.permute.xlu0 %1151
        %1153 = vrot.lane.b32.xlu0 %v586, 16
        %v1154 = vpop.permute.xlu0 %1153
        %1155 = vrot.lane.b32.xlu0 %v587, 16
        %v1156 = vpop.permute.xlu0 %1155
        %1157 = vrot.lane.b32.xlu0 %v588, 16
        %v1158 = vpop.permute.xlu0 %1157
        %1159 = vrot.lane.b32.xlu0 %v589, 16
        %v1160 = vpop.permute.xlu0 %1159
        %1161 = vrot.lane.b32.xlu0 %v590, 16
        %v1162 = vpop.permute.xlu0 %1161
        %1163 = vrot.lane.b32.xlu0 %v591, 16
        %v1164 = vpop.permute.xlu0 %1163
        %1165 = vrot.lane.b32.xlu0 %v592, 16
        %v1166 = vpop.permute.xlu0 %1165
        %1167 = vrot.lane.b32.xlu0 %v593, 16
        %v1168 = vpop.permute.xlu0 %1167
        %1169 = vrot.lane.b32.xlu0 %v594, 16
        %v1170 = vpop.permute.xlu0 %1169
        %1171 = vrot.lane.b32.xlu0 %v595, 16
        %v1172 = vpop.permute.xlu0 %1171
        %1173 = vrot.lane.b32.xlu0 %v596, 16
        %v1174 = vpop.permute.xlu0 %1173
        %1175 = vrot.lane.b32.xlu0 %v597, 16
        %v1176 = vpop.permute.xlu0 %1175
        %1177 = vrot.lane.b32.xlu0 %v598, 16
        %v1178 = vpop.permute.xlu0 %1177
        %1179 = vrot.lane.b32.xlu0 %v599, 16
        %v1180 = vpop.permute.xlu0 %1179
        %1181 = vrot.lane.b32.xlu0 %v600, 16
        %v1182 = vpop.permute.xlu0 %1181
        %1183 = vrot.lane.b32.xlu0 %v601, 16
        %v1184 = vpop.permute.xlu0 %1183
        %1185 = vrot.lane.b32.xlu0 %v602, 16
        %v1186 = vpop.permute.xlu0 %1185
        %1187 = vrot.lane.b32.xlu0 %v603, 16
        %v1188 = vpop.permute.xlu0 %1187
        %1189 = vrot.lane.b32.xlu0 %v604, 16
        %v1190 = vpop.permute.xlu0 %1189
        %1191 = vrot.lane.b32.xlu0 %v605, 16
        %v1192 = vpop.permute.xlu0 %1191
        %1193 = vrot.lane.b32.xlu0 %v606, 16
        %v1194 = vpop.permute.xlu0 %1193
        %1195 = vrot.lane.b32.xlu0 %v607, 16
        %v1196 = vpop.permute.xlu0 %1195
        %1197 = vrot.lane.b32.xlu0 %v608, 16
        %v1198 = vpop.permute.xlu0 %1197
        %1199 = vrot.lane.b32.xlu0 %v609, 16
        %v1200 = vpop.permute.xlu0 %1199
        %1201 = vrot.lane.b32.xlu0 %v610, 16
        %v1202 = vpop.permute.xlu0 %1201
        %1203 = vrot.lane.b32.xlu0 %v611, 16
        %v1204 = vpop.permute.xlu0 %1203
        %1205 = vrot.lane.b32.xlu0 %v612, 16
        %v1206 = vpop.permute.xlu0 %1205
        %1207 = vrot.lane.b32.xlu0 %v613, 16
        %v1208 = vpop.permute.xlu0 %1207
        %1209 = vrot.lane.b32.xlu0 %v614, 16
        %v1210 = vpop.permute.xlu0 %1209
        %1211 = vrot.lane.b32.xlu0 %v615, 16
        %v1212 = vpop.permute.xlu0 %1211
        %1213 = vrot.lane.b32.xlu0 %v616, 16
        %v1214 = vpop.permute.xlu0 %1213
        %1215 = vrot.lane.b32.xlu0 %v617, 16
        %v1216 = vpop.permute.xlu0 %1215
        %1217 = vrot.lane.b32.xlu0 %v618, 16
        %v1218 = vpop.permute.xlu0 %1217
        %v1259 = vsel %vm292, %v419, %v660
        %v1260 = vsel %vm292, %v420, %v662
        %v1261 = vsel %vm292, %v421, %v664
        %v1262 = vsel %vm292, %v422, %v666
        %v1263 = vsel %vm292, %v423, %v668
        %v1264 = vsel %vm292, %v424, %v670
        %v1265 = vsel %vm292, %v425, %v672
        %v1266 = vsel %vm292, %v426, %v674
        %v1267 = vsel %vm292, %v427, %v676
        %v1268 = vsel %vm292, %v428, %v678
        %v1269 = vsel %vm292, %v429, %v680
        %v1270 = vsel %vm292, %v430, %v682
        %v1271 = vsel %vm292, %v431, %v684
        %v1272 = vsel %vm292, %v432, %v686
        %v1273 = vsel %vm292, %v433, %v688
        %v1274 = vsel %vm292, %v434, %v690
        %v1275 = vsel %vm292, %v435, %v692
        %v1276 = vsel %vm292, %v436, %v694
        %v1277 = vsel %vm292, %v437, %v696
        %v1278 = vsel %vm292, %v438, %v698
        %v1279 = vsel %vm292, %v439, %v700
        %v1280 = vsel %vm292, %v440, %v702
        %v1281 = vsel %vm292, %v441, %v704
        %v1282 = vsel %vm292, %v442, %v706
        %v1283 = vsel %vm292, %v443, %v708
        %v1284 = vsel %vm292, %v444, %v710
        %v1285 = vsel %vm292, %v445, %v712
        %v1286 = vsel %vm292, %v446, %v714
        %v1287 = vsel %vm292, %v447, %v716
        %v1288 = vsel %vm292, %v448, %v718
        %v1289 = vsel %vm292, %v449, %v720
        %v1290 = vsel %vm292, %v450, %v722
        %v1291 = vsel %vm292, %v451, %v724
        %v1292 = vsel %vm292, %v452, %v726
        %v1293 = vsel %vm292, %v453, %v728
        %v1294 = vsel %vm292, %v454, %v730
        %v1295 = vsel %vm292, %v455, %v732
        %v1296 = vsel %vm292, %v456, %v734
        %v1297 = vsel %vm292, %v457, %v736
        %v1298 = vsel %vm292, %v458, %v738
        %vm1299 = vcmask 64512
        %v1300 = vsel %vm1299, %v1259, %v820
        %v1301 = vsel %vm1299, %v1260, %v822
        %v1302 = vsel %vm1299, %v1261, %v824
        %v1303 = vsel %vm1299, %v1262, %v826
        %v1304 = vsel %vm1299, %v1263, %v828
        %v1305 = vsel %vm1299, %v1264, %v830
        %v1306 = vsel %vm1299, %v1265, %v832
        %v1307 = vsel %vm1299, %v1266, %v834
        %v1308 = vsel %vm1299, %v1267, %v836
        %v1309 = vsel %vm1299, %v1268, %v838
        %v1310 = vsel %vm1299, %v1269, %v840
        %v1311 = vsel %vm1299, %v1270, %v842
        %v1312 = vsel %vm1299, %v1271, %v844
        %v1313 = vsel %vm1299, %v1272, %v846
        %v1314 = vsel %vm1299, %v1273, %v848
        %v1315 = vsel %vm1299, %v1274, %v850
        %v1316 = vsel %vm1299, %v1275, %v852
        %v1317 = vsel %vm1299, %v1276, %v854
        %v1318 = vsel %vm1299, %v1277, %v856
        %v1319 = vsel %vm1299, %v1278, %v858
        %v1320 = vsel %vm1299, %v1279, %v860
        %v1321 = vsel %vm1299, %v1280, %v862
        %v1322 = vsel %vm1299, %v1281, %v864
        %v1323 = vsel %vm1299, %v1282, %v866
        %v1324 = vsel %vm1299, %v1283, %v868
        %v1325 = vsel %vm1299, %v1284, %v870
        %v1326 = vsel %vm1299, %v1285, %v872
        %v1327 = vsel %vm1299, %v1286, %v874
        %v1328 = vsel %vm1299, %v1287, %v876
        %v1329 = vsel %vm1299, %v1288, %v878
        %v1330 = vsel %vm1299, %v1289, %v880
        %v1331 = vsel %vm1299, %v1290, %v882
        %v1332 = vsel %vm1299, %v1291, %v884
        %v1333 = vsel %vm1299, %v1292, %v886
        %v1334 = vsel %vm1299, %v1293, %v888
        %v1335 = vsel %vm1299, %v1294, %v890
        %v1336 = vsel %vm1299, %v1295, %v892
        %v1337 = vsel %vm1299, %v1296, %v894
        %v1338 = vsel %vm1299, %v1297, %v896
        %v1339 = vsel %vm1299, %v1298, %v898
        %vm1340 = vcmask 97280
        %v1341 = vsel %vm1340, %v1300, %v980
        %v1342 = vsel %vm1340, %v1301, %v982
        %v1343 = vsel %vm1340, %v1302, %v984
        %v1344 = vsel %vm1340, %v1303, %v986
        %v1345 = vsel %vm1340, %v1304, %v988
        %v1346 = vsel %vm1340, %v1305, %v990
        %v1347 = vsel %vm1340, %v1306, %v992
        %v1348 = vsel %vm1340, %v1307, %v994
        %v1349 = vsel %vm1340, %v1308, %v996
        %v1350 = vsel %vm1340, %v1309, %v998
        %v1351 = vsel %vm1340, %v1310, %v1000
        %v1352 = vsel %vm1340, %v1311, %v1002
        %v1353 = vsel %vm1340, %v1312, %v1004
        %v1354 = vsel %vm1340, %v1313, %v1006
        %v1355 = vsel %vm1340, %v1314, %v1008
        %v1356 = vsel %vm1340, %v1315, %v1010
        %v1357 = vsel %vm1340, %v1316, %v1012
        %v1358 = vsel %vm1340, %v1317, %v1014
        %v1359 = vsel %vm1340, %v1318, %v1016
        %v1360 = vsel %vm1340, %v1319, %v1018
        %v1361 = vsel %vm1340, %v1320, %v1020
        %v1362 = vsel %vm1340, %v1321, %v1022
        %v1363 = vsel %vm1340, %v1322, %v1024
        %v1364 = vsel %vm1340, %v1323, %v1026
        %v1365 = vsel %vm1340, %v1324, %v1028
        %v1366 = vsel %vm1340, %v1325, %v1030
        %v1367 = vsel %vm1340, %v1326, %v1032
        %v1368 = vsel %vm1340, %v1327, %v1034
        %v1369 = vsel %vm1340, %v1328, %v1036
        %v1370 = vsel %vm1340, %v1329, %v1038
        %v1371 = vsel %vm1340, %v1330, %v1040
        %v1372 = vsel %vm1340, %v1331, %v1042
        %v1373 = vsel %vm1340, %v1332, %v1044
        %v1374 = vsel %vm1340, %v1333, %v1046
        %v1375 = vsel %vm1340, %v1334, %v1048
        %v1376 = vsel %vm1340, %v1335, %v1050
        %v1377 = vsel %vm1340, %v1336, %v1052
        %v1378 = vsel %vm1340, %v1337, %v1054
        %v1379 = vsel %vm1340, %v1338, %v1056
        %v1380 = vsel %vm1340, %v1339, %v1058
        %vm1381 = vcmask 130048
        %v1382 = vsel %vm1381, %v1341, %v1140
        %v1383 = vsel %vm1381, %v1342, %v1142
        %v1384 = vsel %vm1381, %v1343, %v1144
        %v1385 = vsel %vm1381, %v1344, %v1146
        %v1386 = vsel %vm1381, %v1345, %v1148
        %v1387 = vsel %vm1381, %v1346, %v1150
        %v1388 = vsel %vm1381, %v1347, %v1152
        %v1389 = vsel %vm1381, %v1348, %v1154
        %v1390 = vsel %vm1381, %v1349, %v1156
        %v1391 = vsel %vm1381, %v1350, %v1158
        %v1392 = vsel %vm1381, %v1351, %v1160
        %v1393 = vsel %vm1381, %v1352, %v1162
        %v1394 = vsel %vm1381, %v1353, %v1164
        %v1395 = vsel %vm1381, %v1354, %v1166
        %v1396 = vsel %vm1381, %v1355, %v1168
        %v1397 = vsel %vm1381, %v1356, %v1170
        %v1398 = vsel %vm1381, %v1357, %v1172
        %v1399 = vsel %vm1381, %v1358, %v1174
        %v1400 = vsel %vm1381, %v1359, %v1176
        %v1401 = vsel %vm1381, %v1360, %v1178
        %v1402 = vsel %vm1381, %v1361, %v1180
        %v1403 = vsel %vm1381, %v1362, %v1182
        %v1404 = vsel %vm1381, %v1363, %v1184
        %v1405 = vsel %vm1381, %v1364, %v1186
        %v1406 = vsel %vm1381, %v1365, %v1188
        %v1407 = vsel %vm1381, %v1366, %v1190
        %v1408 = vsel %vm1381, %v1367, %v1192
        %v1409 = vsel %vm1381, %v1368, %v1194
        %v1410 = vsel %vm1381, %v1369, %v1196
        %v1411 = vsel %vm1381, %v1370, %v1198
        %v1412 = vsel %vm1381, %v1371, %v1200
        %v1413 = vsel %vm1381, %v1372, %v1202
        %v1414 = vsel %vm1381, %v1373, %v1204
        %v1415 = vsel %vm1381, %v1374, %v1206
        %v1416 = vsel %vm1381, %v1375, %v1208
        %v1417 = vsel %vm1381, %v1376, %v1210
        %v1418 = vsel %vm1381, %v1377, %v1212
        %v1419 = vsel %vm1381, %v1378, %v1214
        %v1420 = vsel %vm1381, %v1379, %v1216
        %v1421 = vsel %vm1381, %v1380, %v1218
        %vm1422 = vcmask 162816
        %1423 = vst.msk [vmem:[#allocation5] sm:$0xff] %vm1422, %v1382
        %1424 = vst.msk [vmem:[#allocation5 + $0x8] sm:$0xff] %vm1422, %v1383
        %1425 = vst.msk [vmem:[#allocation5 + $0x10] sm:$0xff] %vm1422, %v1384
        %1426 = vst.msk [vmem:[#allocation5 + $0x18] sm:$0xff] %vm1422, %v1385
        %1427 = vst.msk [vmem:[#allocation5 + $0x20] sm:$0xff] %vm1422, %v1386
        %1428 = vst.msk [vmem:[#allocation5 + $0x28] sm:$0xff] %vm1422, %v1387
        %1429 = vst.msk [vmem:[#allocation5 + $0x30] sm:$0xff] %vm1422, %v1388
        %1430 = vst.msk [vmem:[#allocation5 + $0x38] sm:$0xff] %vm1422, %v1389
        %1431 = vst.msk [vmem:[#allocation5 + $0x40] sm:$0xff] %vm1422, %v1390
        %1432 = vst.msk [vmem:[#allocation5 + $0x48] sm:$0xff] %vm1422, %v1391
        %1433 = vst.msk [vmem:[#allocation5 + $0x50] sm:$0xff] %vm1422, %v1392
        %1434 = vst.msk [vmem:[#allocation5 + $0x58] sm:$0xff] %vm1422, %v1393
        %1435 = vst.msk [vmem:[#allocation5 + $0x60] sm:$0xff] %vm1422, %v1394
        %1436 = vst.msk [vmem:[#allocation5 + $0x68] sm:$0xff] %vm1422, %v1395
        %1437 = vst.msk [vmem:[#allocation5 + $0x70] sm:$0xff] %vm1422, %v1396
        %1438 = vst.msk [vmem:[#allocation5 + $0x78] sm:$0xff] %vm1422, %v1397
        %1439 = vst.msk [vmem:[#allocation5 + $0x80] sm:$0xff] %vm1422, %v1398
        %1440 = vst.msk [vmem:[#allocation5 + $0x88] sm:$0xff] %vm1422, %v1399
        %1441 = vst.msk [vmem:[#allocation5 + $0x90] sm:$0xff] %vm1422, %v1400
        %1442 = vst.msk [vmem:[#allocation5 + $0x98] sm:$0xff] %vm1422, %v1401
        %1443 = vst.msk [vmem:[#allocation5 + $0xa0] sm:$0xff] %vm1422, %v1402
        %1444 = vst.msk [vmem:[#allocation5 + $0xa8] sm:$0xff] %vm1422, %v1403
        %1445 = vst.msk [vmem:[#allocation5 + $0xb0] sm:$0xff] %vm1422, %v1404
        %1446 = vst.msk [vmem:[#allocation5 + $0xb8] sm:$0xff] %vm1422, %v1405
        %1447 = vst.msk [vmem:[#allocation5 + $0xc0] sm:$0xff] %vm1422, %v1406
        %1448 = vst.msk [vmem:[#allocation5 + $0xc8] sm:$0xff] %vm1422, %v1407
        %1449 = vst.msk [vmem:[#allocation5 + $0xd0] sm:$0xff] %vm1422, %v1408
        %1450 = vst.msk [vmem:[#allocation5 + $0xd8] sm:$0xff] %vm1422, %v1409
        %1451 = vst.msk [vmem:[#allocation5 + $0xe0] sm:$0xff] %vm1422, %v1410
        %1452 = vst.msk [vmem:[#allocation5 + $0xe8] sm:$0xff] %vm1422, %v1411
        %1453 = vst.msk [vmem:[#allocation5 + $0xf0] sm:$0xff] %vm1422, %v1412
        %1454 = vst.msk [vmem:[#allocation5 + $0xf8] sm:$0xff] %vm1422, %v1413
        %1455 = vst.msk [vmem:[#allocation5 + $0x100] sm:$0xff] %vm1422, %v1414
        %1456 = vst.msk [vmem:[#allocation5 + $0x108] sm:$0xff] %vm1422, %v1415
        %1457 = vst.msk [vmem:[#allocation5 + $0x110] sm:$0xff] %vm1422, %v1416
        %1458 = vst.msk [vmem:[#allocation5 + $0x118] sm:$0xff] %vm1422, %v1417
        %1459 = vst.msk [vmem:[#allocation5 + $0x120] sm:$0xff] %vm1422, %v1418
        %1460 = vst.msk [vmem:[#allocation5 + $0x128] sm:$0xff] %vm1422, %v1419
        %1461 = vst.msk [vmem:[#allocation5 + $0x130] sm:$0xff] %vm1422, %v1420
        %1462 = vst.msk [vmem:[#allocation5 + $0x138] sm:$0xff] %vm1422, %v1421
        %v1463 = vld [vmem:[#allocation5] sm:$0xff]
        %v1464 = vld [vmem:[#allocation5 + $0x8] sm:$0xff]
        %v1465 = vld [vmem:[#allocation5 + $0x10] sm:$0xff]
        %v1466 = vld [vmem:[#allocation5 + $0x18] sm:$0xff]
        %v1467 = vld [vmem:[#allocation5 + $0x20] sm:$0xff]
        %v1468 = vld [vmem:[#allocation5 + $0x28] sm:$0xff]
        %v1469 = vld [vmem:[#allocation5 + $0x30] sm:$0xff]
        %v1470 = vld [vmem:[#allocation5 + $0x38] sm:$0xff]
        %v1471 = vld [vmem:[#allocation5 + $0x40] sm:$0xff]
        %v1472 = vld [vmem:[#allocation5 + $0x48] sm:$0xff]
        %v1473 = vld [vmem:[#allocation5 + $0x50] sm:$0xff]
        %v1474 = vld [vmem:[#allocation5 + $0x58] sm:$0xff]
        %v1475 = vld [vmem:[#allocation5 + $0x60] sm:$0xff]
        %v1476 = vld [vmem:[#allocation5 + $0x68] sm:$0xff]
        %v1477 = vld [vmem:[#allocation5 + $0x70] sm:$0xff]
        %v1478 = vld [vmem:[#allocation5 + $0x78] sm:$0xff]
        %v1479 = vld [vmem:[#allocation5 + $0x80] sm:$0xff]
        %v1480 = vld [vmem:[#allocation5 + $0x88] sm:$0xff]
        %v1481 = vld [vmem:[#allocation5 + $0x90] sm:$0xff]
        %v1482 = vld [vmem:[#allocation5 + $0x98] sm:$0xff]
        %v1483 = vld [vmem:[#allocation5 + $0xa0] sm:$0xff]
        %v1484 = vld [vmem:[#allocation5 + $0xa8] sm:$0xff]
        %v1485 = vld [vmem:[#allocation5 + $0xb0] sm:$0xff]
        %v1486 = vld [vmem:[#allocation5 + $0xb8] sm:$0xff]
        %v1487 = vld [vmem:[#allocation5 + $0xc0] sm:$0xff]
        %v1488 = vld [vmem:[#allocation5 + $0xc8] sm:$0xff]
        %v1489 = vld [vmem:[#allocation5 + $0xd0] sm:$0xff]
        %v1490 = vld [vmem:[#allocation5 + $0xd8] sm:$0xff]
        %v1491 = vld [vmem:[#allocation5 + $0xe0] sm:$0xff]
        %v1492 = vld [vmem:[#allocation5 + $0xe8] sm:$0xff]
        %v1493 = vld [vmem:[#allocation5 + $0xf0] sm:$0xff]
        %v1494 = vld [vmem:[#allocation5 + $0xf8] sm:$0xff]
        %v1495 = vld [vmem:[%s1] sm:$0xff]
        %v1496 = vld [vmem:[%s1 + $0x8] sm:$0xff]
        %v1497 = vld [vmem:[%s1 + $0x10] sm:$0xf]
        %s1498 = scalar_lea.vmem [#allocation5], 16
        %v1499 = vld [vmem:[%s1498] sm:$0xff]
        %v1500 = vld [vmem:[%s1498 + $0x8] sm:$0xff]
        %v1501 = vld [vmem:[%s1498 + $0x10] sm:$0xff]
        %v1502 = vld [vmem:[%s1498 + $0x18] sm:$0xff]
        %v1503 = vld [vmem:[%s1498 + $0x20] sm:$0xff]
        %v1504 = vld [vmem:[%s1498 + $0x28] sm:$0xff]
        %v1505 = vld [vmem:[%s1498 + $0x30] sm:$0xff]
        %v1506 = vld [vmem:[%s1498 + $0x38] sm:$0xff]
        %v1507 = vld [vmem:[%s1498 + $0x40] sm:$0xff]
        %v1508 = vld [vmem:[%s1498 + $0x48] sm:$0xff]
        %v1509 = vld [vmem:[%s1498 + $0x50] sm:$0xff]
        %v1510 = vld [vmem:[%s1498 + $0x58] sm:$0xff]
        %v1511 = vld [vmem:[%s1498 + $0x60] sm:$0xff]
        %v1512 = vld [vmem:[%s1498 + $0x68] sm:$0xff]
        %v1513 = vld [vmem:[%s1498 + $0x70] sm:$0xff]
        %v1514 = vld [vmem:[%s1498 + $0x78] sm:$0xff]
        %v1515 = vld [vmem:[%s1498 + $0x80] sm:$0xff]
        %v1516 = vld [vmem:[%s1498 + $0x88] sm:$0xff]
        %v1517 = vld [vmem:[%s1498 + $0x90] sm:$0xff]
        %v1518 = vld [vmem:[%s1498 + $0x98] sm:$0xff]
        %v1519 = vld [vmem:[%s1498 + $0xa0] sm:$0xff]
        %v1520 = vld [vmem:[%s1498 + $0xa8] sm:$0xff]
        %v1521 = vld [vmem:[%s1498 + $0xb0] sm:$0xff]
        %v1522 = vld [vmem:[%s1498 + $0xb8] sm:$0xff]
        %v1523 = vld [vmem:[%s1498 + $0xc0] sm:$0xff]
        %v1524 = vld [vmem:[%s1498 + $0xc8] sm:$0xff]
        %v1525 = vld [vmem:[%s1498 + $0xd0] sm:$0xff]
        %v1526 = vld [vmem:[%s1498 + $0xd8] sm:$0xff]
        %v1527 = vld [vmem:[%s1498 + $0xe0] sm:$0xff]
        %v1528 = vld [vmem:[%s1498 + $0xe8] sm:$0xff]
        %v1529 = vld [vmem:[%s1498 + $0xf0] sm:$0xff]
        %v1530 = vld [vmem:[%s1498 + $0xf8] sm:$0xff]
        %s1531 = scalar_lea.vmem %s1, 24
        %v1532 = vld [vmem:[%s1531] sm:$0xff]
        %v1533 = vld [vmem:[%s1531 + $0x8] sm:$0xff]
        %v1534 = vld [vmem:[%s1531 + $0x10] sm:$0xf]
        %v1536 = vsel %vm1422, %v1499, 0
        %v1539 = vsel %vm1422, %v1500, 0
        %v1542 = vsel %vm1422, %v1501, 0
        %v1545 = vsel %vm1422, %v1502, 0
        %v1548 = vsel %vm1422, %v1503, 0
        %v1551 = vsel %vm1422, %v1504, 0
        %v1554 = vsel %vm1422, %v1505, 0
        %v1557 = vsel %vm1422, %v1506, 0
        %v1560 = vsel %vm1422, %v1507, 0
        %v1563 = vsel %vm1422, %v1508, 0
        %v1566 = vsel %vm1422, %v1509, 0
        %v1569 = vsel %vm1422, %v1510, 0
        %v1572 = vsel %vm1422, %v1511, 0
        %v1575 = vsel %vm1422, %v1512, 0
        %v1578 = vsel %vm1422, %v1513, 0
        %v1581 = vsel %vm1422, %v1514, 0
        %v1584 = vsel %vm1422, %v1515, 0
        %v1587 = vsel %vm1422, %v1516, 0
        %v1590 = vsel %vm1422, %v1517, 0
        %v1593 = vsel %vm1422, %v1518, 0
        %v1596 = vsel %vm1422, %v1519, 0
        %v1599 = vsel %vm1422, %v1520, 0
        %v1602 = vsel %vm1422, %v1521, 0
        %v1605 = vsel %vm1422, %v1522, 0
        %v1608 = vsel %vm1422, %v1523, 0
        %v1611 = vsel %vm1422, %v1524, 0
        %v1614 = vsel %vm1422, %v1525, 0
        %v1617 = vsel %vm1422, %v1526, 0
        %v1620 = vsel %vm1422, %v1527, 0
        %v1623 = vsel %vm1422, %v1528, 0
        %v1626 = vsel %vm1422, %v1529, 0
        %v1629 = vsel %vm1422, %v1530, 0
        %vm1631 = vcmask 1043456
        %v1633 = vsel %vm1631, %v1534, 0
        %1635 = vmatprep.subr.mxu0 0.0
        %1636 = vmatpush1.msra.mxu0 %v1532
        %1637 = vmatprep.subr.mxu0 0.0
        %1638 = vmatpush1.msra.mxu0 %v1533
        %1639 = vmatprep.subr.mxu0 0.0
        %1640 = vmatpush1.msra.mxu0 %v1633
        %1641 = vmatprep.subr.mxu0 0.0
        %1642 = vmatpush1.msra.mxu0 0.0
        %1643 = vmatprep.subr.mxu0 0.0
        %1644 = vmatpush1.msra.mxu0 0.0
        %1645 = vmatprep.subr.mxu0 0.0
        %1646 = vmatpush1.msra.mxu0 0.0
        %1647 = vmatprep.subr.mxu0 0.0
        %1648 = vmatpush1.msra.mxu0 0.0
        %1649 = vmatprep.subr.mxu0 0.0
        %1650 = vmatpush1.msra.mxu0 0.0
        %1651 = vmatprep.subr.mxu0 0.0
        %1652 = vmatpush1.msra.mxu0 0.0
        %1653 = vmatprep.subr.mxu0 0.0
        %1654 = vmatpush1.msra.mxu0 0.0
        %1655 = vmatprep.subr.mxu0 0.0
        %1656 = vmatpush1.msra.mxu0 0.0
        %1657 = vmatprep.subr.mxu0 0.0
        %1658 = vmatpush1.msra.mxu0 0.0
        %1659 = vmatprep.subr.mxu0 0.0
        %1660 = vmatpush1.msra.mxu0 0.0
        %1661 = vmatprep.subr.mxu0 0.0
        %1662 = vmatpush1.msra.mxu0 0.0
        %1663 = vmatprep.subr.mxu0 0.0
        %1664 = vmatpush1.msra.mxu0 0.0
        %1665 = vmatprep.subr.mxu0 0.0
        %1666 = vmatpush1.msra.mxu0 0.0
        %1667 = vmatprep.subr.mxu0 0.0
        %1668 = vmatpush1.msra.mxu0 0.0
        %1669 = vmatprep.subr.mxu0 0.0
        %1670 = vmatpush1.msra.mxu0 0.0
        %1671 = vmatprep.subr.mxu0 0.0
        %1672 = vmatpush1.msra.mxu0 0.0
        %1673 = vmatprep.subr.mxu0 0.0
        %1674 = vmatpush1.msra.mxu0 0.0
        %1675 = vmatprep.subr.mxu0 0.0
        %1676 = vmatpush1.msra.mxu0 0.0
        %1677 = vmatprep.subr.mxu0 0.0
        %1678 = vmatpush1.msra.mxu0 0.0
        %1679 = vmatprep.subr.mxu0 0.0
        %1680 = vmatpush1.msra.mxu0 0.0
        %1681 = vmatprep.subr.mxu0 0.0
        %1682 = vmatpush1.msra.mxu0 0.0
        %1683 = vmatprep.subr.mxu0 0.0
        %1684 = vmatpush1.msra.mxu0 0.0
        %1685 = vmatprep.subr.mxu0 0.0
        %1686 = vmatpush1.msra.mxu0 0.0
        %1687 = vmatprep.subr.mxu0 0.0
        %1688 = vmatpush1.msra.mxu0 0.0
        %1689 = vmatprep.subr.mxu0 0.0
        %1690 = vmatpush1.msra.mxu0 0.0
        %1691 = vmatprep.subr.mxu0 0.0
        %1692 = vmatpush1.msra.mxu0 0.0
        %1693 = vmatprep.subr.mxu0 0.0
        %1694 = vmatpush1.msra.mxu0 0.0
        %1695 = vmatprep.subr.mxu0 0.0
        %1696 = vmatpush1.msra.mxu0 0.0
        %1697 = vmatprep.subr.mxu0 0.0
        %1698 = vmatpush1.msra.mxu0 0.0
        %1699 = vmatprep.mubr.f32.mxu0 0.0
        %1700 = vmatmul.mubr.f32.gmra.mrb[0].mxu0 %v1536
        %v1701 = vpop.f32.mrb[0].mxu0
        %v1702 = vadd.f32 0.0, %v1701
        %v1703 = vpop.f32.mrb[0].mxu0
        %1704 = vmatprep.mubr.f32.mxu0 0.0
        %1705 = vmatmul.mubr.f32.gmra.mrb[0].mxu0 %v1539
        %v1706 = vpop.f32.mrb[0].mxu0
        %v1707 = vadd.f32 0.0, %v1706
        %v1708 = vpop.f32.mrb[0].mxu0
        %1709 = vmatprep.mubr.f32.mxu0 0.0
        %1710 = vmatmul.mubr.f32.gmra.mrb[0].mxu0 %v1542
        %v1711 = vpop.f32.mrb[0].mxu0
        %v1712 = vadd.f32 0.0, %v1711
        %v1713 = vpop.f32.mrb[0].mxu0
        %1714 = vmatprep.mubr.f32.mxu0 0.0
        %1715 = vmatmul.mubr.f32.gmra.mrb[0].mxu0 %v1545
        %v1716 = vpop.f32.mrb[0].mxu0
        %v1717 = vadd.f32 0.0, %v1716
        %v1718 = vpop.f32.mrb[0].mxu0
        %1719 = vmatprep.mubr.f32.mxu0 0.0
        %1720 = vmatmul.mubr.f32.gmra.mrb[0].mxu0 %v1548
        %v1721 = vpop.f32.mrb[0].mxu0
        %v1722 = vadd.f32 0.0, %v1721
        %v1723 = vpop.f32.mrb[0].mxu0
        %1724 = vmatprep.mubr.f32.mxu0 0.0
        %1725 = vmatmul.mubr.f32.gmra.mrb[0].mxu0 %v1551
        %v1726 = vpop.f32.mrb[0].mxu0
        %v1727 = vadd.f32 0.0, %v1726
        %v1728 = vpop.f32.mrb[0].mxu0
        %1729 = vmatprep.mubr.f32.mxu0 0.0
        %1730 = vmatmul.mubr.f32.gmra.mrb[0].mxu0 %v1554
        %v1731 = vpop.f32.mrb[0].mxu0
        %v1732 = vadd.f32 0.0, %v1731
        %v1733 = vpop.f32.mrb[0].mxu0
        %1734 = vmatprep.mubr.f32.mxu0 0.0
        %1735 = vmatmul.mubr.f32.gmra.mrb[0].mxu0 %v1557
        %v1736 = vpop.f32.mrb[0].mxu0
        %v1737 = vadd.f32 0.0, %v1736
        %v1738 = vpop.f32.mrb[0].mxu0
        %1739 = vmatprep.mubr.f32.mxu0 0.0
        %1740 = vmatmul.mubr.f32.gmra.mrb[0].mxu0 %v1560
        %v1741 = vpop.f32.mrb[0].mxu0
        %v1742 = vadd.f32 0.0, %v1741
        %v1743 = vpop.f32.mrb[0].mxu0
        %1744 = vmatprep.mubr.f32.mxu0 0.0
        %1745 = vmatmul.mubr.f32.gmra.mrb[0].mxu0 %v1563
        %v1746 = vpop.f32.mrb[0].mxu0
        %v1747 = vadd.f32 0.0, %v1746
        %v1748 = vpop.f32.mrb[0].mxu0
        %1749 = vmatprep.mubr.f32.mxu0 0.0
        %1750 = vmatmul.mubr.f32.gmra.mrb[0].mxu0 %v1566
        %v1751 = vpop.f32.mrb[0].mxu0
        %v1752 = vadd.f32 0.0, %v1751
        %v1753 = vpop.f32.mrb[0].mxu0
        %1754 = vmatprep.mubr.f32.mxu0 0.0
        %1755 = vmatmul.mubr.f32.gmra.mrb[0].mxu0 %v1569
        %v1756 = vpop.f32.mrb[0].mxu0
        %v1757 = vadd.f32 0.0, %v1756
        %v1758 = vpop.f32.mrb[0].mxu0
        %1759 = vmatprep.mubr.f32.mxu0 0.0
        %1760 = vmatmul.mubr.f32.gmra.mrb[0].mxu0 %v1572
        %v1761 = vpop.f32.mrb[0].mxu0
        %v1762 = vadd.f32 0.0, %v1761
        %v1763 = vpop.f32.mrb[0].mxu0
        %1764 = vmatprep.mubr.f32.mxu0 0.0
        %1765 = vmatmul.mubr.f32.gmra.mrb[0].mxu0 %v1575
        %v1766 = vpop.f32.mrb[0].mxu0
        %v1767 = vadd.f32 0.0, %v1766
        %v1768 = vpop.f32.mrb[0].mxu0
        %1769 = vmatprep.mubr.f32.mxu0 0.0
        %1770 = vmatmul.mubr.f32.gmra.mrb[0].mxu0 %v1578
        %v1771 = vpop.f32.mrb[0].mxu0
        %v1772 = vadd.f32 0.0, %v1771
        %v1773 = vpop.f32.mrb[0].mxu0
        %1774 = vmatprep.mubr.f32.mxu0 0.0
        %1775 = vmatmul.mubr.f32.gmra.mrb[0].mxu0 %v1581
        %v1776 = vpop.f32.mrb[0].mxu0
        %v1777 = vadd.f32 0.0, %v1776
        %v1778 = vpop.f32.mrb[0].mxu0
        %1779 = vmatprep.mubr.f32.mxu0 0.0
        %1780 = vmatmul.mubr.f32.gmra.mrb[0].mxu0 %v1584
        %v1781 = vpop.f32.mrb[0].mxu0
        %v1782 = vadd.f32 0.0, %v1781
        %v1783 = vpop.f32.mrb[0].mxu0
        %1784 = vmatprep.mubr.f32.mxu0 0.0
        %1785 = vmatmul.mubr.f32.gmra.mrb[0].mxu0 %v1587
        %v1786 = vpop.f32.mrb[0].mxu0
        %v1787 = vadd.f32 0.0, %v1786
        %v1788 = vpop.f32.mrb[0].mxu0
        %1789 = vmatprep.mubr.f32.mxu0 0.0
        %1790 = vmatmul.mubr.f32.gmra.mrb[0].mxu0 %v1590
        %v1791 = vpop.f32.mrb[0].mxu0
        %v1792 = vadd.f32 0.0, %v1791
        %v1793 = vpop.f32.mrb[0].mxu0
        %1794 = vmatprep.mubr.f32.mxu0 0.0
        %1795 = vmatmul.mubr.f32.gmra.mrb[0].mxu0 %v1593
        %v1796 = vpop.f32.mrb[0].mxu0
        %v1797 = vadd.f32 0.0, %v1796
        %v1798 = vpop.f32.mrb[0].mxu0
        %1799 = vmatprep.mubr.f32.mxu0 0.0
        %1800 = vmatmul.mubr.f32.gmra.mrb[0].mxu0 %v1596
        %v1801 = vpop.f32.mrb[0].mxu0
        %v1802 = vadd.f32 0.0, %v1801
        %v1803 = vpop.f32.mrb[0].mxu0
        %1804 = vmatprep.mubr.f32.mxu0 0.0
        %1805 = vmatmul.mubr.f32.gmra.mrb[0].mxu0 %v1599
        %v1806 = vpop.f32.mrb[0].mxu0
        %v1807 = vadd.f32 0.0, %v1806
        %v1808 = vpop.f32.mrb[0].mxu0
        %1809 = vmatprep.mubr.f32.mxu0 0.0
        %1810 = vmatmul.mubr.f32.gmra.mrb[0].mxu0 %v1602
        %v1811 = vpop.f32.mrb[0].mxu0
        %v1812 = vadd.f32 0.0, %v1811
        %v1813 = vpop.f32.mrb[0].mxu0
        %1814 = vmatprep.mubr.f32.mxu0 0.0
        %1815 = vmatmul.mubr.f32.gmra.mrb[0].mxu0 %v1605
        %v1816 = vpop.f32.mrb[0].mxu0
        %v1817 = vadd.f32 0.0, %v1816
        %v1818 = vpop.f32.mrb[0].mxu0
        %1819 = vmatprep.mubr.f32.mxu0 0.0
        %1820 = vmatmul.mubr.f32.gmra.mrb[0].mxu0 %v1608
        %v1821 = vpop.f32.mrb[0].mxu0
        %v1822 = vadd.f32 0.0, %v1821
        %v1823 = vpop.f32.mrb[0].mxu0
        %1824 = vmatprep.mubr.f32.mxu0 0.0
        %1825 = vmatmul.mubr.f32.gmra.mrb[0].mxu0 %v1611
        %v1826 = vpop.f32.mrb[0].mxu0
        %v1827 = vadd.f32 0.0, %v1826
        %v1828 = vpop.f32.mrb[0].mxu0
        %1829 = vmatprep.mubr.f32.mxu0 0.0
        %1830 = vmatmul.mubr.f32.gmra.mrb[0].mxu0 %v1614
        %v1831 = vpop.f32.mrb[0].mxu0
        %v1832 = vadd.f32 0.0, %v1831
        %v1833 = vpop.f32.mrb[0].mxu0
        %1834 = vmatprep.mubr.f32.mxu0 0.0
        %1835 = vmatmul.mubr.f32.gmra.mrb[0].mxu0 %v1617
        %v1836 = vpop.f32.mrb[0].mxu0
        %v1837 = vadd.f32 0.0, %v1836
        %v1838 = vpop.f32.mrb[0].mxu0
        %1839 = vmatprep.mubr.f32.mxu0 0.0
        %1840 = vmatmul.mubr.f32.gmra.mrb[0].mxu0 %v1620
        %v1841 = vpop.f32.mrb[0].mxu0
        %v1842 = vadd.f32 0.0, %v1841
        %v1843 = vpop.f32.mrb[0].mxu0
        %1844 = vmatprep.mubr.f32.mxu0 0.0
        %1845 = vmatmul.mubr.f32.gmra.mrb[0].mxu0 %v1623
        %v1846 = vpop.f32.mrb[0].mxu0
        %v1847 = vadd.f32 0.0, %v1846
        %v1848 = vpop.f32.mrb[0].mxu0
        %1849 = vmatprep.mubr.f32.mxu0 0.0
        %1850 = vmatmul.mubr.f32.gmra.mrb[0].mxu0 %v1626
        %v1851 = vpop.f32.mrb[0].mxu0
        %v1852 = vadd.f32 0.0, %v1851
        %v1853 = vpop.f32.mrb[0].mxu0
        %1854 = vmatprep.mubr.f32.mxu0 0.0
        %1855 = vmatmul.mubr.f32.gmra.mrb[0].mxu0 %v1629
        %v1856 = vpop.f32.mrb[0].mxu0
        %v1857 = vadd.f32 0.0, %v1856
        %v1858 = vpop.f32.mrb[0].mxu0
        %1859 = vdwg.mxu0
        %v1861 = vsel %vm1422, %v1463, 0
        %v1864 = vsel %vm1422, %v1464, 0
        %v1867 = vsel %vm1422, %v1465, 0
        %v1870 = vsel %vm1422, %v1466, 0
        %v1873 = vsel %vm1422, %v1467, 0
        %v1876 = vsel %vm1422, %v1468, 0
        %v1879 = vsel %vm1422, %v1469, 0
        %v1882 = vsel %vm1422, %v1470, 0
        %v1885 = vsel %vm1422, %v1471, 0
        %v1888 = vsel %vm1422, %v1472, 0
        %v1891 = vsel %vm1422, %v1473, 0
        %v1894 = vsel %vm1422, %v1474, 0
        %v1897 = vsel %vm1422, %v1475, 0
        %v1900 = vsel %vm1422, %v1476, 0
        %v1903 = vsel %vm1422, %v1477, 0
        %v1906 = vsel %vm1422, %v1478, 0
        %v1909 = vsel %vm1422, %v1479, 0
        %v1912 = vsel %vm1422, %v1480, 0
        %v1915 = vsel %vm1422, %v1481, 0
        %v1918 = vsel %vm1422, %v1482, 0
        %v1921 = vsel %vm1422, %v1483, 0
        %v1924 = vsel %vm1422, %v1484, 0
        %v1927 = vsel %vm1422, %v1485, 0
        %v1930 = vsel %vm1422, %v1486, 0
        %v1933 = vsel %vm1422, %v1487, 0
        %v1936 = vsel %vm1422, %v1488, 0
        %v1939 = vsel %vm1422, %v1489, 0
        %v1942 = vsel %vm1422, %v1490, 0
        %v1945 = vsel %vm1422, %v1491, 0
        %v1948 = vsel %vm1422, %v1492, 0
        %v1951 = vsel %vm1422, %v1493, 0
        %v1954 = vsel %vm1422, %v1494, 0
        %v1957 = vsel %vm1631, %v1497, 0
        %1959 = vmatprep.subr.mxu0 0.0
        %1960 = vmatpush1.msra.mxu0 %v1495
        %1961 = vmatprep.subr.mxu0 0.0
        %1962 = vmatpush1.msra.mxu0 %v1496
        %1963 = vmatprep.subr.mxu0 0.0
        %1964 = vmatpush1.msra.mxu0 %v1957
        %1965 = vmatprep.subr.mxu0 0.0
        %1966 = vmatpush1.msra.mxu0 0.0
        %1967 = vmatprep.subr.mxu0 0.0
        %1968 = vmatpush1.msra.mxu0 0.0
        %1969 = vmatprep.subr.mxu0 0.0
        %1970 = vmatpush1.msra.mxu0 0.0
        %1971 = vmatprep.subr.mxu0 0.0
        %1972 = vmatpush1.msra.mxu0 0.0
        %1973 = vmatprep.subr.mxu0 0.0
        %1974 = vmatpush1.msra.mxu0 0.0
        %1975 = vmatprep.subr.mxu0 0.0
        %1976 = vmatpush1.msra.mxu0 0.0
        %1977 = vmatprep.subr.mxu0 0.0
        %1978 = vmatpush1.msra.mxu0 0.0
        %1979 = vmatprep.subr.mxu0 0.0
        %1980 = vmatpush1.msra.mxu0 0.0
        %1981 = vmatprep.subr.mxu0 0.0
        %1982 = vmatpush1.msra.mxu0 0.0
        %1983 = vmatprep.subr.mxu0 0.0
        %1984 = vmatpush1.msra.mxu0 0.0
        %1985 = vmatprep.subr.mxu0 0.0
        %1986 = vmatpush1.msra.mxu0 0.0
        %1987 = vmatprep.subr.mxu0 0.0
        %1988 = vmatpush1.msra.mxu0 0.0
        %1989 = vmatprep.subr.mxu0 0.0
        %1990 = vmatpush1.msra.mxu0 0.0
        %1991 = vmatprep.subr.mxu0 0.0
        %1992 = vmatpush1.msra.mxu0 0.0
        %1993 = vmatprep.subr.mxu0 0.0
        %1994 = vmatpush1.msra.mxu0 0.0
        %1995 = vmatprep.subr.mxu0 0.0
        %1996 = vmatpush1.msra.mxu0 0.0
        %1997 = vmatprep.subr.mxu0 0.0
        %1998 = vmatpush1.msra.mxu0 0.0
        %1999 = vmatprep.subr.mxu0 0.0
        %2000 = vmatpush1.msra.mxu0 0.0
        %2001 = vmatprep.subr.mxu0 0.0
        %2002 = vmatpush1.msra.mxu0 0.0
        %2003 = vmatprep.subr.mxu0 0.0
        %2004 = vmatpush1.msra.mxu0 0.0
        %2005 = vmatprep.subr.mxu0 0.0
        %2006 = vmatpush1.msra.mxu0 0.0
        %2007 = vmatprep.subr.mxu0 0.0
        %2008 = vmatpush1.msra.mxu0 0.0
        %2009 = vmatprep.subr.mxu0 0.0
        %2010 = vmatpush1.msra.mxu0 0.0
        %2011 = vmatprep.subr.mxu0 0.0
        %2012 = vmatpush1.msra.mxu0 0.0
        %2013 = vmatprep.subr.mxu0 0.0
        %2014 = vmatpush1.msra.mxu0 0.0
        %2015 = vmatprep.subr.mxu0 0.0
        %2016 = vmatpush1.msra.mxu0 0.0
        %2017 = vmatprep.subr.mxu0 0.0
        %2018 = vmatpush1.msra.mxu0 0.0
        %2019 = vmatprep.subr.mxu0 0.0
        %2020 = vmatpush1.msra.mxu0 0.0
        %2021 = vmatprep.subr.mxu0 0.0
        %2022 = vmatpush1.msra.mxu0 0.0
        %2023 = vmatprep.mubr.f32.mxu0 0.0
        %2024 = vmatmul.mubr.f32.gmra.mrb[0].mxu0 %v1861
        %v2025 = vpop.f32.mrb[0].mxu0
        %v2026 = vadd.f32 %v1702, %v2025
        %v2027 = vpop.f32.mrb[0].mxu0
        %2028 = vmatprep.mubr.f32.mxu0 0.0
        %2029 = vmatmul.mubr.f32.gmra.mrb[0].mxu0 %v1864
        %v2030 = vpop.f32.mrb[0].mxu0
        %v2031 = vadd.f32 %v1707, %v2030
        %v2032 = vpop.f32.mrb[0].mxu0
        %2033 = vmatprep.mubr.f32.mxu0 0.0
        %2034 = vmatmul.mubr.f32.gmra.mrb[0].mxu0 %v1867
        %v2035 = vpop.f32.mrb[0].mxu0
        %v2036 = vadd.f32 %v1712, %v2035
        %v2037 = vpop.f32.mrb[0].mxu0
        %2038 = vmatprep.mubr.f32.mxu0 0.0
        %2039 = vmatmul.mubr.f32.gmra.mrb[0].mxu0 %v1870
        %v2040 = vpop.f32.mrb[0].mxu0
        %v2041 = vadd.f32 %v1717, %v2040
        %v2042 = vpop.f32.mrb[0].mxu0
        %2043 = vmatprep.mubr.f32.mxu0 0.0
        %2044 = vmatmul.mubr.f32.gmra.mrb[0].mxu0 %v1873
        %v2045 = vpop.f32.mrb[0].mxu0
        %v2046 = vadd.f32 %v1722, %v2045
        %v2047 = vpop.f32.mrb[0].mxu0
        %2048 = vmatprep.mubr.f32.mxu0 0.0
        %2049 = vmatmul.mubr.f32.gmra.mrb[0].mxu0 %v1876
        %v2050 = vpop.f32.mrb[0].mxu0
        %v2051 = vadd.f32 %v1727, %v2050
        %v2052 = vpop.f32.mrb[0].mxu0
        %2053 = vmatprep.mubr.f32.mxu0 0.0
        %2054 = vmatmul.mubr.f32.gmra.mrb[0].mxu0 %v1879
        %v2055 = vpop.f32.mrb[0].mxu0
        %v2056 = vadd.f32 %v1732, %v2055
        %v2057 = vpop.f32.mrb[0].mxu0
        %2058 = vmatprep.mubr.f32.mxu0 0.0
        %2059 = vmatmul.mubr.f32.gmra.mrb[0].mxu0 %v1882
        %v2060 = vpop.f32.mrb[0].mxu0
        %v2061 = vadd.f32 %v1737, %v2060
        %v2062 = vpop.f32.mrb[0].mxu0
        %2063 = vmatprep.mubr.f32.mxu0 0.0
        %2064 = vmatmul.mubr.f32.gmra.mrb[0].mxu0 %v1885
        %v2065 = vpop.f32.mrb[0].mxu0
        %v2066 = vadd.f32 %v1742, %v2065
        %v2067 = vpop.f32.mrb[0].mxu0
        %2068 = vmatprep.mubr.f32.mxu0 0.0
        %2069 = vmatmul.mubr.f32.gmra.mrb[0].mxu0 %v1888
        %v2070 = vpop.f32.mrb[0].mxu0
        %v2071 = vadd.f32 %v1747, %v2070
        %v2072 = vpop.f32.mrb[0].mxu0
        %2073 = vmatprep.mubr.f32.mxu0 0.0
        %2074 = vmatmul.mubr.f32.gmra.mrb[0].mxu0 %v1891
        %v2075 = vpop.f32.mrb[0].mxu0
        %v2076 = vadd.f32 %v1752, %v2075
        %v2077 = vpop.f32.mrb[0].mxu0
        %2078 = vmatprep.mubr.f32.mxu0 0.0
        %2079 = vmatmul.mubr.f32.gmra.mrb[0].mxu0 %v1894
        %v2080 = vpop.f32.mrb[0].mxu0
        %v2081 = vadd.f32 %v1757, %v2080
        %v2082 = vpop.f32.mrb[0].mxu0
        %2083 = vmatprep.mubr.f32.mxu0 0.0
        %2084 = vmatmul.mubr.f32.gmra.mrb[0].mxu0 %v1897
        %v2085 = vpop.f32.mrb[0].mxu0
        %v2086 = vadd.f32 %v1762, %v2085
        %v2087 = vpop.f32.mrb[0].mxu0
        %2088 = vmatprep.mubr.f32.mxu0 0.0
        %2089 = vmatmul.mubr.f32.gmra.mrb[0].mxu0 %v1900
        %v2090 = vpop.f32.mrb[0].mxu0
        %v2091 = vadd.f32 %v1767, %v2090
        %v2092 = vpop.f32.mrb[0].mxu0
        %2093 = vmatprep.mubr.f32.mxu0 0.0
        %2094 = vmatmul.mubr.f32.gmra.mrb[0].mxu0 %v1903
        %v2095 = vpop.f32.mrb[0].mxu0
        %v2096 = vadd.f32 %v1772, %v2095
        %v2097 = vpop.f32.mrb[0].mxu0
        %2098 = vmatprep.mubr.f32.mxu0 0.0
        %2099 = vmatmul.mubr.f32.gmra.mrb[0].mxu0 %v1906
        %v2100 = vpop.f32.mrb[0].mxu0
        %v2101 = vadd.f32 %v1777, %v2100
        %v2102 = vpop.f32.mrb[0].mxu0
        %2103 = vmatprep.mubr.f32.mxu0 0.0
        %2104 = vmatmul.mubr.f32.gmra.mrb[0].mxu0 %v1909
        %v2105 = vpop.f32.mrb[0].mxu0
        %v2106 = vadd.f32 %v1782, %v2105
        %v2107 = vpop.f32.mrb[0].mxu0
        %2108 = vmatprep.mubr.f32.mxu0 0.0
        %2109 = vmatmul.mubr.f32.gmra.mrb[0].mxu0 %v1912
        %v2110 = vpop.f32.mrb[0].mxu0
        %v2111 = vadd.f32 %v1787, %v2110
        %v2112 = vpop.f32.mrb[0].mxu0
        %2113 = vmatprep.mubr.f32.mxu0 0.0
        %2114 = vmatmul.mubr.f32.gmra.mrb[0].mxu0 %v1915
        %v2115 = vpop.f32.mrb[0].mxu0
        %v2116 = vadd.f32 %v1792, %v2115
        %v2117 = vpop.f32.mrb[0].mxu0
        %2118 = vmatprep.mubr.f32.mxu0 0.0
        %2119 = vmatmul.mubr.f32.gmra.mrb[0].mxu0 %v1918
        %v2120 = vpop.f32.mrb[0].mxu0
        %v2121 = vadd.f32 %v1797, %v2120
        %v2122 = vpop.f32.mrb[0].mxu0
        %2123 = vmatprep.mubr.f32.mxu0 0.0
        %2124 = vmatmul.mubr.f32.gmra.mrb[0].mxu0 %v1921
        %v2125 = vpop.f32.mrb[0].mxu0
        %v2126 = vadd.f32 %v1802, %v2125
        %v2127 = vpop.f32.mrb[0].mxu0
        %2128 = vmatprep.mubr.f32.mxu0 0.0
        %2129 = vmatmul.mubr.f32.gmra.mrb[0].mxu0 %v1924
        %v2130 = vpop.f32.mrb[0].mxu0
        %v2131 = vadd.f32 %v1807, %v2130
        %v2132 = vpop.f32.mrb[0].mxu0
        %2133 = vmatprep.mubr.f32.mxu0 0.0
        %2134 = vmatmul.mubr.f32.gmra.mrb[0].mxu0 %v1927
        %v2135 = vpop.f32.mrb[0].mxu0
        %v2136 = vadd.f32 %v1812, %v2135
        %v2137 = vpop.f32.mrb[0].mxu0
        %2138 = vmatprep.mubr.f32.mxu0 0.0
        %2139 = vmatmul.mubr.f32.gmra.mrb[0].mxu0 %v1930
        %v2140 = vpop.f32.mrb[0].mxu0
        %v2141 = vadd.f32 %v1817, %v2140
        %v2142 = vpop.f32.mrb[0].mxu0
        %2143 = vmatprep.mubr.f32.mxu0 0.0
        %2144 = vmatmul.mubr.f32.gmra.mrb[0].mxu0 %v1933
        %v2145 = vpop.f32.mrb[0].mxu0
        %v2146 = vadd.f32 %v1822, %v2145
        %v2147 = vpop.f32.mrb[0].mxu0
        %2148 = vmatprep.mubr.f32.mxu0 0.0
        %2149 = vmatmul.mubr.f32.gmra.mrb[0].mxu0 %v1936
        %v2150 = vpop.f32.mrb[0].mxu0
        %v2151 = vadd.f32 %v1827, %v2150
        %v2152 = vpop.f32.mrb[0].mxu0
        %2153 = vmatprep.mubr.f32.mxu0 0.0
        %2154 = vmatmul.mubr.f32.gmra.mrb[0].mxu0 %v1939
        %v2155 = vpop.f32.mrb[0].mxu0
        %v2156 = vadd.f32 %v1832, %v2155
        %v2157 = vpop.f32.mrb[0].mxu0
        %2158 = vmatprep.mubr.f32.mxu0 0.0
        %2159 = vmatmul.mubr.f32.gmra.mrb[0].mxu0 %v1942
        %v2160 = vpop.f32.mrb[0].mxu0
        %v2161 = vadd.f32 %v1837, %v2160
        %v2162 = vpop.f32.mrb[0].mxu0
        %2163 = vmatprep.mubr.f32.mxu0 0.0
        %2164 = vmatmul.mubr.f32.gmra.mrb[0].mxu0 %v1945
        %v2165 = vpop.f32.mrb[0].mxu0
        %v2166 = vadd.f32 %v1842, %v2165
        %v2167 = vpop.f32.mrb[0].mxu0
        %2168 = vmatprep.mubr.f32.mxu0 0.0
        %2169 = vmatmul.mubr.f32.gmra.mrb[0].mxu0 %v1948
        %v2170 = vpop.f32.mrb[0].mxu0
        %v2171 = vadd.f32 %v1847, %v2170
        %v2172 = vpop.f32.mrb[0].mxu0
        %2173 = vmatprep.mubr.f32.mxu0 0.0
        %2174 = vmatmul.mubr.f32.gmra.mrb[0].mxu0 %v1951
        %v2175 = vpop.f32.mrb[0].mxu0
        %v2176 = vadd.f32 %v1852, %v2175
        %v2177 = vpop.f32.mrb[0].mxu0
        %2178 = vmatprep.mubr.f32.mxu0 0.0
        %2179 = vmatmul.mubr.f32.gmra.mrb[0].mxu0 %v1954
        %v2180 = vpop.f32.mrb[0].mxu0
        %v2181 = vadd.f32 %v1857, %v2180
        %v2182 = vpop.f32.mrb[0].mxu0
        %2183 = vdwg.mxu0
        %s2184 = scalar_lea.vmem [#allocation5], 32
        %v2185 = vld [vmem:[%s2184] sm:$0xff]
        %v2186 = vld [vmem:[%s2184 + $0x8] sm:$0xff]
        %v2187 = vld [vmem:[%s2184 + $0x10] sm:$0xff]
        %v2188 = vld [vmem:[%s2184 + $0x18] sm:$0xff]
        %v2189 = vld [vmem:[%s2184 + $0x20] sm:$0xff]
        %v2190 = vld [vmem:[%s2184 + $0x28] sm:$0xff]
        %v2191 = vld [vmem:[%s2184 + $0x30] sm:$0xff]
        %v2192 = vld [vmem:[%s2184 + $0x38] sm:$0xff]
        %v2193 = vld [vmem:[%s2184 + $0x40] sm:$0xff]
        %v2194 = vld [vmem:[%s2184 + $0x48] sm:$0xff]
        %v2195 = vld [vmem:[%s2184 + $0x50] sm:$0xff]
        %v2196 = vld [vmem:[%s2184 + $0x58] sm:$0xff]
        %v2197 = vld [vmem:[%s2184 + $0x60] sm:$0xff]
        %v2198 = vld [vmem:[%s2184 + $0x68] sm:$0xff]
        %v2199 = vld [vmem:[%s2184 + $0x70] sm:$0xff]
        %v2200 = vld [vmem:[%s2184 + $0x78] sm:$0xff]
        %v2201 = vld [vmem:[%s2184 + $0x80] sm:$0xff]
        %v2202 = vld [vmem:[%s2184 + $0x88] sm:$0xff]
        %v2203 = vld [vmem:[%s2184 + $0x90] sm:$0xff]
        %v2204 = vld [vmem:[%s2184 + $0x98] sm:$0xff]
        %v2205 = vld [vmem:[%s2184 + $0xa0] sm:$0xff]
        %v2206 = vld [vmem:[%s2184 + $0xa8] sm:$0xff]
        %v2207 = vld [vmem:[%s2184 + $0xb0] sm:$0xff]
        %v2208 = vld [vmem:[%s2184 + $0xb8] sm:$0xff]
        %v2209 = vld [vmem:[%s2184 + $0xc0] sm:$0xff]
        %v2210 = vld [vmem:[%s2184 + $0xc8] sm:$0xff]
        %v2211 = vld [vmem:[%s2184 + $0xd0] sm:$0xff]
        %v2212 = vld [vmem:[%s2184 + $0xd8] sm:$0xff]
        %v2213 = vld [vmem:[%s2184 + $0xe0] sm:$0xff]
        %v2214 = vld [vmem:[%s2184 + $0xe8] sm:$0xff]
        %v2215 = vld [vmem:[%s2184 + $0xf0] sm:$0xff]
        %v2216 = vld [vmem:[%s2184 + $0xf8] sm:$0xff]
        %s2217 = scalar_lea.vmem %s1, 48
        %v2218 = vld [vmem:[%s2217] sm:$0xff]
        %v2219 = vld [vmem:[%s2217 + $0x8] sm:$0xff]
        %v2220 = vld [vmem:[%s2217 + $0x10] sm:$0xf]
        %v2222 = vsel %vm1422, %v2185, 0
        %v2225 = vsel %vm1422, %v2186, 0
        %v2228 = vsel %vm1422, %v2187, 0
        %v2231 = vsel %vm1422, %v2188, 0
        %v2234 = vsel %vm1422, %v2189, 0
        %v2237 = vsel %vm1422, %v2190, 0
        %v2240 = vsel %vm1422, %v2191, 0
        %v2243 = vsel %vm1422, %v2192, 0
        %v2246 = vsel %vm1422, %v2193, 0
        %v2249 = vsel %vm1422, %v2194, 0
        %v2252 = vsel %vm1422, %v2195, 0
        %v2255 = vsel %vm1422, %v2196, 0
        %v2258 = vsel %vm1422, %v2197, 0
        %v2261 = vsel %vm1422, %v2198, 0
        %v2264 = vsel %vm1422, %v2199, 0
        %v2267 = vsel %vm1422, %v2200, 0
        %v2270 = vsel %vm1422, %v2201, 0
        %v2273 = vsel %vm1422, %v2202, 0
        %v2276 = vsel %vm1422, %v2203, 0
        %v2279 = vsel %vm1422, %v2204, 0
        %v2282 = vsel %vm1422, %v2205, 0
        %v2285 = vsel %vm1422, %v2206, 0
        %v2288 = vsel %vm1422, %v2207, 0
        %v2291 = vsel %vm1422, %v2208, 0
        %v2294 = vsel %vm1422, %v2209, 0
        %v2297 = vsel %vm1422, %v2210, 0
        %v2300 = vsel %vm1422, %v2211, 0
        %v2303 = vsel %vm1422, %v2212, 0
        %v2306 = vsel %vm1422, %v2213, 0
        %v2309 = vsel %vm1422, %v2214, 0
        %v2312 = vsel %vm1422, %v2215, 0
        %v2315 = vsel %vm1422, %v2216, 0
        %v2318 = vsel %vm1631, %v2220, 0
        %2320 = vmatprep.subr.mxu0 0.0
        %2321 = vmatpush1.msra.mxu0 %v2218
        %2322 = vmatprep.subr.mxu0 0.0
        %2323 = vmatpush1.msra.mxu0 %v2219
        %2324 = vmatprep.subr.mxu0 0.0
        %2325 = vmatpush1.msra.mxu0 %v2318
        %2326 = vmatprep.subr.mxu0 0.0
        %2327 = vmatpush1.msra.mxu0 0.0
        %2328 = vmatprep.subr.mxu0 0.0
        %2329 = vmatpush1.msra.mxu0 0.0
        %2330 = vmatprep.subr.mxu0 0.0
        %2331 = vmatpush1.msra.mxu0 0.0
        %2332 = vmatprep.subr.mxu0 0.0
        %2333 = vmatpush1.msra.mxu0 0.0
        %2334 = vmatprep.subr.mxu0 0.0
        %2335 = vmatpush1.msra.mxu0 0.0
        %2336 = vmatprep.subr.mxu0 0.0
        %2337 = vmatpush1.msra.mxu0 0.0
        %2338 = vmatprep.subr.mxu0 0.0
        %2339 = vmatpush1.msra.mxu0 0.0
        %2340 = vmatprep.subr.mxu0 0.0
        %2341 = vmatpush1.msra.mxu0 0.0
        %2342 = vmatprep.subr.mxu0 0.0
        %2343 = vmatpush1.msra.mxu0 0.0
        %2344 = vmatprep.subr.mxu0 0.0
        %2345 = vmatpush1.msra.mxu0 0.0
        %2346 = vmatprep.subr.mxu0 0.0
        %2347 = vmatpush1.msra.mxu0 0.0
        %2348 = vmatprep.subr.mxu0 0.0
        %2349 = vmatpush1.msra.mxu0 0.0
        %2350 = vmatprep.subr.mxu0 0.0
        %2351 = vmatpush1.msra.mxu0 0.0
        %2352 = vmatprep.subr.mxu0 0.0
        %2353 = vmatpush1.msra.mxu0 0.0
        %2354 = vmatprep.subr.mxu0 0.0
        %2355 = vmatpush1.msra.mxu0 0.0
        %2356 = vmatprep.subr.mxu0 0.0
        %2357 = vmatpush1.msra.mxu0 0.0
        %2358 = vmatprep.subr.mxu0 0.0
        %2359 = vmatpush1.msra.mxu0 0.0
        %2360 = vmatprep.subr.mxu0 0.0
        %2361 = vmatpush1.msra.mxu0 0.0
        %2362 = vmatprep.subr.mxu0 0.0
        %2363 = vmatpush1.msra.mxu0 0.0
        %2364 = vmatprep.subr.mxu0 0.0
        %2365 = vmatpush1.msra.mxu0 0.0
        %2366 = vmatprep.subr.mxu0 0.0
        %2367 = vmatpush1.msra.mxu0 0.0
        %2368 = vmatprep.subr.mxu0 0.0
        %2369 = vmatpush1.msra.mxu0 0.0
        %2370 = vmatprep.subr.mxu0 0.0
        %2371 = vmatpush1.msra.mxu0 0.0
        %2372 = vmatprep.subr.mxu0 0.0
        %2373 = vmatpush1.msra.mxu0 0.0
        %2374 = vmatprep.subr.mxu0 0.0
        %2375 = vmatpush1.msra.mxu0 0.0
        %2376 = vmatprep.subr.mxu0 0.0
        %2377 = vmatpush1.msra.mxu0 0.0
        %2378 = vmatprep.subr.mxu0 0.0
        %2379 = vmatpush1.msra.mxu0 0.0
        %2380 = vmatprep.subr.mxu0 0.0
        %2381 = vmatpush1.msra.mxu0 0.0
        %2382 = vmatprep.subr.mxu0 0.0
        %2383 = vmatpush1.msra.mxu0 0.0
        %2384 = vmatprep.mubr.f32.mxu0 0.0
        %2385 = vmatmul.mubr.f32.gmra.mrb[0].mxu0 %v2222
        %v2386 = vpop.f32.mrb[0].mxu0
        %v2387 = vadd.f32 0.0, %v2386
        %v2388 = vpop.f32.mrb[0].mxu0
        %2389 = vmatprep.mubr.f32.mxu0 0.0
        %2390 = vmatmul.mubr.f32.gmra.mrb[0].mxu0 %v2225
        %v2391 = vpop.f32.mrb[0].mxu0
        %v2392 = vadd.f32 0.0, %v2391
        %v2393 = vpop.f32.mrb[0].mxu0
        %2394 = vmatprep.mubr.f32.mxu0 0.0
        %2395 = vmatmul.mubr.f32.gmra.mrb[0].mxu0 %v2228
        %v2396 = vpop.f32.mrb[0].mxu0
        %v2397 = vadd.f32 0.0, %v2396
        %v2398 = vpop.f32.mrb[0].mxu0
        %2399 = vmatprep.mubr.f32.mxu0 0.0
        %2400 = vmatmul.mubr.f32.gmra.mrb[0].mxu0 %v2231
        %v2401 = vpop.f32.mrb[0].mxu0
        %v2402 = vadd.f32 0.0, %v2401
        %v2403 = vpop.f32.mrb[0].mxu0
        %2404 = vmatprep.mubr.f32.mxu0 0.0
        %2405 = vmatmul.mubr.f32.gmra.mrb[0].mxu0 %v2234
        %v2406 = vpop.f32.mrb[0].mxu0
        %v2407 = vadd.f32 0.0, %v2406
        %v2408 = vpop.f32.mrb[0].mxu0
        %2409 = vmatprep.mubr.f32.mxu0 0.0
        %2410 = vmatmul.mubr.f32.gmra.mrb[0].mxu0 %v2237
        %v2411 = vpop.f32.mrb[0].mxu0
        %v2412 = vadd.f32 0.0, %v2411
        %v2413 = vpop.f32.mrb[0].mxu0
        %2414 = vmatprep.mubr.f32.mxu0 0.0
        %2415 = vmatmul.mubr.f32.gmra.mrb[0].mxu0 %v2240
        %v2416 = vpop.f32.mrb[0].mxu0
        %v2417 = vadd.f32 0.0, %v2416
        %v2418 = vpop.f32.mrb[0].mxu0
        %2419 = vmatprep.mubr.f32.mxu0 0.0
        %2420 = vmatmul.mubr.f32.gmra.mrb[0].mxu0 %v2243
        %v2421 = vpop.f32.mrb[0].mxu0
        %v2422 = vadd.f32 0.0, %v2421
        %v2423 = vpop.f32.mrb[0].mxu0
        %2424 = vmatprep.mubr.f32.mxu0 0.0
        %2425 = vmatmul.mubr.f32.gmra.mrb[0].mxu0 %v2246
        %v2426 = vpop.f32.mrb[0].mxu0
        %v2427 = vadd.f32 0.0, %v2426
        %v2428 = vpop.f32.mrb[0].mxu0
        %2429 = vmatprep.mubr.f32.mxu0 0.0
        %2430 = vmatmul.mubr.f32.gmra.mrb[0].mxu0 %v2249
        %v2431 = vpop.f32.mrb[0].mxu0
        %v2432 = vadd.f32 0.0, %v2431
        %v2433 = vpop.f32.mrb[0].mxu0
        %2434 = vmatprep.mubr.f32.mxu0 0.0
        %2435 = vmatmul.mubr.f32.gmra.mrb[0].mxu0 %v2252
        %v2436 = vpop.f32.mrb[0].mxu0
        %v2437 = vadd.f32 0.0, %v2436
        %v2438 = vpop.f32.mrb[0].mxu0
        %2439 = vmatprep.mubr.f32.mxu0 0.0
        %2440 = vmatmul.mubr.f32.gmra.mrb[0].mxu0 %v2255
        %v2441 = vpop.f32.mrb[0].mxu0
        %v2442 = vadd.f32 0.0, %v2441
        %v2443 = vpop.f32.mrb[0].mxu0
        %2444 = vmatprep.mubr.f32.mxu0 0.0
        %2445 = vmatmul.mubr.f32.gmra.mrb[0].mxu0 %v2258
        %v2446 = vpop.f32.mrb[0].mxu0
        %v2447 = vadd.f32 0.0, %v2446
        %v2448 = vpop.f32.mrb[0].mxu0
        %2449 = vmatprep.mubr.f32.mxu0 0.0
        %2450 = vmatmul.mubr.f32.gmra.mrb[0].mxu0 %v2261
        %v2451 = vpop.f32.mrb[0].mxu0
        %v2452 = vadd.f32 0.0, %v2451
        %v2453 = vpop.f32.mrb[0].mxu0
        %2454 = vmatprep.mubr.f32.mxu0 0.0
        %2455 = vmatmul.mubr.f32.gmra.mrb[0].mxu0 %v2264
        %v2456 = vpop.f32.mrb[0].mxu0
        %v2457 = vadd.f32 0.0, %v2456
        %v2458 = vpop.f32.mrb[0].mxu0
        %2459 = vmatprep.mubr.f32.mxu0 0.0
        %2460 = vmatmul.mubr.f32.gmra.mrb[0].mxu0 %v2267
        %v2461 = vpop.f32.mrb[0].mxu0
        %v2462 = vadd.f32 0.0, %v2461
        %v2463 = vpop.f32.mrb[0].mxu0
        %2464 = vmatprep.mubr.f32.mxu0 0.0
        %2465 = vmatmul.mubr.f32.gmra.mrb[0].mxu0 %v2270
        %v2466 = vpop.f32.mrb[0].mxu0
        %v2467 = vadd.f32 0.0, %v2466
        %v2468 = vpop.f32.mrb[0].mxu0
        %2469 = vmatprep.mubr.f32.mxu0 0.0
        %2470 = vmatmul.mubr.f32.gmra.mrb[0].mxu0 %v2273
        %v2471 = vpop.f32.mrb[0].mxu0
        %v2472 = vadd.f32 0.0, %v2471
        %v2473 = vpop.f32.mrb[0].mxu0
        %2474 = vmatprep.mubr.f32.mxu0 0.0
        %2475 = vmatmul.mubr.f32.gmra.mrb[0].mxu0 %v2276
        %v2476 = vpop.f32.mrb[0].mxu0
        %v2477 = vadd.f32 0.0, %v2476
        %v2478 = vpop.f32.mrb[0].mxu0
        %2479 = vmatprep.mubr.f32.mxu0 0.0
        %2480 = vmatmul.mubr.f32.gmra.mrb[0].mxu0 %v2279
        %v2481 = vpop.f32.mrb[0].mxu0
        %v2482 = vadd.f32 0.0, %v2481
        %v2483 = vpop.f32.mrb[0].mxu0
        %2484 = vmatprep.mubr.f32.mxu0 0.0
        %2485 = vmatmul.mubr.f32.gmra.mrb[0].mxu0 %v2282
        %v2486 = vpop.f32.mrb[0].mxu0
        %v2487 = vadd.f32 0.0, %v2486
        %v2488 = vpop.f32.mrb[0].mxu0
        %2489 = vmatprep.mubr.f32.mxu0 0.0
        %2490 = vmatmul.mubr.f32.gmra.mrb[0].mxu0 %v2285
        %v2491 = vpop.f32.mrb[0].mxu0
        %v2492 = vadd.f32 0.0, %v2491
        %v2493 = vpop.f32.mrb[0].mxu0
        %2494 = vmatprep.mubr.f32.mxu0 0.0
        %2495 = vmatmul.mubr.f32.gmra.mrb[0].mxu0 %v2288
        %v2496 = vpop.f32.mrb[0].mxu0
        %v2497 = vadd.f32 0.0, %v2496
        %v2498 = vpop.f32.mrb[0].mxu0
        %2499 = vmatprep.mubr.f32.mxu0 0.0
        %2500 = vmatmul.mubr.f32.gmra.mrb[0].mxu0 %v2291
        %v2501 = vpop.f32.mrb[0].mxu0
        %v2502 = vadd.f32 0.0, %v2501
        %v2503 = vpop.f32.mrb[0].mxu0
        %2504 = vmatprep.mubr.f32.mxu0 0.0
        %2505 = vmatmul.mubr.f32.gmra.mrb[0].mxu0 %v2294
        %v2506 = vpop.f32.mrb[0].mxu0
        %v2507 = vadd.f32 0.0, %v2506
        %v2508 = vpop.f32.mrb[0].mxu0
        %2509 = vmatprep.mubr.f32.mxu0 0.0
        %2510 = vmatmul.mubr.f32.gmra.mrb[0].mxu0 %v2297
        %v2511 = vpop.f32.mrb[0].mxu0
        %v2512 = vadd.f32 0.0, %v2511
        %v2513 = vpop.f32.mrb[0].mxu0
        %2514 = vmatprep.mubr.f32.mxu0 0.0
        %2515 = vmatmul.mubr.f32.gmra.mrb[0].mxu0 %v2300
        %v2516 = vpop.f32.mrb[0].mxu0
        %v2517 = vadd.f32 0.0, %v2516
        %v2518 = vpop.f32.mrb[0].mxu0
        %2519 = vmatprep.mubr.f32.mxu0 0.0
        %2520 = vmatmul.mubr.f32.gmra.mrb[0].mxu0 %v2303
        %v2521 = vpop.f32.mrb[0].mxu0
        %v2522 = vadd.f32 0.0, %v2521
        %v2523 = vpop.f32.mrb[0].mxu0
        %2524 = vmatprep.mubr.f32.mxu0 0.0
        %2525 = vmatmul.mubr.f32.gmra.mrb[0].mxu0 %v2306
        %v2526 = vpop.f32.mrb[0].mxu0
        %v2527 = vadd.f32 0.0, %v2526
        %v2528 = vpop.f32.mrb[0].mxu0
        %2529 = vmatprep.mubr.f32.mxu0 0.0
        %2530 = vmatmul.mubr.f32.gmra.mrb[0].mxu0 %v2309
        %v2531 = vpop.f32.mrb[0].mxu0
        %v2532 = vadd.f32 0.0, %v2531
        %v2533 = vpop.f32.mrb[0].mxu0
        %2534 = vmatprep.mubr.f32.mxu0 0.0
        %2535 = vmatmul.mubr.f32.gmra.mrb[0].mxu0 %v2312
        %v2536 = vpop.f32.mrb[0].mxu0
        %v2537 = vadd.f32 0.0, %v2536
        %v2538 = vpop.f32.mrb[0].mxu0
        %2539 = vmatprep.mubr.f32.mxu0 0.0
        %2540 = vmatmul.mubr.f32.gmra.mrb[0].mxu0 %v2315
        %v2541 = vpop.f32.mrb[0].mxu0
        %v2542 = vadd.f32 0.0, %v2541
        %v2543 = vpop.f32.mrb[0].mxu0
        %2544 = vdwg.mxu0
        %v2545 = vadd.f32 %v2026, %v2387
        %v2546 = vadd.f32 %v2031, %v2392
        %v2547 = vadd.f32 %v2036, %v2397
        %v2548 = vadd.f32 %v2041, %v2402
        %v2549 = vadd.f32 %v2046, %v2407
        %v2550 = vadd.f32 %v2051, %v2412
        %v2551 = vadd.f32 %v2056, %v2417
        %v2552 = vadd.f32 %v2061, %v2422
        %v2553 = vadd.f32 %v2066, %v2427
        %v2554 = vadd.f32 %v2071, %v2432
        %v2555 = vadd.f32 %v2076, %v2437
        %v2556 = vadd.f32 %v2081, %v2442
        %v2557 = vadd.f32 %v2086, %v2447
        %v2558 = vadd.f32 %v2091, %v2452
        %v2559 = vadd.f32 %v2096, %v2457
        %v2560 = vadd.f32 %v2101, %v2462
        %v2561 = vadd.f32 %v2106, %v2467
        %v2562 = vadd.f32 %v2111, %v2472
        %v2563 = vadd.f32 %v2116, %v2477
        %v2564 = vadd.f32 %v2121, %v2482
        %v2565 = vadd.f32 %v2126, %v2487
        %v2566 = vadd.f32 %v2131, %v2492
        %v2567 = vadd.f32 %v2136, %v2497
        %v2568 = vadd.f32 %v2141, %v2502
        %v2569 = vadd.f32 %v2146, %v2507
        %v2570 = vadd.f32 %v2151, %v2512
        %v2571 = vadd.f32 %v2156, %v2517
        %v2572 = vadd.f32 %v2161, %v2522
        %v2573 = vadd.f32 %v2166, %v2527
        %v2574 = vadd.f32 %v2171, %v2532
        %v2575 = vadd.f32 %v2176, %v2537
        %v2576 = vadd.f32 %v2181, %v2542
        %s2577 = scalar_lea.vmem [#allocation5], 48
        %v2578 = vld [vmem:[%s2577] sm:$0xff]
        %v2579 = vld [vmem:[%s2577 + $0x8] sm:$0xff]
        %v2580 = vld [vmem:[%s2577 + $0x10] sm:$0xff]
        %v2581 = vld [vmem:[%s2577 + $0x18] sm:$0xff]
        %v2582 = vld [vmem:[%s2577 + $0x20] sm:$0xff]
        %v2583 = vld [vmem:[%s2577 + $0x28] sm:$0xff]
        %v2584 = vld [vmem:[%s2577 + $0x30] sm:$0xff]
        %v2585 = vld [vmem:[%s2577 + $0x38] sm:$0xff]
        %v2586 = vld [vmem:[%s2577 + $0x40] sm:$0xff]
        %v2587 = vld [vmem:[%s2577 + $0x48] sm:$0xff]
        %v2588 = vld [vmem:[%s2577 + $0x50] sm:$0xff]
        %v2589 = vld [vmem:[%s2577 + $0x58] sm:$0xff]
        %v2590 = vld [vmem:[%s2577 + $0x60] sm:$0xff]
        %v2591 = vld [vmem:[%s2577 + $0x68] sm:$0xff]
        %v2592 = vld [vmem:[%s2577 + $0x70] sm:$0xff]
        %v2593 = vld [vmem:[%s2577 + $0x78] sm:$0xff]
        %v2594 = vld [vmem:[%s2577 + $0x80] sm:$0xff]
        %v2595 = vld [vmem:[%s2577 + $0x88] sm:$0xff]
        %v2596 = vld [vmem:[%s2577 + $0x90] sm:$0xff]
        %v2597 = vld [vmem:[%s2577 + $0x98] sm:$0xff]
        %v2598 = vld [vmem:[%s2577 + $0xa0] sm:$0xff]
        %v2599 = vld [vmem:[%s2577 + $0xa8] sm:$0xff]
        %v2600 = vld [vmem:[%s2577 + $0xb0] sm:$0xff]
        %v2601 = vld [vmem:[%s2577 + $0xb8] sm:$0xff]
        %v2602 = vld [vmem:[%s2577 + $0xc0] sm:$0xff]
        %v2603 = vld [vmem:[%s2577 + $0xc8] sm:$0xff]
        %v2604 = vld [vmem:[%s2577 + $0xd0] sm:$0xff]
        %v2605 = vld [vmem:[%s2577 + $0xd8] sm:$0xff]
        %v2606 = vld [vmem:[%s2577 + $0xe0] sm:$0xff]
        %v2607 = vld [vmem:[%s2577 + $0xe8] sm:$0xff]
        %v2608 = vld [vmem:[%s2577 + $0xf0] sm:$0xff]
        %v2609 = vld [vmem:[%s2577 + $0xf8] sm:$0xff]
        %s2610 = scalar_lea.vmem %s1, 72
        %v2611 = vld [vmem:[%s2610] sm:$0xff]
        %v2612 = vld [vmem:[%s2610 + $0x8] sm:$0xff]
        %v2613 = vld [vmem:[%s2610 + $0x10] sm:$0xf]
        %v2615 = vsel %vm1422, %v2578, 0
        %v2618 = vsel %vm1422, %v2579, 0
        %v2621 = vsel %vm1422, %v2580, 0
        %v2624 = vsel %vm1422, %v2581, 0
        %v2627 = vsel %vm1422, %v2582, 0
        %v2630 = vsel %vm1422, %v2583, 0
        %v2633 = vsel %vm1422, %v2584, 0
        %v2636 = vsel %vm1422, %v2585, 0
        %v2639 = vsel %vm1422, %v2586, 0
        %v2642 = vsel %vm1422, %v2587, 0
        %v2645 = vsel %vm1422, %v2588, 0
        %v2648 = vsel %vm1422, %v2589, 0
        %v2651 = vsel %vm1422, %v2590, 0
        %v2654 = vsel %vm1422, %v2591, 0
        %v2657 = vsel %vm1422, %v2592, 0
        %v2660 = vsel %vm1422, %v2593, 0
        %v2663 = vsel %vm1422, %v2594, 0
        %v2666 = vsel %vm1422, %v2595, 0
        %v2669 = vsel %vm1422, %v2596, 0
        %v2672 = vsel %vm1422, %v2597, 0
        %v2675 = vsel %vm1422, %v2598, 0
        %v2678 = vsel %vm1422, %v2599, 0
        %v2681 = vsel %vm1422, %v2600, 0
        %v2684 = vsel %vm1422, %v2601, 0
        %v2687 = vsel %vm1422, %v2602, 0
        %v2690 = vsel %vm1422, %v2603, 0
        %v2693 = vsel %vm1422, %v2604, 0
        %v2696 = vsel %vm1422, %v2605, 0
        %v2699 = vsel %vm1422, %v2606, 0
        %v2702 = vsel %vm1422, %v2607, 0
        %v2705 = vsel %vm1422, %v2608, 0
        %v2708 = vsel %vm1422, %v2609, 0
        %v2711 = vsel %vm1631, %v2613, 0
        %2713 = vmatprep.subr.mxu0 0.0
        %2714 = vmatpush1.msra.mxu0 %v2611
        %2715 = vmatprep.subr.mxu0 0.0
        %2716 = vmatpush1.msra.mxu0 %v2612
        %2717 = vmatprep.subr.mxu0 0.0
        %2718 = vmatpush1.msra.mxu0 %v2711
        %2719 = vmatprep.subr.mxu0 0.0
        %2720 = vmatpush1.msra.mxu0 0.0
        %2721 = vmatprep.subr.mxu0 0.0
        %2722 = vmatpush1.msra.mxu0 0.0
        %2723 = vmatprep.subr.mxu0 0.0
        %2724 = vmatpush1.msra.mxu0 0.0
        %2725 = vmatprep.subr.mxu0 0.0
        %2726 = vmatpush1.msra.mxu0 0.0
        %2727 = vmatprep.subr.mxu0 0.0
        %2728 = vmatpush1.msra.mxu0 0.0
        %2729 = vmatprep.subr.mxu0 0.0
        %2730 = vmatpush1.msra.mxu0 0.0
        %2731 = vmatprep.subr.mxu0 0.0
        %2732 = vmatpush1.msra.mxu0 0.0
        %2733 = vmatprep.subr.mxu0 0.0
        %2734 = vmatpush1.msra.mxu0 0.0
        %2735 = vmatprep.subr.mxu0 0.0
        %2736 = vmatpush1.msra.mxu0 0.0
        %2737 = vmatprep.subr.mxu0 0.0
        %2738 = vmatpush1.msra.mxu0 0.0
        %2739 = vmatprep.subr.mxu0 0.0
        %2740 = vmatpush1.msra.mxu0 0.0
        %2741 = vmatprep.subr.mxu0 0.0
        %2742 = vmatpush1.msra.mxu0 0.0
        %2743 = vmatprep.subr.mxu0 0.0
        %2744 = vmatpush1.msra.mxu0 0.0
        %2745 = vmatprep.subr.mxu0 0.0
        %2746 = vmatpush1.msra.mxu0 0.0
        %2747 = vmatprep.subr.mxu0 0.0
        %2748 = vmatpush1.msra.mxu0 0.0
        %2749 = vmatprep.subr.mxu0 0.0
        %2750 = vmatpush1.msra.mxu0 0.0
        %2751 = vmatprep.subr.mxu0 0.0
        %2752 = vmatpush1.msra.mxu0 0.0
        %2753 = vmatprep.subr.mxu0 0.0
        %2754 = vmatpush1.msra.mxu0 0.0
        %2755 = vmatprep.subr.mxu0 0.0
        %2756 = vmatpush1.msra.mxu0 0.0
        %2757 = vmatprep.subr.mxu0 0.0
        %2758 = vmatpush1.msra.mxu0 0.0
        %2759 = vmatprep.subr.mxu0 0.0
        %2760 = vmatpush1.msra.mxu0 0.0
        %2761 = vmatprep.subr.mxu0 0.0
        %2762 = vmatpush1.msra.mxu0 0.0
        %2763 = vmatprep.subr.mxu0 0.0
        %2764 = vmatpush1.msra.mxu0 0.0
        %2765 = vmatprep.subr.mxu0 0.0
        %2766 = vmatpush1.msra.mxu0 0.0
        %2767 = vmatprep.subr.mxu0 0.0
        %2768 = vmatpush1.msra.mxu0 0.0
        %2769 = vmatprep.subr.mxu0 0.0
        %2770 = vmatpush1.msra.mxu0 0.0
        %2771 = vmatprep.subr.mxu0 0.0
        %2772 = vmatpush1.msra.mxu0 0.0
        %2773 = vmatprep.subr.mxu0 0.0
        %2774 = vmatpush1.msra.mxu0 0.0
        %2775 = vmatprep.subr.mxu0 0.0
        %2776 = vmatpush1.msra.mxu0 0.0
        %2777 = vmatprep.mubr.f32.mxu0 0.0
        %2778 = vmatmul.mubr.f32.gmra.mrb[0].mxu0 %v2615
        %v2779 = vpop.f32.mrb[0].mxu0
        %v2780 = vadd.f32 0.0, %v2779
        %v2781 = vpop.f32.mrb[0].mxu0
        %2782 = vmatprep.mubr.f32.mxu0 0.0
        %2783 = vmatmul.mubr.f32.gmra.mrb[0].mxu0 %v2618
        %v2784 = vpop.f32.mrb[0].mxu0
        %v2785 = vadd.f32 0.0, %v2784
        %v2786 = vpop.f32.mrb[0].mxu0
        %2787 = vmatprep.mubr.f32.mxu0 0.0
        %2788 = vmatmul.mubr.f32.gmra.mrb[0].mxu0 %v2621
        %v2789 = vpop.f32.mrb[0].mxu0
        %v2790 = vadd.f32 0.0, %v2789
        %v2791 = vpop.f32.mrb[0].mxu0
        %2792 = vmatprep.mubr.f32.mxu0 0.0
        %2793 = vmatmul.mubr.f32.gmra.mrb[0].mxu0 %v2624
        %v2794 = vpop.f32.mrb[0].mxu0
        %v2795 = vadd.f32 0.0, %v2794
        %v2796 = vpop.f32.mrb[0].mxu0
        %2797 = vmatprep.mubr.f32.mxu0 0.0
        %2798 = vmatmul.mubr.f32.gmra.mrb[0].mxu0 %v2627
        %v2799 = vpop.f32.mrb[0].mxu0
        %v2800 = vadd.f32 0.0, %v2799
        %v2801 = vpop.f32.mrb[0].mxu0
        %2802 = vmatprep.mubr.f32.mxu0 0.0
        %2803 = vmatmul.mubr.f32.gmra.mrb[0].mxu0 %v2630
        %v2804 = vpop.f32.mrb[0].mxu0
        %v2805 = vadd.f32 0.0, %v2804
        %v2806 = vpop.f32.mrb[0].mxu0
        %2807 = vmatprep.mubr.f32.mxu0 0.0
        %2808 = vmatmul.mubr.f32.gmra.mrb[0].mxu0 %v2633
        %v2809 = vpop.f32.mrb[0].mxu0
        %v2810 = vadd.f32 0.0, %v2809
        %v2811 = vpop.f32.mrb[0].mxu0
        %2812 = vmatprep.mubr.f32.mxu0 0.0
        %2813 = vmatmul.mubr.f32.gmra.mrb[0].mxu0 %v2636
        %v2814 = vpop.f32.mrb[0].mxu0
        %v2815 = vadd.f32 0.0, %v2814
        %v2816 = vpop.f32.mrb[0].mxu0
        %2817 = vmatprep.mubr.f32.mxu0 0.0
        %2818 = vmatmul.mubr.f32.gmra.mrb[0].mxu0 %v2639
        %v2819 = vpop.f32.mrb[0].mxu0
        %v2820 = vadd.f32 0.0, %v2819
        %v2821 = vpop.f32.mrb[0].mxu0
        %2822 = vmatprep.mubr.f32.mxu0 0.0
        %2823 = vmatmul.mubr.f32.gmra.mrb[0].mxu0 %v2642
        %v2824 = vpop.f32.mrb[0].mxu0
        %v2825 = vadd.f32 0.0, %v2824
        %v2826 = vpop.f32.mrb[0].mxu0
        %2827 = vmatprep.mubr.f32.mxu0 0.0
        %2828 = vmatmul.mubr.f32.gmra.mrb[0].mxu0 %v2645
        %v2829 = vpop.f32.mrb[0].mxu0
        %v2830 = vadd.f32 0.0, %v2829
        %v2831 = vpop.f32.mrb[0].mxu0
        %2832 = vmatprep.mubr.f32.mxu0 0.0
        %2833 = vmatmul.mubr.f32.gmra.mrb[0].mxu0 %v2648
        %v2834 = vpop.f32.mrb[0].mxu0
        %v2835 = vadd.f32 0.0, %v2834
        %v2836 = vpop.f32.mrb[0].mxu0
        %2837 = vmatprep.mubr.f32.mxu0 0.0
        %2838 = vmatmul.mubr.f32.gmra.mrb[0].mxu0 %v2651
        %v2839 = vpop.f32.mrb[0].mxu0
        %v2840 = vadd.f32 0.0, %v2839
        %v2841 = vpop.f32.mrb[0].mxu0
        %2842 = vmatprep.mubr.f32.mxu0 0.0
        %2843 = vmatmul.mubr.f32.gmra.mrb[0].mxu0 %v2654
        %v2844 = vpop.f32.mrb[0].mxu0
        %v2845 = vadd.f32 0.0, %v2844
        %v2846 = vpop.f32.mrb[0].mxu0
        %2847 = vmatprep.mubr.f32.mxu0 0.0
        %2848 = vmatmul.mubr.f32.gmra.mrb[0].mxu0 %v2657
        %v2849 = vpop.f32.mrb[0].mxu0
        %v2850 = vadd.f32 0.0, %v2849
        %v2851 = vpop.f32.mrb[0].mxu0
        %2852 = vmatprep.mubr.f32.mxu0 0.0
        %2853 = vmatmul.mubr.f32.gmra.mrb[0].mxu0 %v2660
        %v2854 = vpop.f32.mrb[0].mxu0
        %v2855 = vadd.f32 0.0, %v2854
        %v2856 = vpop.f32.mrb[0].mxu0
        %2857 = vmatprep.mubr.f32.mxu0 0.0
        %2858 = vmatmul.mubr.f32.gmra.mrb[0].mxu0 %v2663
        %v2859 = vpop.f32.mrb[0].mxu0
        %v2860 = vadd.f32 0.0, %v2859
        %v2861 = vpop.f32.mrb[0].mxu0
        %2862 = vmatprep.mubr.f32.mxu0 0.0
        %2863 = vmatmul.mubr.f32.gmra.mrb[0].mxu0 %v2666
        %v2864 = vpop.f32.mrb[0].mxu0
        %v2865 = vadd.f32 0.0, %v2864
        %v2866 = vpop.f32.mrb[0].mxu0
        %2867 = vmatprep.mubr.f32.mxu0 0.0
        %2868 = vmatmul.mubr.f32.gmra.mrb[0].mxu0 %v2669
        %v2869 = vpop.f32.mrb[0].mxu0
        %v2870 = vadd.f32 0.0, %v2869
        %v2871 = vpop.f32.mrb[0].mxu0
        %2872 = vmatprep.mubr.f32.mxu0 0.0
        %2873 = vmatmul.mubr.f32.gmra.mrb[0].mxu0 %v2672
        %v2874 = vpop.f32.mrb[0].mxu0
        %v2875 = vadd.f32 0.0, %v2874
        %v2876 = vpop.f32.mrb[0].mxu0
        %2877 = vmatprep.mubr.f32.mxu0 0.0
        %2878 = vmatmul.mubr.f32.gmra.mrb[0].mxu0 %v2675
        %v2879 = vpop.f32.mrb[0].mxu0
        %v2880 = vadd.f32 0.0, %v2879
        %v2881 = vpop.f32.mrb[0].mxu0
        %2882 = vmatprep.mubr.f32.mxu0 0.0
        %2883 = vmatmul.mubr.f32.gmra.mrb[0].mxu0 %v2678
        %v2884 = vpop.f32.mrb[0].mxu0
        %v2885 = vadd.f32 0.0, %v2884
        %v2886 = vpop.f32.mrb[0].mxu0
        %2887 = vmatprep.mubr.f32.mxu0 0.0
        %2888 = vmatmul.mubr.f32.gmra.mrb[0].mxu0 %v2681
        %v2889 = vpop.f32.mrb[0].mxu0
        %v2890 = vadd.f32 0.0, %v2889
        %v2891 = vpop.f32.mrb[0].mxu0
        %2892 = vmatprep.mubr.f32.mxu0 0.0
        %2893 = vmatmul.mubr.f32.gmra.mrb[0].mxu0 %v2684
        %v2894 = vpop.f32.mrb[0].mxu0
        %v2895 = vadd.f32 0.0, %v2894
        %v2896 = vpop.f32.mrb[0].mxu0
        %2897 = vmatprep.mubr.f32.mxu0 0.0
        %2898 = vmatmul.mubr.f32.gmra.mrb[0].mxu0 %v2687
        %v2899 = vpop.f32.mrb[0].mxu0
        %v2900 = vadd.f32 0.0, %v2899
        %v2901 = vpop.f32.mrb[0].mxu0
        %2902 = vmatprep.mubr.f32.mxu0 0.0
        %2903 = vmatmul.mubr.f32.gmra.mrb[0].mxu0 %v2690
        %v2904 = vpop.f32.mrb[0].mxu0
        %v2905 = vadd.f32 0.0, %v2904
        %v2906 = vpop.f32.mrb[0].mxu0
        %2907 = vmatprep.mubr.f32.mxu0 0.0
        %2908 = vmatmul.mubr.f32.gmra.mrb[0].mxu0 %v2693
        %v2909 = vpop.f32.mrb[0].mxu0
        %v2910 = vadd.f32 0.0, %v2909
        %v2911 = vpop.f32.mrb[0].mxu0
        %2912 = vmatprep.mubr.f32.mxu0 0.0
        %2913 = vmatmul.mubr.f32.gmra.mrb[0].mxu0 %v2696
        %v2914 = vpop.f32.mrb[0].mxu0
        %v2915 = vadd.f32 0.0, %v2914
        %v2916 = vpop.f32.mrb[0].mxu0
        %2917 = vmatprep.mubr.f32.mxu0 0.0
        %2918 = vmatmul.mubr.f32.gmra.mrb[0].mxu0 %v2699
        %v2919 = vpop.f32.mrb[0].mxu0
        %v2920 = vadd.f32 0.0, %v2919
        %v2921 = vpop.f32.mrb[0].mxu0
        %2922 = vmatprep.mubr.f32.mxu0 0.0
        %2923 = vmatmul.mubr.f32.gmra.mrb[0].mxu0 %v2702
        %v2924 = vpop.f32.mrb[0].mxu0
        %v2925 = vadd.f32 0.0, %v2924
        %v2926 = vpop.f32.mrb[0].mxu0
        %2927 = vmatprep.mubr.f32.mxu0 0.0
        %2928 = vmatmul.mubr.f32.gmra.mrb[0].mxu0 %v2705
        %v2929 = vpop.f32.mrb[0].mxu0
        %v2930 = vadd.f32 0.0, %v2929
        %v2931 = vpop.f32.mrb[0].mxu0
        %2932 = vmatprep.mubr.f32.mxu0 0.0
        %2933 = vmatmul.mubr.f32.gmra.mrb[0].mxu0 %v2708
        %v2934 = vpop.f32.mrb[0].mxu0
        %v2935 = vadd.f32 0.0, %v2934
        %v2936 = vpop.f32.mrb[0].mxu0
        %2937 = vdwg.mxu0
        %v2938 = vadd.f32 %v2545, %v2780
        %v2939 = vadd.f32 %v2546, %v2785
        %v2940 = vadd.f32 %v2547, %v2790
        %v2941 = vadd.f32 %v2548, %v2795
        %v2942 = vadd.f32 %v2549, %v2800
        %v2943 = vadd.f32 %v2550, %v2805
        %v2944 = vadd.f32 %v2551, %v2810
        %v2945 = vadd.f32 %v2552, %v2815
        %v2946 = vadd.f32 %v2553, %v2820
        %v2947 = vadd.f32 %v2554, %v2825
        %v2948 = vadd.f32 %v2555, %v2830
        %v2949 = vadd.f32 %v2556, %v2835
        %v2950 = vadd.f32 %v2557, %v2840
        %v2951 = vadd.f32 %v2558, %v2845
        %v2952 = vadd.f32 %v2559, %v2850
        %v2953 = vadd.f32 %v2560, %v2855
        %v2954 = vadd.f32 %v2561, %v2860
        %v2955 = vadd.f32 %v2562, %v2865
        %v2956 = vadd.f32 %v2563, %v2870
        %v2957 = vadd.f32 %v2564, %v2875
        %v2958 = vadd.f32 %v2565, %v2880
        %v2959 = vadd.f32 %v2566, %v2885
        %v2960 = vadd.f32 %v2567, %v2890
        %v2961 = vadd.f32 %v2568, %v2895
        %v2962 = vadd.f32 %v2569, %v2900
        %v2963 = vadd.f32 %v2570, %v2905
        %v2964 = vadd.f32 %v2571, %v2910
        %v2965 = vadd.f32 %v2572, %v2915
        %v2966 = vadd.f32 %v2573, %v2920
        %v2967 = vadd.f32 %v2574, %v2925
        %v2968 = vadd.f32 %v2575, %v2930
        %v2969 = vadd.f32 %v2576, %v2935
        %s2970 = scalar_lea.vmem [#allocation5], 64
        %v2971 = vld [vmem:[%s2970] sm:$0xff]
        %v2972 = vld [vmem:[%s2970 + $0x8] sm:$0xff]
        %v2973 = vld [vmem:[%s2970 + $0x10] sm:$0xff]
        %v2974 = vld [vmem:[%s2970 + $0x18] sm:$0xff]
        %v2975 = vld [vmem:[%s2970 + $0x20] sm:$0xff]
        %v2976 = vld [vmem:[%s2970 + $0x28] sm:$0xff]
        %v2977 = vld [vmem:[%s2970 + $0x30] sm:$0xff]
        %v2978 = vld [vmem:[%s2970 + $0x38] sm:$0xff]
        %v2979 = vld [vmem:[%s2970 + $0x40] sm:$0xff]
        %v2980 = vld [vmem:[%s2970 + $0x48] sm:$0xff]
        %v2981 = vld [vmem:[%s2970 + $0x50] sm:$0xff]
        %v2982 = vld [vmem:[%s2970 + $0x58] sm:$0xff]
        %v2983 = vld [vmem:[%s2970 + $0x60] sm:$0xff]
        %v2984 = vld [vmem:[%s2970 + $0x68] sm:$0xff]
        %v2985 = vld [vmem:[%s2970 + $0x70] sm:$0xff]
        %v2986 = vld [vmem:[%s2970 + $0x78] sm:$0xff]
        %v2987 = vld [vmem:[%s2970 + $0x80] sm:$0xff]
        %v2988 = vld [vmem:[%s2970 + $0x88] sm:$0xff]
        %v2989 = vld [vmem:[%s2970 + $0x90] sm:$0xff]
        %v2990 = vld [vmem:[%s2970 + $0x98] sm:$0xff]
        %v2991 = vld [vmem:[%s2970 + $0xa0] sm:$0xff]
        %v2992 = vld [vmem:[%s2970 + $0xa8] sm:$0xff]
        %v2993 = vld [vmem:[%s2970 + $0xb0] sm:$0xff]
        %v2994 = vld [vmem:[%s2970 + $0xb8] sm:$0xff]
        %v2995 = vld [vmem:[%s2970 + $0xc0] sm:$0xff]
        %v2996 = vld [vmem:[%s2970 + $0xc8] sm:$0xff]
        %v2997 = vld [vmem:[%s2970 + $0xd0] sm:$0xff]
        %v2998 = vld [vmem:[%s2970 + $0xd8] sm:$0xff]
        %v2999 = vld [vmem:[%s2970 + $0xe0] sm:$0xff]
        %v3000 = vld [vmem:[%s2970 + $0xe8] sm:$0xff]
        %v3001 = vld [vmem:[%s2970 + $0xf0] sm:$0xff]
        %v3002 = vld [vmem:[%s2970 + $0xf8] sm:$0xff]
        %s3003 = scalar_lea.vmem %s1, 96
        %v3004 = vld [vmem:[%s3003] sm:$0xff]
        %v3005 = vld [vmem:[%s3003 + $0x8] sm:$0xff]
        %v3006 = vld [vmem:[%s3003 + $0x10] sm:$0xf]
        %v3008 = vsel %vm1422, %v2971, 0
        %v3011 = vsel %vm1422, %v2972, 0
        %v3014 = vsel %vm1422, %v2973, 0
        %v3017 = vsel %vm1422, %v2974, 0
        %v3020 = vsel %vm1422, %v2975, 0
        %v3023 = vsel %vm1422, %v2976, 0
        %v3026 = vsel %vm1422, %v2977, 0
        %v3029 = vsel %vm1422, %v2978, 0
        %v3032 = vsel %vm1422, %v2979, 0
        %v3035 = vsel %vm1422, %v2980, 0
        %v3038 = vsel %vm1422, %v2981, 0
        %v3041 = vsel %vm1422, %v2982, 0
        %v3044 = vsel %vm1422, %v2983, 0
        %v3047 = vsel %vm1422, %v2984, 0
        %v3050 = vsel %vm1422, %v2985, 0
        %v3053 = vsel %vm1422, %v2986, 0
        %v3056 = vsel %vm1422, %v2987, 0
        %v3059 = vsel %vm1422, %v2988, 0
        %v3062 = vsel %vm1422, %v2989, 0
        %v3065 = vsel %vm1422, %v2990, 0
        %v3068 = vsel %vm1422, %v2991, 0
        %v3071 = vsel %vm1422, %v2992, 0
        %v3074 = vsel %vm1422, %v2993, 0
        %v3077 = vsel %vm1422, %v2994, 0
        %v3080 = vsel %vm1422, %v2995, 0
        %v3083 = vsel %vm1422, %v2996, 0
        %v3086 = vsel %vm1422, %v2997, 0
        %v3089 = vsel %vm1422, %v2998, 0
        %v3092 = vsel %vm1422, %v2999, 0
        %v3095 = vsel %vm1422, %v3000, 0
        %v3098 = vsel %vm1422, %v3001, 0
        %v3101 = vsel %vm1422, %v3002, 0
        %v3104 = vsel %vm1631, %v3006, 0
        %3106 = vmatprep.subr.mxu0 0.0
        %3107 = vmatpush1.msra.mxu0 %v3004
        %3108 = vmatprep.subr.mxu0 0.0
        %3109 = vmatpush1.msra.mxu0 %v3005
        %3110 = vmatprep.subr.mxu0 0.0
        %3111 = vmatpush1.msra.mxu0 %v3104
        %3112 = vmatprep.subr.mxu0 0.0
        %3113 = vmatpush1.msra.mxu0 0.0
        %3114 = vmatprep.subr.mxu0 0.0
        %3115 = vmatpush1.msra.mxu0 0.0
        %3116 = vmatprep.subr.mxu0 0.0
        %3117 = vmatpush1.msra.mxu0 0.0
        %3118 = vmatprep.subr.mxu0 0.0
        %3119 = vmatpush1.msra.mxu0 0.0
        %3120 = vmatprep.subr.mxu0 0.0
        %3121 = vmatpush1.msra.mxu0 0.0
        %3122 = vmatprep.subr.mxu0 0.0
        %3123 = vmatpush1.msra.mxu0 0.0
        %3124 = vmatprep.subr.mxu0 0.0
        %3125 = vmatpush1.msra.mxu0 0.0
        %3126 = vmatprep.subr.mxu0 0.0
        %3127 = vmatpush1.msra.mxu0 0.0
        %3128 = vmatprep.subr.mxu0 0.0
        %3129 = vmatpush1.msra.mxu0 0.0
        %3130 = vmatprep.subr.mxu0 0.0
        %3131 = vmatpush1.msra.mxu0 0.0
        %3132 = vmatprep.subr.mxu0 0.0
        %3133 = vmatpush1.msra.mxu0 0.0
        %3134 = vmatprep.subr.mxu0 0.0
        %3135 = vmatpush1.msra.mxu0 0.0
        %3136 = vmatprep.subr.mxu0 0.0
        %3137 = vmatpush1.msra.mxu0 0.0
        %3138 = vmatprep.subr.mxu0 0.0
        %3139 = vmatpush1.msra.mxu0 0.0
        %3140 = vmatprep.subr.mxu0 0.0
        %3141 = vmatpush1.msra.mxu0 0.0
        %3142 = vmatprep.subr.mxu0 0.0
        %3143 = vmatpush1.msra.mxu0 0.0
        %3144 = vmatprep.subr.mxu0 0.0
        %3145 = vmatpush1.msra.mxu0 0.0
        %3146 = vmatprep.subr.mxu0 0.0
        %3147 = vmatpush1.msra.mxu0 0.0
        %3148 = vmatprep.subr.mxu0 0.0
        %3149 = vmatpush1.msra.mxu0 0.0
        %3150 = vmatprep.subr.mxu0 0.0
        %3151 = vmatpush1.msra.mxu0 0.0
        %3152 = vmatprep.subr.mxu0 0.0
        %3153 = vmatpush1.msra.mxu0 0.0
        %3154 = vmatprep.subr.mxu0 0.0
        %3155 = vmatpush1.msra.mxu0 0.0
        %3156 = vmatprep.subr.mxu0 0.0
        %3157 = vmatpush1.msra.mxu0 0.0
        %3158 = vmatprep.subr.mxu0 0.0
        %3159 = vmatpush1.msra.mxu0 0.0
        %3160 = vmatprep.subr.mxu0 0.0
        %3161 = vmatpush1.msra.mxu0 0.0
        %3162 = vmatprep.subr.mxu0 0.0
        %3163 = vmatpush1.msra.mxu0 0.0
        %3164 = vmatprep.subr.mxu0 0.0
        %3165 = vmatpush1.msra.mxu0 0.0
        %3166 = vmatprep.subr.mxu0 0.0
        %3167 = vmatpush1.msra.mxu0 0.0
        %3168 = vmatprep.subr.mxu0 0.0
        %3169 = vmatpush1.msra.mxu0 0.0
        %3170 = vmatprep.mubr.f32.mxu0 0.0
        %3171 = vmatmul.mubr.f32.gmra.mrb[0].mxu0 %v3008
        %v3172 = vpop.f32.mrb[0].mxu0
        %v3173 = vadd.f32 0.0, %v3172
        %v3174 = vpop.f32.mrb[0].mxu0
        %3175 = vmatprep.mubr.f32.mxu0 0.0
        %3176 = vmatmul.mubr.f32.gmra.mrb[0].mxu0 %v3011
        %v3177 = vpop.f32.mrb[0].mxu0
        %v3178 = vadd.f32 0.0, %v3177
        %v3179 = vpop.f32.mrb[0].mxu0
        %3180 = vmatprep.mubr.f32.mxu0 0.0
        %3181 = vmatmul.mubr.f32.gmra.mrb[0].mxu0 %v3014
        %v3182 = vpop.f32.mrb[0].mxu0
        %v3183 = vadd.f32 0.0, %v3182
        %v3184 = vpop.f32.mrb[0].mxu0
        %3185 = vmatprep.mubr.f32.mxu0 0.0
        %3186 = vmatmul.mubr.f32.gmra.mrb[0].mxu0 %v3017
        %v3187 = vpop.f32.mrb[0].mxu0
        %v3188 = vadd.f32 0.0, %v3187
        %v3189 = vpop.f32.mrb[0].mxu0
        %3190 = vmatprep.mubr.f32.mxu0 0.0
        %3191 = vmatmul.mubr.f32.gmra.mrb[0].mxu0 %v3020
        %v3192 = vpop.f32.mrb[0].mxu0
        %v3193 = vadd.f32 0.0, %v3192
        %v3194 = vpop.f32.mrb[0].mxu0
        %3195 = vmatprep.mubr.f32.mxu0 0.0
        %3196 = vmatmul.mubr.f32.gmra.mrb[0].mxu0 %v3023
        %v3197 = vpop.f32.mrb[0].mxu0
        %v3198 = vadd.f32 0.0, %v3197
        %v3199 = vpop.f32.mrb[0].mxu0
        %3200 = vmatprep.mubr.f32.mxu0 0.0
        %3201 = vmatmul.mubr.f32.gmra.mrb[0].mxu0 %v3026
        %v3202 = vpop.f32.mrb[0].mxu0
        %v3203 = vadd.f32 0.0, %v3202
        %v3204 = vpop.f32.mrb[0].mxu0
        %3205 = vmatprep.mubr.f32.mxu0 0.0
        %3206 = vmatmul.mubr.f32.gmra.mrb[0].mxu0 %v3029
        %v3207 = vpop.f32.mrb[0].mxu0
        %v3208 = vadd.f32 0.0, %v3207
        %v3209 = vpop.f32.mrb[0].mxu0
        %3210 = vmatprep.mubr.f32.mxu0 0.0
        %3211 = vmatmul.mubr.f32.gmra.mrb[0].mxu0 %v3032
        %v3212 = vpop.f32.mrb[0].mxu0
        %v3213 = vadd.f32 0.0, %v3212
        %v3214 = vpop.f32.mrb[0].mxu0
        %3215 = vmatprep.mubr.f32.mxu0 0.0
        %3216 = vmatmul.mubr.f32.gmra.mrb[0].mxu0 %v3035
        %v3217 = vpop.f32.mrb[0].mxu0
        %v3218 = vadd.f32 0.0, %v3217
        %v3219 = vpop.f32.mrb[0].mxu0
        %3220 = vmatprep.mubr.f32.mxu0 0.0
        %3221 = vmatmul.mubr.f32.gmra.mrb[0].mxu0 %v3038
        %v3222 = vpop.f32.mrb[0].mxu0
        %v3223 = vadd.f32 0.0, %v3222
        %v3224 = vpop.f32.mrb[0].mxu0
        %3225 = vmatprep.mubr.f32.mxu0 0.0
        %3226 = vmatmul.mubr.f32.gmra.mrb[0].mxu0 %v3041
        %v3227 = vpop.f32.mrb[0].mxu0
        %v3228 = vadd.f32 0.0, %v3227
        %v3229 = vpop.f32.mrb[0].mxu0
        %3230 = vmatprep.mubr.f32.mxu0 0.0
        %3231 = vmatmul.mubr.f32.gmra.mrb[0].mxu0 %v3044
        %v3232 = vpop.f32.mrb[0].mxu0
        %v3233 = vadd.f32 0.0, %v3232
        %v3234 = vpop.f32.mrb[0].mxu0
        %3235 = vmatprep.mubr.f32.mxu0 0.0
        %3236 = vmatmul.mubr.f32.gmra.mrb[0].mxu0 %v3047
        %v3237 = vpop.f32.mrb[0].mxu0
        %v3238 = vadd.f32 0.0, %v3237
        %v3239 = vpop.f32.mrb[0].mxu0
        %3240 = vmatprep.mubr.f32.mxu0 0.0
        %3241 = vmatmul.mubr.f32.gmra.mrb[0].mxu0 %v3050
        %v3242 = vpop.f32.mrb[0].mxu0
        %v3243 = vadd.f32 0.0, %v3242
        %v3244 = vpop.f32.mrb[0].mxu0
        %3245 = vmatprep.mubr.f32.mxu0 0.0
        %3246 = vmatmul.mubr.f32.gmra.mrb[0].mxu0 %v3053
        %v3247 = vpop.f32.mrb[0].mxu0
        %v3248 = vadd.f32 0.0, %v3247
        %v3249 = vpop.f32.mrb[0].mxu0
        %3250 = vmatprep.mubr.f32.mxu0 0.0
        %3251 = vmatmul.mubr.f32.gmra.mrb[0].mxu0 %v3056
        %v3252 = vpop.f32.mrb[0].mxu0
        %v3253 = vadd.f32 0.0, %v3252
        %v3254 = vpop.f32.mrb[0].mxu0
        %3255 = vmatprep.mubr.f32.mxu0 0.0
        %3256 = vmatmul.mubr.f32.gmra.mrb[0].mxu0 %v3059
        %v3257 = vpop.f32.mrb[0].mxu0
        %v3258 = vadd.f32 0.0, %v3257
        %v3259 = vpop.f32.mrb[0].mxu0
        %3260 = vmatprep.mubr.f32.mxu0 0.0
        %3261 = vmatmul.mubr.f32.gmra.mrb[0].mxu0 %v3062
        %v3262 = vpop.f32.mrb[0].mxu0
        %v3263 = vadd.f32 0.0, %v3262
        %v3264 = vpop.f32.mrb[0].mxu0
        %3265 = vmatprep.mubr.f32.mxu0 0.0
        %3266 = vmatmul.mubr.f32.gmra.mrb[0].mxu0 %v3065
        %v3267 = vpop.f32.mrb[0].mxu0
        %v3268 = vadd.f32 0.0, %v3267
        %v3269 = vpop.f32.mrb[0].mxu0
        %3270 = vmatprep.mubr.f32.mxu0 0.0
        %3271 = vmatmul.mubr.f32.gmra.mrb[0].mxu0 %v3068
        %v3272 = vpop.f32.mrb[0].mxu0
        %v3273 = vadd.f32 0.0, %v3272
        %v3274 = vpop.f32.mrb[0].mxu0
        %3275 = vmatprep.mubr.f32.mxu0 0.0
        %3276 = vmatmul.mubr.f32.gmra.mrb[0].mxu0 %v3071
        %v3277 = vpop.f32.mrb[0].mxu0
        %v3278 = vadd.f32 0.0, %v3277
        %v3279 = vpop.f32.mrb[0].mxu0
        %3280 = vmatprep.mubr.f32.mxu0 0.0
        %3281 = vmatmul.mubr.f32.gmra.mrb[0].mxu0 %v3074
        %v3282 = vpop.f32.mrb[0].mxu0
        %v3283 = vadd.f32 0.0, %v3282
        %v3284 = vpop.f32.mrb[0].mxu0
        %3285 = vmatprep.mubr.f32.mxu0 0.0
        %3286 = vmatmul.mubr.f32.gmra.mrb[0].mxu0 %v3077
        %v3287 = vpop.f32.mrb[0].mxu0
        %v3288 = vadd.f32 0.0, %v3287
        %v3289 = vpop.f32.mrb[0].mxu0
        %3290 = vmatprep.mubr.f32.mxu0 0.0
        %3291 = vmatmul.mubr.f32.gmra.mrb[0].mxu0 %v3080
        %v3292 = vpop.f32.mrb[0].mxu0
        %v3293 = vadd.f32 0.0, %v3292
        %v3294 = vpop.f32.mrb[0].mxu0
        %3295 = vmatprep.mubr.f32.mxu0 0.0
        %3296 = vmatmul.mubr.f32.gmra.mrb[0].mxu0 %v3083
        %v3297 = vpop.f32.mrb[0].mxu0
        %v3298 = vadd.f32 0.0, %v3297
        %v3299 = vpop.f32.mrb[0].mxu0
        %3300 = vmatprep.mubr.f32.mxu0 0.0
        %3301 = vmatmul.mubr.f32.gmra.mrb[0].mxu0 %v3086
        %v3302 = vpop.f32.mrb[0].mxu0
        %v3303 = vadd.f32 0.0, %v3302
        %v3304 = vpop.f32.mrb[0].mxu0
        %3305 = vmatprep.mubr.f32.mxu0 0.0
        %3306 = vmatmul.mubr.f32.gmra.mrb[0].mxu0 %v3089
        %v3307 = vpop.f32.mrb[0].mxu0
        %v3308 = vadd.f32 0.0, %v3307
        %v3309 = vpop.f32.mrb[0].mxu0
        %3310 = vmatprep.mubr.f32.mxu0 0.0
        %3311 = vmatmul.mubr.f32.gmra.mrb[0].mxu0 %v3092
        %v3312 = vpop.f32.mrb[0].mxu0
        %v3313 = vadd.f32 0.0, %v3312
        %v3314 = vpop.f32.mrb[0].mxu0
        %3315 = vmatprep.mubr.f32.mxu0 0.0
        %3316 = vmatmul.mubr.f32.gmra.mrb[0].mxu0 %v3095
        %v3317 = vpop.f32.mrb[0].mxu0
        %v3318 = vadd.f32 0.0, %v3317
        %v3319 = vpop.f32.mrb[0].mxu0
        %3320 = vmatprep.mubr.f32.mxu0 0.0
        %3321 = vmatmul.mubr.f32.gmra.mrb[0].mxu0 %v3098
        %v3322 = vpop.f32.mrb[0].mxu0
        %v3323 = vadd.f32 0.0, %v3322
        %v3324 = vpop.f32.mrb[0].mxu0
        %3325 = vmatprep.mubr.f32.mxu0 0.0
        %3326 = vmatmul.mubr.f32.gmra.mrb[0].mxu0 %v3101
        %v3327 = vpop.f32.mrb[0].mxu0
        %v3328 = vadd.f32 0.0, %v3327
        %v3329 = vpop.f32.mrb[0].mxu0
        %3330 = vdwg.mxu0
        %v3331 = vadd.f32 %v2938, %v3173
        %v3332 = vadd.f32 %v2939, %v3178
        %v3333 = vadd.f32 %v2940, %v3183
        %v3334 = vadd.f32 %v2941, %v3188
        %v3335 = vadd.f32 %v2942, %v3193
        %v3336 = vadd.f32 %v2943, %v3198
        %v3337 = vadd.f32 %v2944, %v3203
        %v3338 = vadd.f32 %v2945, %v3208
        %v3339 = vadd.f32 %v2946, %v3213
        %v3340 = vadd.f32 %v2947, %v3218
        %v3341 = vadd.f32 %v2948, %v3223
        %v3342 = vadd.f32 %v2949, %v3228
        %v3343 = vadd.f32 %v2950, %v3233
        %v3344 = vadd.f32 %v2951, %v3238
        %v3345 = vadd.f32 %v2952, %v3243
        %v3346 = vadd.f32 %v2953, %v3248
        %v3347 = vadd.f32 %v2954, %v3253
        %v3348 = vadd.f32 %v2955, %v3258
        %v3349 = vadd.f32 %v2956, %v3263
        %v3350 = vadd.f32 %v2957, %v3268
        %v3351 = vadd.f32 %v2958, %v3273
        %v3352 = vadd.f32 %v2959, %v3278
        %v3353 = vadd.f32 %v2960, %v3283
        %v3354 = vadd.f32 %v2961, %v3288
        %v3355 = vadd.f32 %v2962, %v3293
        %v3356 = vadd.f32 %v2963, %v3298
        %v3357 = vadd.f32 %v2964, %v3303
        %v3358 = vadd.f32 %v2965, %v3308
        %v3359 = vadd.f32 %v2966, %v3313
        %v3360 = vadd.f32 %v2967, %v3318
        %v3361 = vadd.f32 %v2968, %v3323
        %v3362 = vadd.f32 %v2969, %v3328
        %v3363 = vld [vmem:[%s2] sm:$0x1]
        %v3365 = vlaneseq
        %v3366 = vshrl.u32 %v3365, 7
        %v3367 = vsub.s32 0, %v3366
        %v3368 = vrot.slane %v3363, %v3367
        %v3370 = vadd.f32 %v3331, %v3368
        %v3371 = vadd.f32 %v3332, %v3368
        %v3372 = vadd.f32 %v3333, %v3368
        %v3373 = vadd.f32 %v3334, %v3368
        %v3374 = vadd.f32 %v3335, %v3368
        %v3375 = vadd.f32 %v3336, %v3368
        %v3376 = vadd.f32 %v3337, %v3368
        %v3377 = vadd.f32 %v3338, %v3368
        %v3378 = vadd.f32 %v3339, %v3368
        %v3379 = vadd.f32 %v3340, %v3368
        %v3380 = vadd.f32 %v3341, %v3368
        %v3381 = vadd.f32 %v3342, %v3368
        %v3382 = vadd.f32 %v3343, %v3368
        %v3383 = vadd.f32 %v3344, %v3368
        %v3384 = vadd.f32 %v3345, %v3368
        %v3385 = vadd.f32 %v3346, %v3368
        %v3386 = vadd.f32 %v3347, %v3368
        %v3387 = vadd.f32 %v3348, %v3368
        %v3388 = vadd.f32 %v3349, %v3368
        %v3389 = vadd.f32 %v3350, %v3368
        %v3390 = vadd.f32 %v3351, %v3368
        %v3391 = vadd.f32 %v3352, %v3368
        %v3392 = vadd.f32 %v3353, %v3368
        %v3393 = vadd.f32 %v3354, %v3368
        %v3394 = vadd.f32 %v3355, %v3368
        %v3395 = vadd.f32 %v3356, %v3368
        %v3396 = vadd.f32 %v3357, %v3368
        %v3397 = vadd.f32 %v3358, %v3368
        %v3398 = vadd.f32 %v3359, %v3368
        %v3399 = vadd.f32 %v3360, %v3368
        %v3400 = vadd.f32 %v3361, %v3368
        %v3401 = vadd.f32 %v3362, %v3368
        %v3402 = vmax.f32 %v3370, 0.0
        %v3403 = vmax.f32 %v3371, 0.0
        %v3404 = vmax.f32 %v3372, 0.0
        %v3405 = vmax.f32 %v3373, 0.0
        %v3406 = vmax.f32 %v3374, 0.0
        %v3407 = vmax.f32 %v3375, 0.0
        %v3408 = vmax.f32 %v3376, 0.0
        %v3409 = vmax.f32 %v3377, 0.0
        %v3410 = vmax.f32 %v3378, 0.0
        %v3411 = vmax.f32 %v3379, 0.0
        %v3412 = vmax.f32 %v3380, 0.0
        %v3413 = vmax.f32 %v3381, 0.0
        %v3414 = vmax.f32 %v3382, 0.0
        %v3415 = vmax.f32 %v3383, 0.0
        %v3416 = vmax.f32 %v3384, 0.0
        %v3417 = vmax.f32 %v3385, 0.0
        %v3418 = vmax.f32 %v3386, 0.0
        %v3419 = vmax.f32 %v3387, 0.0
        %v3420 = vmax.f32 %v3388, 0.0
        %v3421 = vmax.f32 %v3389, 0.0
        %v3422 = vmax.f32 %v3390, 0.0
        %v3423 = vmax.f32 %v3391, 0.0
        %v3424 = vmax.f32 %v3392, 0.0
        %v3425 = vmax.f32 %v3393, 0.0
        %v3426 = vmax.f32 %v3394, 0.0
        %v3427 = vmax.f32 %v3395, 0.0
        %v3428 = vmax.f32 %v3396, 0.0
        %v3429 = vmax.f32 %v3397, 0.0
        %v3430 = vmax.f32 %v3398, 0.0
        %v3431 = vmax.f32 %v3399, 0.0
        %v3432 = vmax.f32 %v3400, 0.0
        %v3433 = vmax.f32 %v3401, 0.0
        %3434 = vst.msk [vmem:[#allocation8] sm:$0xff] %vm1299, %v3402
        %3435 = vst.msk [vmem:[#allocation8 + $0x8] sm:$0xff] %vm1299, %v3403
        %3436 = vst.msk [vmem:[#allocation8 + $0x10] sm:$0xff] %vm1299, %v3404
        %3437 = vst.msk [vmem:[#allocation8 + $0x18] sm:$0xff] %vm1299, %v3405
        %3438 = vst.msk [vmem:[#allocation8 + $0x20] sm:$0xff] %vm1299, %v3406
        %3439 = vst.msk [vmem:[#allocation8 + $0x28] sm:$0xff] %vm1299, %v3407
        %3440 = vst.msk [vmem:[#allocation8 + $0x30] sm:$0xff] %vm1299, %v3408
        %3441 = vst.msk [vmem:[#allocation8 + $0x38] sm:$0xff] %vm1299, %v3409
        %3442 = vst.msk [vmem:[#allocation8 + $0x40] sm:$0xff] %vm1299, %v3410
        %3443 = vst.msk [vmem:[#allocation8 + $0x48] sm:$0xff] %vm1299, %v3411
        %3444 = vst.msk [vmem:[#allocation8 + $0x50] sm:$0xff] %vm1299, %v3412
        %3445 = vst.msk [vmem:[#allocation8 + $0x58] sm:$0xff] %vm1299, %v3413
        %3446 = vst.msk [vmem:[#allocation8 + $0x60] sm:$0xff] %vm1299, %v3414
        %3447 = vst.msk [vmem:[#allocation8 + $0x68] sm:$0xff] %vm1299, %v3415
        %3448 = vst.msk [vmem:[#allocation8 + $0x70] sm:$0xff] %vm1299, %v3416
        %3449 = vst.msk [vmem:[#allocation8 + $0x78] sm:$0xff] %vm1299, %v3417
        %3450 = vst.msk [vmem:[#allocation8 + $0x80] sm:$0xff] %vm1299, %v3418
        %3451 = vst.msk [vmem:[#allocation8 + $0x88] sm:$0xff] %vm1299, %v3419
        %3452 = vst.msk [vmem:[#allocation8 + $0x90] sm:$0xff] %vm1299, %v3420
        %3453 = vst.msk [vmem:[#allocation8 + $0x98] sm:$0xff] %vm1299, %v3421
        %3454 = vst.msk [vmem:[#allocation8 + $0xa0] sm:$0xff] %vm1299, %v3422
        %3455 = vst.msk [vmem:[#allocation8 + $0xa8] sm:$0xff] %vm1299, %v3423
        %3456 = vst.msk [vmem:[#allocation8 + $0xb0] sm:$0xff] %vm1299, %v3424
        %3457 = vst.msk [vmem:[#allocation8 + $0xb8] sm:$0xff] %vm1299, %v3425
        %3458 = vst.msk [vmem:[#allocation8 + $0xc0] sm:$0xff] %vm1299, %v3426
        %3459 = vst.msk [vmem:[#allocation8 + $0xc8] sm:$0xff] %vm1299, %v3427
        %3460 = vst.msk [vmem:[#allocation8 + $0xd0] sm:$0xff] %vm1299, %v3428
        %3461 = vst.msk [vmem:[#allocation8 + $0xd8] sm:$0xff] %vm1299, %v3429
        %3462 = vst.msk [vmem:[#allocation8 + $0xe0] sm:$0xff] %vm1299, %v3430
        %3463 = vst.msk [vmem:[#allocation8 + $0xe8] sm:$0xff] %vm1299, %v3431
        %3464 = vst.msk [vmem:[#allocation8 + $0xf0] sm:$0xff] %vm1299, %v3432
        %3465 = vst.msk [vmem:[#allocation8 + $0xf8] sm:$0xff] %vm1299, %v3433
        %3466 = vst.msk [vmem:[#allocation3] sm:$0xff] %vm1299, 0.0
        %vm3467 = vcmask 60416
        %3468 = vst.msk [vmem:[#allocation3 + $0x8] sm:$0xf] %vm3467, 0.0
        %3469 = vst.msk [vmem:[#allocation3 + $0x10] sm:$0xff] %vm1299, 0.0
        %3470 = vst.msk [vmem:[#allocation3 + $0x18] sm:$0xf] %vm3467, 0.0
        %3471 = vst.msk [vmem:[#allocation3 + $0x20] sm:$0xff] %vm1299, 0.0
        %3472 = vst.msk [vmem:[#allocation3 + $0x28] sm:$0xf] %vm3467, 0.0
        %3473 = vst.msk [vmem:[#allocation3 + $0x30] sm:$0xff] %vm1299, 0.0
        %3474 = vst.msk [vmem:[#allocation3 + $0x38] sm:$0xf] %vm3467, 0.0
        %3475 = vst.msk [vmem:[#allocation3 + $0x40] sm:$0xff] %vm1299, 0.0
        %3476 = vst.msk [vmem:[#allocation3 + $0x48] sm:$0xf] %vm3467, 0.0
        %3477 = vst.msk [vmem:[#allocation3 + $0x50] sm:$0xff] %vm1299, 0.0
        %3478 = vst.msk [vmem:[#allocation3 + $0x58] sm:$0xf] %vm3467, 0.0
        %3479 = vst.msk [vmem:[#allocation3 + $0x60] sm:$0xff] %vm1299, 0.0
        %3480 = vst.msk [vmem:[#allocation3 + $0x68] sm:$0xf] %vm3467, 0.0
        %3481 = vst.msk [vmem:[#allocation3 + $0x70] sm:$0xff] %vm1299, 0.0
        %3482 = vst.msk [vmem:[#allocation3 + $0x78] sm:$0xf] %vm3467, 0.0
        %3483 = vst.msk [vmem:[#allocation3 + $0x80] sm:$0xff] %vm1299, 0.0
        %3484 = vst.msk [vmem:[#allocation3 + $0x88] sm:$0xf] %vm3467, 0.0
        %3485 = vst.msk [vmem:[#allocation3 + $0x90] sm:$0xff] %vm1299, 0.0
        %3486 = vst.msk [vmem:[#allocation3 + $0x98] sm:$0xf] %vm3467, 0.0
        %3487 = vst.msk [vmem:[#allocation3 + $0xa0] sm:$0xff] %vm1299, 0.0
        %3488 = vst.msk [vmem:[#allocation3 + $0xa8] sm:$0xf] %vm3467, 0.0
        %3489 = vst.msk [vmem:[#allocation3 + $0xb0] sm:$0xff] %vm1299, 0.0
        %3490 = vst.msk [vmem:[#allocation3 + $0xb8] sm:$0xf] %vm3467, 0.0
        %v3491 = vld [vmem:[#allocation8] ss:$2 sm:$0xff]
        %s3492 = scalar_lea.vmem [#allocation8], 32
        %v3493 = vld [vmem:[%s3492] ss:$2 sm:$0xff]
        %s3494 = scalar_lea.vmem [#allocation8], 64
        %v3495 = vld [vmem:[%s3494] ss:$2 sm:$0xff]
        %s3496 = scalar_lea.vmem [#allocation8], 96
        %v3497 = vld [vmem:[%s3496] ss:$2 sm:$0xff]
        %s3498 = scalar_lea.vmem [#allocation8], 128
        %v3499 = vld [vmem:[%s3498] ss:$2 sm:$0xff]
        %s3500 = scalar_lea.vmem [#allocation8], 160
        %v3501 = vld [vmem:[%s3500] ss:$2 sm:$0xff]
        %s3502 = scalar_lea.vmem [#allocation8], 192
        %v3503 = vld [vmem:[%s3502] ss:$2 sm:$0xff]
        %s3504 = scalar_lea.vmem [#allocation8], 224
        %v3505 = vld [vmem:[%s3504] ss:$2 sm:$0xff]
        %s3506 = scalar_lea.vmem [#allocation8], 1
        %v3507 = vld [vmem:[%s3506] ss:$2 sm:$0xff]
        %s3508 = scalar_lea.vmem [#allocation8], 33
        %v3509 = vld [vmem:[%s3508] ss:$2 sm:$0xff]
        %s3510 = scalar_lea.vmem [#allocation8], 65
        %v3511 = vld [vmem:[%s3510] ss:$2 sm:$0xff]
        %s3512 = scalar_lea.vmem [#allocation8], 97
        %v3513 = vld [vmem:[%s3512] ss:$2 sm:$0xff]
        %s3514 = scalar_lea.vmem [#allocation8], 129
        %v3515 = vld [vmem:[%s3514] ss:$2 sm:$0xff]
        %s3516 = scalar_lea.vmem [#allocation8], 161
        %v3517 = vld [vmem:[%s3516] ss:$2 sm:$0xff]
        %s3518 = scalar_lea.vmem [#allocation8], 193
        %v3519 = vld [vmem:[%s3518] ss:$2 sm:$0xff]
        %s3520 = scalar_lea.vmem [#allocation8], 225
        %v3521 = vld [vmem:[%s3520] ss:$2 sm:$0xff]
        %s3522 = scalar_lea.vmem [#allocation8], 16
        %v3523 = vld [vmem:[%s3522] ss:$2 sm:$0xff]
        %s3524 = scalar_lea.vmem %s3522, 32 [#allocation8]
        %v3525 = vld [vmem:[%s3524] ss:$2 sm:$0xff]
        %s3526 = scalar_lea.vmem %s3522, 64 [#allocation8]
        %v3527 = vld [vmem:[%s3526] ss:$2 sm:$0xff]
        %s3528 = scalar_lea.vmem %s3522, 96 [#allocation8]
        %v3529 = vld [vmem:[%s3528] ss:$2 sm:$0xff]
        %s3530 = scalar_lea.vmem %s3522, 128 [#allocation8]
        %v3531 = vld [vmem:[%s3530] ss:$2 sm:$0xff]
        %s3532 = scalar_lea.vmem %s3522, 160 [#allocation8]
        %v3533 = vld [vmem:[%s3532] ss:$2 sm:$0xff]
        %s3534 = scalar_lea.vmem %s3522, 192 [#allocation8]
        %v3535 = vld [vmem:[%s3534] ss:$2 sm:$0xff]
        %s3536 = scalar_lea.vmem %s3522, 224 [#allocation8]
        %v3537 = vld [vmem:[%s3536] ss:$2 sm:$0xff]
        %s3538 = scalar_lea.vmem %s3522, 1 [#allocation8]
        %v3539 = vld [vmem:[%s3538] ss:$2 sm:$0xff]
        %s3540 = scalar_lea.vmem %s3522, 33 [#allocation8]
        %v3541 = vld [vmem:[%s3540] ss:$2 sm:$0xff]
        %s3542 = scalar_lea.vmem %s3522, 65 [#allocation8]
        %v3543 = vld [vmem:[%s3542] ss:$2 sm:$0xff]
        %s3544 = scalar_lea.vmem %s3522, 97 [#allocation8]
        %v3545 = vld [vmem:[%s3544] ss:$2 sm:$0xff]
        %s3546 = scalar_lea.vmem %s3522, 129 [#allocation8]
        %v3547 = vld [vmem:[%s3546] ss:$2 sm:$0xff]
        %s3548 = scalar_lea.vmem %s3522, 161 [#allocation8]
        %v3549 = vld [vmem:[%s3548] ss:$2 sm:$0xff]
        %s3550 = scalar_lea.vmem %s3522, 193 [#allocation8]
        %v3551 = vld [vmem:[%s3550] ss:$2 sm:$0xff]
        %s3552 = scalar_lea.vmem %s3522, 225 [#allocation8]
        %v3553 = vld [vmem:[%s3552] ss:$2 sm:$0xff]
        %v3554 = vmax.f32 %v3491, %v3507
        %v3555 = vmax.f32 %v3493, %v3509
        %v3556 = vmax.f32 %v3495, %v3511
        %v3557 = vmax.f32 %v3497, %v3513
        %v3558 = vmax.f32 %v3499, %v3515
        %v3559 = vmax.f32 %v3501, %v3517
        %v3560 = vmax.f32 %v3503, %v3519
        %v3561 = vmax.f32 %v3505, %v3521
        %v3562 = vmax.f32 %v3523, %v3539
        %v3563 = vmax.f32 %v3525, %v3541
        %v3564 = vmax.f32 %v3527, %v3543
        %v3565 = vmax.f32 %v3529, %v3545
        %v3566 = vmax.f32 %v3531, %v3547
        %v3567 = vmax.f32 %v3533, %v3549
        %v3568 = vmax.f32 %v3535, %v3551
        %v3569 = vmax.f32 %v3537, %v3553
        %v3570 = vmax.f32 %v3554, %v3562
        %v3571 = vmax.f32 %v3555, %v3563
        %v3572 = vmax.f32 %v3556, %v3564
        %v3573 = vmax.f32 %v3557, %v3565
        %v3574 = vmax.f32 %v3558, %v3566
        %v3575 = vmax.f32 %v3559, %v3567
        %v3576 = vmax.f32 %v3560, %v3568
        %v3577 = vmax.f32 %v3561, %v3569
        %s3578 = scalar_lea.vmem [#allocation3], 32
        %3579 = vst.msk [vmem:[%s3578 + $0x2] sm:$0xff] %vm1299, %v3570
        %3580 = vst.msk [vmem:[%s3578 + $0x12] sm:$0xff] %vm1299, %v3571
        %3581 = vst.msk [vmem:[%s3578 + $0x22] sm:$0xff] %vm1299, %v3572
        %3582 = vst.msk [vmem:[%s3578 + $0x32] sm:$0xff] %vm1299, %v3573
        %3583 = vst.msk [vmem:[%s3578 + $0x42] sm:$0xff] %vm1299, %v3574
        %3584 = vst.msk [vmem:[%s3578 + $0x52] sm:$0xff] %vm1299, %v3575
        %3585 = vst.msk [vmem:[%s3578 + $0x62] sm:$0xff] %vm1299, %v3576
        %3586 = vst.msk [vmem:[%s3578 + $0x72] sm:$0xff] %vm1299, %v3577
        %v3587 = vld [vmem:[#allocation3] sm:$0xff]
        %v3588 = vld [vmem:[#allocation3 + $0x10] sm:$0xff]
        %v3589 = vld [vmem:[#allocation3 + $0x20] sm:$0xff]
        %v3590 = vld [vmem:[#allocation3 + $0x30] sm:$0xff]
        %v3591 = vld [vmem:[#allocation3 + $0x40] sm:$0xff]
        %v3592 = vld [vmem:[#allocation3 + $0x50] sm:$0xff]
        %v3593 = vld [vmem:[#allocation3 + $0x60] sm:$0xff]
        %v3594 = vld [vmem:[#allocation3 + $0x70] sm:$0xff]
        %v3595 = vld [vmem:[#allocation3 + $0x80] sm:$0xff]
        %v3596 = vld [vmem:[#allocation3 + $0x90] sm:$0xff]
        %v3597 = vld [vmem:[#allocation3 + $0xa0] sm:$0xff]
        %v3598 = vld [vmem:[#allocation3 + $0xb0] sm:$0xff]
        %v3599 = vld [vmem:[#allocation3 + $0x1] sm:$0xff]
        %v3600 = vld [vmem:[#allocation3 + $0x11] sm:$0xff]
        %v3601 = vld [vmem:[#allocation3 + $0x21] sm:$0xff]
        %v3602 = vld [vmem:[#allocation3 + $0x31] sm:$0xff]
        %v3603 = vld [vmem:[#allocation3 + $0x41] sm:$0xff]
        %v3604 = vld [vmem:[#allocation3 + $0x51] sm:$0xff]
        %v3605 = vld [vmem:[#allocation3 + $0x61] sm:$0xff]
        %v3606 = vld [vmem:[#allocation3 + $0x71] sm:$0xff]
        %v3607 = vld [vmem:[#allocation3 + $0x81] sm:$0xff]
        %v3608 = vld [vmem:[#allocation3 + $0x91] sm:$0xff]
        %v3609 = vld [vmem:[#allocation3 + $0xa1] sm:$0xff]
        %v3610 = vld [vmem:[#allocation3 + $0xb1] sm:$0xff]
        %v3611 = vld [vmem:[#allocation3 + $0x2] sm:$0xff]
        %v3612 = vld [vmem:[#allocation3 + $0x12] sm:$0xff]
        %v3613 = vld [vmem:[#allocation3 + $0x22] sm:$0xff]
        %v3614 = vld [vmem:[#allocation3 + $0x32] sm:$0xff]
        %v3615 = vld [vmem:[#allocation3 + $0x42] sm:$0xff]
        %v3616 = vld [vmem:[#allocation3 + $0x52] sm:$0xff]
        %v3617 = vld [vmem:[#allocation3 + $0x62] sm:$0xff]
        %v3618 = vld [vmem:[#allocation3 + $0x72] sm:$0xff]
        %v3619 = vld [vmem:[#allocation3 + $0x82] sm:$0xff]
        %v3620 = vld [vmem:[#allocation3 + $0x92] sm:$0xff]
        %v3621 = vld [vmem:[#allocation3 + $0xa2] sm:$0xff]
        %v3622 = vld [vmem:[#allocation3 + $0xb2] sm:$0xff]
        %v3623 = vld [vmem:[#allocation3 + $0x3] sm:$0xff]
        %v3624 = vld [vmem:[#allocation3 + $0x13] sm:$0xff]
        %v3625 = vld [vmem:[#allocation3 + $0x23] sm:$0xff]
        %v3626 = vld [vmem:[#allocation3 + $0x33] sm:$0xff]
        %v3627 = vld [vmem:[#allocation3 + $0x43] sm:$0xff]
        %v3628 = vld [vmem:[#allocation3 + $0x53] sm:$0xff]
        %v3629 = vld [vmem:[#allocation3 + $0x63] sm:$0xff]
        %v3630 = vld [vmem:[#allocation3 + $0x73] sm:$0xff]
        %v3631 = vld [vmem:[#allocation3 + $0x83] sm:$0xff]
        %v3632 = vld [vmem:[#allocation3 + $0x93] sm:$0xff]
        %v3633 = vld [vmem:[#allocation3 + $0xa3] sm:$0xff]
        %v3634 = vld [vmem:[#allocation3 + $0xb3] sm:$0xff]
        %v3635 = vld [vmem:[#allocation3 + $0x4] sm:$0xff]
        %v3636 = vld [vmem:[#allocation3 + $0x14] sm:$0xff]
        %v3637 = vld [vmem:[#allocation3 + $0x24] sm:$0xff]
        %v3638 = vld [vmem:[#allocation3 + $0x34] sm:$0xff]
        %v3639 = vld [vmem:[#allocation3 + $0x44] sm:$0xff]
        %v3640 = vld [vmem:[#allocation3 + $0x54] sm:$0xff]
        %v3641 = vld [vmem:[#allocation3 + $0x64] sm:$0xff]
        %v3642 = vld [vmem:[#allocation3 + $0x74] sm:$0xff]
        %v3643 = vld [vmem:[#allocation3 + $0x84] sm:$0xff]
        %v3644 = vld [vmem:[#allocation3 + $0x94] sm:$0xff]
        %v3645 = vld [vmem:[#allocation3 + $0xa4] sm:$0xff]
        %v3646 = vld [vmem:[#allocation3 + $0xb4] sm:$0xff]
        %3659 = vrot.lane.b32.xlu0 %v3599, 8
        %v3660 = vpop.permute.xlu0 %3659
        %3661 = vrot.lane.b32.xlu0 %v3600, 8
        %v3662 = vpop.permute.xlu0 %3661
        %3663 = vrot.lane.b32.xlu0 %v3601, 8
        %v3664 = vpop.permute.xlu0 %3663
        %3665 = vrot.lane.b32.xlu0 %v3602, 8
        %v3666 = vpop.permute.xlu0 %3665
        %3667 = vrot.lane.b32.xlu0 %v3603, 8
        %v3668 = vpop.permute.xlu0 %3667
        %3669 = vrot.lane.b32.xlu0 %v3604, 8
        %v3670 = vpop.permute.xlu0 %3669
        %3671 = vrot.lane.b32.xlu0 %v3605, 8
        %v3672 = vpop.permute.xlu0 %3671
        %3673 = vrot.lane.b32.xlu0 %v3606, 8
        %v3674 = vpop.permute.xlu0 %3673
        %3675 = vrot.lane.b32.xlu0 %v3607, 8
        %v3676 = vpop.permute.xlu0 %3675
        %3677 = vrot.lane.b32.xlu0 %v3608, 8
        %v3678 = vpop.permute.xlu0 %3677
        %3679 = vrot.lane.b32.xlu0 %v3609, 8
        %v3680 = vpop.permute.xlu0 %3679
        %3681 = vrot.lane.b32.xlu0 %v3610, 8
        %v3682 = vpop.permute.xlu0 %3681
        %3707 = vrot.lane.b32.xlu0 %v3611, 16
        %v3708 = vpop.permute.xlu0 %3707
        %3709 = vrot.lane.b32.xlu0 %v3612, 16
        %v3710 = vpop.permute.xlu0 %3709
        %3711 = vrot.lane.b32.xlu0 %v3613, 16
        %v3712 = vpop.permute.xlu0 %3711
        %3713 = vrot.lane.b32.xlu0 %v3614, 16
        %v3714 = vpop.permute.xlu0 %3713
        %3715 = vrot.lane.b32.xlu0 %v3615, 16
        %v3716 = vpop.permute.xlu0 %3715
        %3717 = vrot.lane.b32.xlu0 %v3616, 16
        %v3718 = vpop.permute.xlu0 %3717
        %3719 = vrot.lane.b32.xlu0 %v3617, 16
        %v3720 = vpop.permute.xlu0 %3719
        %3721 = vrot.lane.b32.xlu0 %v3618, 16
        %v3722 = vpop.permute.xlu0 %3721
        %3723 = vrot.lane.b32.xlu0 %v3619, 16
        %v3724 = vpop.permute.xlu0 %3723
        %3725 = vrot.lane.b32.xlu0 %v3620, 16
        %v3726 = vpop.permute.xlu0 %3725
        %3727 = vrot.lane.b32.xlu0 %v3621, 16
        %v3728 = vpop.permute.xlu0 %3727
        %3729 = vrot.lane.b32.xlu0 %v3622, 16
        %v3730 = vpop.permute.xlu0 %3729
        %3755 = vrot.lane.b32.xlu0 %v3623, 24
        %v3756 = vpop.permute.xlu0 %3755
        %3757 = vrot.lane.b32.xlu0 %v3624, 24
        %v3758 = vpop.permute.xlu0 %3757
        %3759 = vrot.lane.b32.xlu0 %v3625, 24
        %v3760 = vpop.permute.xlu0 %3759
        %3761 = vrot.lane.b32.xlu0 %v3626, 24
        %v3762 = vpop.permute.xlu0 %3761
        %3763 = vrot.lane.b32.xlu0 %v3627, 24
        %v3764 = vpop.permute.xlu0 %3763
        %3765 = vrot.lane.b32.xlu0 %v3628, 24
        %v3766 = vpop.permute.xlu0 %3765
        %3767 = vrot.lane.b32.xlu0 %v3629, 24
        %v3768 = vpop.permute.xlu0 %3767
        %3769 = vrot.lane.b32.xlu0 %v3630, 24
        %v3770 = vpop.permute.xlu0 %3769
        %3771 = vrot.lane.b32.xlu0 %v3631, 24
        %v3772 = vpop.permute.xlu0 %3771
        %3773 = vrot.lane.b32.xlu0 %v3632, 24
        %v3774 = vpop.permute.xlu0 %3773
        %3775 = vrot.lane.b32.xlu0 %v3633, 24
        %v3776 = vpop.permute.xlu0 %3775
        %3777 = vrot.lane.b32.xlu0 %v3634, 24
        %v3778 = vpop.permute.xlu0 %3777
        %3803 = vrot.lane.b32.xlu0 %v3635, 32
        %v3804 = vpop.permute.xlu0 %3803
        %3805 = vrot.lane.b32.xlu0 %v3636, 32
        %v3806 = vpop.permute.xlu0 %3805
        %3807 = vrot.lane.b32.xlu0 %v3637, 32
        %v3808 = vpop.permute.xlu0 %3807
        %3809 = vrot.lane.b32.xlu0 %v3638, 32
        %v3810 = vpop.permute.xlu0 %3809
        %3811 = vrot.lane.b32.xlu0 %v3639, 32
        %v3812 = vpop.permute.xlu0 %3811
        %3813 = vrot.lane.b32.xlu0 %v3640, 32
        %v3814 = vpop.permute.xlu0 %3813
        %3815 = vrot.lane.b32.xlu0 %v3641, 32
        %v3816 = vpop.permute.xlu0 %3815
        %3817 = vrot.lane.b32.xlu0 %v3642, 32
        %v3818 = vpop.permute.xlu0 %3817
        %3819 = vrot.lane.b32.xlu0 %v3643, 32
        %v3820 = vpop.permute.xlu0 %3819
        %3821 = vrot.lane.b32.xlu0 %v3644, 32
        %v3822 = vpop.permute.xlu0 %3821
        %3823 = vrot.lane.b32.xlu0 %v3645, 32
        %v3824 = vpop.permute.xlu0 %3823
        %3825 = vrot.lane.b32.xlu0 %v3646, 32
        %v3826 = vpop.permute.xlu0 %3825
        %v3839 = vsel %vm1299, %v3587, %v3660
        %v3840 = vsel %vm1299, %v3588, %v3662
        %v3841 = vsel %vm1299, %v3589, %v3664
        %v3842 = vsel %vm1299, %v3590, %v3666
        %v3843 = vsel %vm1299, %v3591, %v3668
        %v3844 = vsel %vm1299, %v3592, %v3670
        %v3845 = vsel %vm1299, %v3593, %v3672
        %v3846 = vsel %vm1299, %v3594, %v3674
        %v3847 = vsel %vm1299, %v3595, %v3676
        %v3848 = vsel %vm1299, %v3596, %v3678
        %v3849 = vsel %vm1299, %v3597, %v3680
        %v3850 = vsel %vm1299, %v3598, %v3682
        %v3851 = vsel %vm1381, %v3839, %v3708
        %v3852 = vsel %vm1381, %v3840, %v3710
        %v3853 = vsel %vm1381, %v3841, %v3712
        %v3854 = vsel %vm1381, %v3842, %v3714
        %v3855 = vsel %vm1381, %v3843, %v3716
        %v3856 = vsel %vm1381, %v3844, %v3718
        %v3857 = vsel %vm1381, %v3845, %v3720
        %v3858 = vsel %vm1381, %v3846, %v3722
        %v3859 = vsel %vm1381, %v3847, %v3724
        %v3860 = vsel %vm1381, %v3848, %v3726
        %v3861 = vsel %vm1381, %v3849, %v3728
        %v3862 = vsel %vm1381, %v3850, %v3730
        %vm3863 = vcmask 195584
        %v3864 = vsel %vm3863, %v3851, %v3756
        %v3865 = vsel %vm3863, %v3852, %v3758
        %v3866 = vsel %vm3863, %v3853, %v3760
        %v3867 = vsel %vm3863, %v3854, %v3762
        %v3868 = vsel %vm3863, %v3855, %v3764
        %v3869 = vsel %vm3863, %v3856, %v3766
        %v3870 = vsel %vm3863, %v3857, %v3768
        %v3871 = vsel %vm3863, %v3858, %v3770
        %v3872 = vsel %vm3863, %v3859, %v3772
        %v3873 = vsel %vm3863, %v3860, %v3774
        %v3874 = vsel %vm3863, %v3861, %v3776
        %v3875 = vsel %vm3863, %v3862, %v3778
        %vm3876 = vcmask 261120
        %v3877 = vsel %vm3876, %v3864, %v3804
        %v3878 = vsel %vm3876, %v3865, %v3806
        %v3879 = vsel %vm3876, %v3866, %v3808
        %v3880 = vsel %vm3876, %v3867, %v3810
        %v3881 = vsel %vm3876, %v3868, %v3812
        %v3882 = vsel %vm3876, %v3869, %v3814
        %v3883 = vsel %vm3876, %v3870, %v3816
        %v3884 = vsel %vm3876, %v3871, %v3818
        %v3885 = vsel %vm3876, %v3872, %v3820
        %v3886 = vsel %vm3876, %v3873, %v3822
        %v3887 = vsel %vm3876, %v3874, %v3824
        %v3888 = vsel %vm3876, %v3875, %v3826
        %vm3889 = vcmask 326656
        %3890 = vst.msk [vmem:[#allocation6] sm:$0xff] %vm3889, %v3877
        %3891 = vst.msk [vmem:[#allocation6 + $0x8] sm:$0xff] %vm3889, %v3878
        %3892 = vst.msk [vmem:[#allocation6 + $0x10] sm:$0xff] %vm3889, %v3879
        %3893 = vst.msk [vmem:[#allocation6 + $0x18] sm:$0xff] %vm3889, %v3880
        %3894 = vst.msk [vmem:[#allocation6 + $0x20] sm:$0xff] %vm3889, %v3881
        %3895 = vst.msk [vmem:[#allocation6 + $0x28] sm:$0xff] %vm3889, %v3882
        %3896 = vst.msk [vmem:[#allocation6 + $0x30] sm:$0xff] %vm3889, %v3883
        %3897 = vst.msk [vmem:[#allocation6 + $0x38] sm:$0xff] %vm3889, %v3884
        %3898 = vst.msk [vmem:[#allocation6 + $0x40] sm:$0xff] %vm3889, %v3885
        %3899 = vst.msk [vmem:[#allocation6 + $0x48] sm:$0xff] %vm3889, %v3886
        %3900 = vst.msk [vmem:[#allocation6 + $0x50] sm:$0xff] %vm3889, %v3887
        %3901 = vst.msk [vmem:[#allocation6 + $0x58] sm:$0xff] %vm3889, %v3888
        %v3902 = vld [vmem:[#allocation6] sm:$0xff]
        %v3903 = vld [vmem:[#allocation6 + $0x8] sm:$0xff]
        %v3904 = vld [vmem:[#allocation6 + $0x10] sm:$0xff]
        %v3905 = vld [vmem:[#allocation6 + $0x18] sm:$0xff]
        %v3906 = vld [vmem:[#allocation6 + $0x20] sm:$0xff]
        %v3907 = vld [vmem:[#allocation6 + $0x28] sm:$0xff]
        %v3908 = vld [vmem:[#allocation6 + $0x30] sm:$0xff]
        %v3909 = vld [vmem:[#allocation6 + $0x38] sm:$0xff]
        %v3910 = vld [vmem:[#allocation10] sm:$0xff]
        %v3911 = vld [vmem:[#allocation10 + $0x8] sm:$0xff]
        %v3912 = vld [vmem:[#allocation10 + $0x10] sm:$0xff]
        %v3913 = vld [vmem:[#allocation10 + $0x18] sm:$0xff]
        %v3914 = vld [vmem:[#allocation10 + $0x20] sm:$0xff]
        %s3915 = scalar_lea.vmem [#allocation6], 8
        %v3916 = vld [vmem:[%s3915] sm:$0xff]
        %v3917 = vld [vmem:[%s3915 + $0x8] sm:$0xff]
        %v3918 = vld [vmem:[%s3915 + $0x10] sm:$0xff]
        %v3919 = vld [vmem:[%s3915 + $0x18] sm:$0xff]
        %v3920 = vld [vmem:[%s3915 + $0x20] sm:$0xff]
        %v3921 = vld [vmem:[%s3915 + $0x28] sm:$0xff]
        %v3922 = vld [vmem:[%s3915 + $0x30] sm:$0xff]
        %v3923 = vld [vmem:[%s3915 + $0x38] sm:$0xff]
        %s3924 = scalar_lea.vmem [#allocation10], 40
        %v3925 = vld [vmem:[%s3924] sm:$0xff]
        %v3926 = vld [vmem:[%s3924 + $0x8] sm:$0xff]
        %v3927 = vld [vmem:[%s3924 + $0x10] sm:$0xff]
        %v3928 = vld [vmem:[%s3924 + $0x18] sm:$0xff]
        %v3929 = vld [vmem:[%s3924 + $0x20] sm:$0xff]
        %v3931 = vsel %vm3889, %v3916, 0
        %v3934 = vsel %vm3889, %v3917, 0
        %v3937 = vsel %vm3889, %v3918, 0
        %v3940 = vsel %vm3889, %v3919, 0
        %v3943 = vsel %vm3889, %v3920, 0
        %v3946 = vsel %vm3889, %v3921, 0
        %v3949 = vsel %vm3889, %v3922, 0
        %v3952 = vsel %vm3889, %v3923, 0
        %3954 = vmatprep.subr.mxu0 0.0
        %3955 = vmatpush1.msra.mxu0 %v3925
        %3956 = vmatprep.subr.mxu0 0.0
        %3957 = vmatpush1.msra.mxu0 %v3926
        %3958 = vmatprep.subr.mxu0 0.0
        %3959 = vmatpush1.msra.mxu0 %v3927
        %3960 = vmatprep.subr.mxu0 0.0
        %3961 = vmatpush1.msra.mxu0 %v3928
        %3962 = vmatprep.subr.mxu0 0.0
        %3963 = vmatpush1.msra.mxu0 %v3929
        %3964 = vmatprep.subr.mxu0 0.0
        %3965 = vmatpush1.msra.mxu0 0.0
        %3966 = vmatprep.subr.mxu0 0.0
        %3967 = vmatpush1.msra.mxu0 0.0
        %3968 = vmatprep.subr.mxu0 0.0
        %3969 = vmatpush1.msra.mxu0 0.0
        %3970 = vmatprep.subr.mxu0 0.0
        %3971 = vmatpush1.msra.mxu0 0.0
        %3972 = vmatprep.subr.mxu0 0.0
        %3973 = vmatpush1.msra.mxu0 0.0
        %3974 = vmatprep.subr.mxu0 0.0
        %3975 = vmatpush1.msra.mxu0 0.0
        %3976 = vmatprep.subr.mxu0 0.0
        %3977 = vmatpush1.msra.mxu0 0.0
        %3978 = vmatprep.subr.mxu0 0.0
        %3979 = vmatpush1.msra.mxu0 0.0
        %3980 = vmatprep.subr.mxu0 0.0
        %3981 = vmatpush1.msra.mxu0 0.0
        %3982 = vmatprep.subr.mxu0 0.0
        %3983 = vmatpush1.msra.mxu0 0.0
        %3984 = vmatprep.subr.mxu0 0.0
        %3985 = vmatpush1.msra.mxu0 0.0
        %3986 = vmatprep.subr.mxu0 0.0
        %3987 = vmatpush1.msra.mxu0 0.0
        %3988 = vmatprep.subr.mxu0 0.0
        %3989 = vmatpush1.msra.mxu0 0.0
        %3990 = vmatprep.subr.mxu0 0.0
        %3991 = vmatpush1.msra.mxu0 0.0
        %3992 = vmatprep.subr.mxu0 0.0
        %3993 = vmatpush1.msra.mxu0 0.0
        %3994 = vmatprep.subr.mxu0 0.0
        %3995 = vmatpush1.msra.mxu0 0.0
        %3996 = vmatprep.subr.mxu0 0.0
        %3997 = vmatpush1.msra.mxu0 0.0
        %3998 = vmatprep.subr.mxu0 0.0
        %3999 = vmatpush1.msra.mxu0 0.0
        %4000 = vmatprep.subr.mxu0 0.0
        %4001 = vmatpush1.msra.mxu0 0.0
        %4002 = vmatprep.subr.mxu0 0.0
        %4003 = vmatpush1.msra.mxu0 0.0
        %4004 = vmatprep.subr.mxu0 0.0
        %4005 = vmatpush1.msra.mxu0 0.0
        %4006 = vmatprep.subr.mxu0 0.0
        %4007 = vmatpush1.msra.mxu0 0.0
        %4008 = vmatprep.subr.mxu0 0.0
        %4009 = vmatpush1.msra.mxu0 0.0
        %4010 = vmatprep.subr.mxu0 0.0
        %4011 = vmatpush1.msra.mxu0 0.0
        %4012 = vmatprep.subr.mxu0 0.0
        %4013 = vmatpush1.msra.mxu0 0.0
        %4014 = vmatprep.subr.mxu0 0.0
        %4015 = vmatpush1.msra.mxu0 0.0
        %4016 = vmatprep.subr.mxu0 0.0
        %4017 = vmatpush1.msra.mxu0 0.0
        %4018 = vmatprep.mubr.f32.mxu0 0.0
        %4019 = vmatmul.mubr.f32.gmra.mrb[0].mxu0 %v3931
        %v4020 = vpop.f32.mrb[0].mxu0
        %v4021 = vadd.f32 0.0, %v4020
        %v4022 = vpop.f32.mrb[0].mxu0
        %4023 = vmatprep.mubr.f32.mxu0 0.0
        %4024 = vmatmul.mubr.f32.gmra.mrb[0].mxu0 %v3934
        %v4025 = vpop.f32.mrb[0].mxu0
        %v4026 = vadd.f32 0.0, %v4025
        %v4027 = vpop.f32.mrb[0].mxu0
        %4028 = vmatprep.mubr.f32.mxu0 0.0
        %4029 = vmatmul.mubr.f32.gmra.mrb[0].mxu0 %v3937
        %v4030 = vpop.f32.mrb[0].mxu0
        %v4031 = vadd.f32 0.0, %v4030
        %v4032 = vpop.f32.mrb[0].mxu0
        %4033 = vmatprep.mubr.f32.mxu0 0.0
        %4034 = vmatmul.mubr.f32.gmra.mrb[0].mxu0 %v3940
        %v4035 = vpop.f32.mrb[0].mxu0
        %v4036 = vadd.f32 0.0, %v4035
        %v4037 = vpop.f32.mrb[0].mxu0
        %4038 = vmatprep.mubr.f32.mxu0 0.0
        %4039 = vmatmul.mubr.f32.gmra.mrb[0].mxu0 %v3943
        %v4040 = vpop.f32.mrb[0].mxu0
        %v4041 = vadd.f32 0.0, %v4040
        %v4042 = vpop.f32.mrb[0].mxu0
        %4043 = vmatprep.mubr.f32.mxu0 0.0
        %4044 = vmatmul.mubr.f32.gmra.mrb[0].mxu0 %v3946
        %v4045 = vpop.f32.mrb[0].mxu0
        %v4046 = vadd.f32 0.0, %v4045
        %v4047 = vpop.f32.mrb[0].mxu0
        %4048 = vmatprep.mubr.f32.mxu0 0.0
        %4049 = vmatmul.mubr.f32.gmra.mrb[0].mxu0 %v3949
        %v4050 = vpop.f32.mrb[0].mxu0
        %v4051 = vadd.f32 0.0, %v4050
        %v4052 = vpop.f32.mrb[0].mxu0
        %4053 = vmatprep.mubr.f32.mxu0 0.0
        %4054 = vmatmul.mubr.f32.gmra.mrb[0].mxu0 %v3952
        %v4055 = vpop.f32.mrb[0].mxu0
        %v4056 = vadd.f32 0.0, %v4055
        %v4057 = vpop.f32.mrb[0].mxu0
        %4058 = vdwg.mxu0
        %v4060 = vsel %vm3889, %v3902, 0
        %v4063 = vsel %vm3889, %v3903, 0
        %v4066 = vsel %vm3889, %v3904, 0
        %v4069 = vsel %vm3889, %v3905, 0
        %v4072 = vsel %vm3889, %v3906, 0
        %v4075 = vsel %vm3889, %v3907, 0
        %v4078 = vsel %vm3889, %v3908, 0
        %v4081 = vsel %vm3889, %v3909, 0
        %4083 = vmatprep.subr.mxu0 0.0
        %4084 = vmatpush1.msra.mxu0 %v3910
        %4085 = vmatprep.subr.mxu0 0.0
        %4086 = vmatpush1.msra.mxu0 %v3911
        %4087 = vmatprep.subr.mxu0 0.0
        %4088 = vmatpush1.msra.mxu0 %v3912
        %4089 = vmatprep.subr.mxu0 0.0
        %4090 = vmatpush1.msra.mxu0 %v3913
        %4091 = vmatprep.subr.mxu0 0.0
        %4092 = vmatpush1.msra.mxu0 %v3914
        %4093 = vmatprep.subr.mxu0 0.0
        %4094 = vmatpush1.msra.mxu0 0.0
        %4095 = vmatprep.subr.mxu0 0.0
        %4096 = vmatpush1.msra.mxu0 0.0
        %4097 = vmatprep.subr.mxu0 0.0
        %4098 = vmatpush1.msra.mxu0 0.0
        %4099 = vmatprep.subr.mxu0 0.0
        %4100 = vmatpush1.msra.mxu0 0.0
        %4101 = vmatprep.subr.mxu0 0.0
        %4102 = vmatpush1.msra.mxu0 0.0
        %4103 = vmatprep.subr.mxu0 0.0
        %4104 = vmatpush1.msra.mxu0 0.0
        %4105 = vmatprep.subr.mxu0 0.0
        %4106 = vmatpush1.msra.mxu0 0.0
        %4107 = vmatprep.subr.mxu0 0.0
        %4108 = vmatpush1.msra.mxu0 0.0
        %4109 = vmatprep.subr.mxu0 0.0
        %4110 = vmatpush1.msra.mxu0 0.0
        %4111 = vmatprep.subr.mxu0 0.0
        %4112 = vmatpush1.msra.mxu0 0.0
        %4113 = vmatprep.subr.mxu0 0.0
        %4114 = vmatpush1.msra.mxu0 0.0
        %4115 = vmatprep.subr.mxu0 0.0
        %4116 = vmatpush1.msra.mxu0 0.0
        %4117 = vmatprep.subr.mxu0 0.0
        %4118 = vmatpush1.msra.mxu0 0.0
        %4119 = vmatprep.subr.mxu0 0.0
        %4120 = vmatpush1.msra.mxu0 0.0
        %4121 = vmatprep.subr.mxu0 0.0
        %4122 = vmatpush1.msra.mxu0 0.0
        %4123 = vmatprep.subr.mxu0 0.0
        %4124 = vmatpush1.msra.mxu0 0.0
        %4125 = vmatprep.subr.mxu0 0.0
        %4126 = vmatpush1.msra.mxu0 0.0
        %4127 = vmatprep.subr.mxu0 0.0
        %4128 = vmatpush1.msra.mxu0 0.0
        %4129 = vmatprep.subr.mxu0 0.0
        %4130 = vmatpush1.msra.mxu0 0.0
        %4131 = vmatprep.subr.mxu0 0.0
        %4132 = vmatpush1.msra.mxu0 0.0
        %4133 = vmatprep.subr.mxu0 0.0
        %4134 = vmatpush1.msra.mxu0 0.0
        %4135 = vmatprep.subr.mxu0 0.0
        %4136 = vmatpush1.msra.mxu0 0.0
        %4137 = vmatprep.subr.mxu0 0.0
        %4138 = vmatpush1.msra.mxu0 0.0
        %4139 = vmatprep.subr.mxu0 0.0
        %4140 = vmatpush1.msra.mxu0 0.0
        %4141 = vmatprep.subr.mxu0 0.0
        %4142 = vmatpush1.msra.mxu0 0.0
        %4143 = vmatprep.subr.mxu0 0.0
        %4144 = vmatpush1.msra.mxu0 0.0
        %4145 = vmatprep.subr.mxu0 0.0
        %4146 = vmatpush1.msra.mxu0 0.0
        %4147 = vmatprep.mubr.f32.mxu0 0.0
        %4148 = vmatmul.mubr.f32.gmra.mrb[0].mxu0 %v4060
        %v4149 = vpop.f32.mrb[0].mxu0
        %v4150 = vadd.f32 %v4021, %v4149
        %v4151 = vpop.f32.mrb[0].mxu0
        %4152 = vmatprep.mubr.f32.mxu0 0.0
        %4153 = vmatmul.mubr.f32.gmra.mrb[0].mxu0 %v4063
        %v4154 = vpop.f32.mrb[0].mxu0
        %v4155 = vadd.f32 %v4026, %v4154
        %v4156 = vpop.f32.mrb[0].mxu0
        %4157 = vmatprep.mubr.f32.mxu0 0.0
        %4158 = vmatmul.mubr.f32.gmra.mrb[0].mxu0 %v4066
        %v4159 = vpop.f32.mrb[0].mxu0
        %v4160 = vadd.f32 %v4031, %v4159
        %v4161 = vpop.f32.mrb[0].mxu0
        %4162 = vmatprep.mubr.f32.mxu0 0.0
        %4163 = vmatmul.mubr.f32.gmra.mrb[0].mxu0 %v4069
        %v4164 = vpop.f32.mrb[0].mxu0
        %v4165 = vadd.f32 %v4036, %v4164
        %v4166 = vpop.f32.mrb[0].mxu0
        %4167 = vmatprep.mubr.f32.mxu0 0.0
        %4168 = vmatmul.mubr.f32.gmra.mrb[0].mxu0 %v4072
        %v4169 = vpop.f32.mrb[0].mxu0
        %v4170 = vadd.f32 %v4041, %v4169
        %v4171 = vpop.f32.mrb[0].mxu0
        %4172 = vmatprep.mubr.f32.mxu0 0.0
        %4173 = vmatmul.mubr.f32.gmra.mrb[0].mxu0 %v4075
        %v4174 = vpop.f32.mrb[0].mxu0
        %v4175 = vadd.f32 %v4046, %v4174
        %v4176 = vpop.f32.mrb[0].mxu0
        %4177 = vmatprep.mubr.f32.mxu0 0.0
        %4178 = vmatmul.mubr.f32.gmra.mrb[0].mxu0 %v4078
        %v4179 = vpop.f32.mrb[0].mxu0
        %v4180 = vadd.f32 %v4051, %v4179
        %v4181 = vpop.f32.mrb[0].mxu0
        %4182 = vmatprep.mubr.f32.mxu0 0.0
        %4183 = vmatmul.mubr.f32.gmra.mrb[0].mxu0 %v4081
        %v4184 = vpop.f32.mrb[0].mxu0
        %v4185 = vadd.f32 %v4056, %v4184
        %v4186 = vpop.f32.mrb[0].mxu0
        %4187 = vdwg.mxu0
        %s4188 = scalar_lea.vmem [#allocation6], 16
        %v4189 = vld [vmem:[%s4188] sm:$0xff]
        %v4190 = vld [vmem:[%s4188 + $0x8] sm:$0xff]
        %v4191 = vld [vmem:[%s4188 + $0x10] sm:$0xff]
        %v4192 = vld [vmem:[%s4188 + $0x18] sm:$0xff]
        %v4193 = vld [vmem:[%s4188 + $0x20] sm:$0xff]
        %v4194 = vld [vmem:[%s4188 + $0x28] sm:$0xff]
        %v4195 = vld [vmem:[%s4188 + $0x30] sm:$0xff]
        %v4196 = vld [vmem:[%s4188 + $0x38] sm:$0xff]
        %s4197 = scalar_lea.vmem [#allocation10], 80
        %v4198 = vld [vmem:[%s4197] sm:$0xff]
        %v4199 = vld [vmem:[%s4197 + $0x8] sm:$0xff]
        %v4200 = vld [vmem:[%s4197 + $0x10] sm:$0xff]
        %v4201 = vld [vmem:[%s4197 + $0x18] sm:$0xff]
        %v4202 = vld [vmem:[%s4197 + $0x20] sm:$0xff]
        %v4204 = vsel %vm3889, %v4189, 0
        %v4207 = vsel %vm3889, %v4190, 0
        %v4210 = vsel %vm3889, %v4191, 0
        %v4213 = vsel %vm3889, %v4192, 0
        %v4216 = vsel %vm3889, %v4193, 0
        %v4219 = vsel %vm3889, %v4194, 0
        %v4222 = vsel %vm3889, %v4195, 0
        %v4225 = vsel %vm3889, %v4196, 0
        %4227 = vmatprep.subr.mxu0 0.0
        %4228 = vmatpush1.msra.mxu0 %v4198
        %4229 = vmatprep.subr.mxu0 0.0
        %4230 = vmatpush1.msra.mxu0 %v4199
        %4231 = vmatprep.subr.mxu0 0.0
        %4232 = vmatpush1.msra.mxu0 %v4200
        %4233 = vmatprep.subr.mxu0 0.0
        %4234 = vmatpush1.msra.mxu0 %v4201
        %4235 = vmatprep.subr.mxu0 0.0
        %4236 = vmatpush1.msra.mxu0 %v4202
        %4237 = vmatprep.subr.mxu0 0.0
        %4238 = vmatpush1.msra.mxu0 0.0
        %4239 = vmatprep.subr.mxu0 0.0
        %4240 = vmatpush1.msra.mxu0 0.0
        %4241 = vmatprep.subr.mxu0 0.0
        %4242 = vmatpush1.msra.mxu0 0.0
        %4243 = vmatprep.subr.mxu0 0.0
        %4244 = vmatpush1.msra.mxu0 0.0
        %4245 = vmatprep.subr.mxu0 0.0
        %4246 = vmatpush1.msra.mxu0 0.0
        %4247 = vmatprep.subr.mxu0 0.0
        %4248 = vmatpush1.msra.mxu0 0.0
        %4249 = vmatprep.subr.mxu0 0.0
        %4250 = vmatpush1.msra.mxu0 0.0
        %4251 = vmatprep.subr.mxu0 0.0
        %4252 = vmatpush1.msra.mxu0 0.0
        %4253 = vmatprep.subr.mxu0 0.0
        %4254 = vmatpush1.msra.mxu0 0.0
        %4255 = vmatprep.subr.mxu0 0.0
        %4256 = vmatpush1.msra.mxu0 0.0
        %4257 = vmatprep.subr.mxu0 0.0
        %4258 = vmatpush1.msra.mxu0 0.0
        %4259 = vmatprep.subr.mxu0 0.0
        %4260 = vmatpush1.msra.mxu0 0.0
        %4261 = vmatprep.subr.mxu0 0.0
        %4262 = vmatpush1.msra.mxu0 0.0
        %4263 = vmatprep.subr.mxu0 0.0
        %4264 = vmatpush1.msra.mxu0 0.0
        %4265 = vmatprep.subr.mxu0 0.0
        %4266 = vmatpush1.msra.mxu0 0.0
        %4267 = vmatprep.subr.mxu0 0.0
        %4268 = vmatpush1.msra.mxu0 0.0
        %4269 = vmatprep.subr.mxu0 0.0
        %4270 = vmatpush1.msra.mxu0 0.0
        %4271 = vmatprep.subr.mxu0 0.0
        %4272 = vmatpush1.msra.mxu0 0.0
        %4273 = vmatprep.subr.mxu0 0.0
        %4274 = vmatpush1.msra.mxu0 0.0
        %4275 = vmatprep.subr.mxu0 0.0
        %4276 = vmatpush1.msra.mxu0 0.0
        %4277 = vmatprep.subr.mxu0 0.0
        %4278 = vmatpush1.msra.mxu0 0.0
        %4279 = vmatprep.subr.mxu0 0.0
        %4280 = vmatpush1.msra.mxu0 0.0
        %4281 = vmatprep.subr.mxu0 0.0
        %4282 = vmatpush1.msra.mxu0 0.0
        %4283 = vmatprep.subr.mxu0 0.0
        %4284 = vmatpush1.msra.mxu0 0.0
        %4285 = vmatprep.subr.mxu0 0.0
        %4286 = vmatpush1.msra.mxu0 0.0
        %4287 = vmatprep.subr.mxu0 0.0
        %4288 = vmatpush1.msra.mxu0 0.0
        %4289 = vmatprep.subr.mxu0 0.0
        %4290 = vmatpush1.msra.mxu0 0.0
        %4291 = vmatprep.mubr.f32.mxu0 0.0
        %4292 = vmatmul.mubr.f32.gmra.mrb[0].mxu0 %v4204
        %v4293 = vpop.f32.mrb[0].mxu0
        %v4294 = vadd.f32 0.0, %v4293
        %v4295 = vpop.f32.mrb[0].mxu0
        %4296 = vmatprep.mubr.f32.mxu0 0.0
        %4297 = vmatmul.mubr.f32.gmra.mrb[0].mxu0 %v4207
        %v4298 = vpop.f32.mrb[0].mxu0
        %v4299 = vadd.f32 0.0, %v4298
        %v4300 = vpop.f32.mrb[0].mxu0
        %4301 = vmatprep.mubr.f32.mxu0 0.0
        %4302 = vmatmul.mubr.f32.gmra.mrb[0].mxu0 %v4210
        %v4303 = vpop.f32.mrb[0].mxu0
        %v4304 = vadd.f32 0.0, %v4303
        %v4305 = vpop.f32.mrb[0].mxu0
        %4306 = vmatprep.mubr.f32.mxu0 0.0
        %4307 = vmatmul.mubr.f32.gmra.mrb[0].mxu0 %v4213
        %v4308 = vpop.f32.mrb[0].mxu0
        %v4309 = vadd.f32 0.0, %v4308
        %v4310 = vpop.f32.mrb[0].mxu0
        %4311 = vmatprep.mubr.f32.mxu0 0.0
        %4312 = vmatmul.mubr.f32.gmra.mrb[0].mxu0 %v4216
        %v4313 = vpop.f32.mrb[0].mxu0
        %v4314 = vadd.f32 0.0, %v4313
        %v4315 = vpop.f32.mrb[0].mxu0
        %4316 = vmatprep.mubr.f32.mxu0 0.0
        %4317 = vmatmul.mubr.f32.gmra.mrb[0].mxu0 %v4219
        %v4318 = vpop.f32.mrb[0].mxu0
        %v4319 = vadd.f32 0.0, %v4318
        %v4320 = vpop.f32.mrb[0].mxu0
        %4321 = vmatprep.mubr.f32.mxu0 0.0
        %4322 = vmatmul.mubr.f32.gmra.mrb[0].mxu0 %v4222
        %v4323 = vpop.f32.mrb[0].mxu0
        %v4324 = vadd.f32 0.0, %v4323
        %v4325 = vpop.f32.mrb[0].mxu0
        %4326 = vmatprep.mubr.f32.mxu0 0.0
        %4327 = vmatmul.mubr.f32.gmra.mrb[0].mxu0 %v4225
        %v4328 = vpop.f32.mrb[0].mxu0
        %v4329 = vadd.f32 0.0, %v4328
        %v4330 = vpop.f32.mrb[0].mxu0
        %4331 = vdwg.mxu0
        %v4332 = vadd.f32 %v4150, %v4294
        %v4333 = vadd.f32 %v4155, %v4299
        %v4334 = vadd.f32 %v4160, %v4304
        %v4335 = vadd.f32 %v4165, %v4309
        %v4336 = vadd.f32 %v4170, %v4314
        %v4337 = vadd.f32 %v4175, %v4319
        %v4338 = vadd.f32 %v4180, %v4324
        %v4339 = vadd.f32 %v4185, %v4329
        %s4340 = scalar_lea.vmem [#allocation6], 24
        %v4341 = vld [vmem:[%s4340] sm:$0xff]
        %v4342 = vld [vmem:[%s4340 + $0x8] sm:$0xff]
        %v4343 = vld [vmem:[%s4340 + $0x10] sm:$0xff]
        %v4344 = vld [vmem:[%s4340 + $0x18] sm:$0xff]
        %v4345 = vld [vmem:[%s4340 + $0x20] sm:$0xff]
        %v4346 = vld [vmem:[%s4340 + $0x28] sm:$0xff]
        %v4347 = vld [vmem:[%s4340 + $0x30] sm:$0xff]
        %v4348 = vld [vmem:[%s4340 + $0x38] sm:$0xff]
        %s4349 = scalar_lea.vmem [#allocation10], 120
        %v4350 = vld [vmem:[%s4349] sm:$0xff]
        %v4351 = vld [vmem:[%s4349 + $0x8] sm:$0xff]
        %v4352 = vld [vmem:[%s4349 + $0x10] sm:$0xff]
        %v4353 = vld [vmem:[%s4349 + $0x18] sm:$0xff]
        %v4354 = vld [vmem:[%s4349 + $0x20] sm:$0xff]
        %v4356 = vsel %vm3889, %v4341, 0
        %v4359 = vsel %vm3889, %v4342, 0
        %v4362 = vsel %vm3889, %v4343, 0
        %v4365 = vsel %vm3889, %v4344, 0
        %v4368 = vsel %vm3889, %v4345, 0
        %v4371 = vsel %vm3889, %v4346, 0
        %v4374 = vsel %vm3889, %v4347, 0
        %v4377 = vsel %vm3889, %v4348, 0
        %4379 = vmatprep.subr.mxu0 0.0
        %4380 = vmatpush1.msra.mxu0 %v4350
        %4381 = vmatprep.subr.mxu0 0.0
        %4382 = vmatpush1.msra.mxu0 %v4351
        %4383 = vmatprep.subr.mxu0 0.0
        %4384 = vmatpush1.msra.mxu0 %v4352
        %4385 = vmatprep.subr.mxu0 0.0
        %4386 = vmatpush1.msra.mxu0 %v4353
        %4387 = vmatprep.subr.mxu0 0.0
        %4388 = vmatpush1.msra.mxu0 %v4354
        %4389 = vmatprep.subr.mxu0 0.0
        %4390 = vmatpush1.msra.mxu0 0.0
        %4391 = vmatprep.subr.mxu0 0.0
        %4392 = vmatpush1.msra.mxu0 0.0
        %4393 = vmatprep.subr.mxu0 0.0
        %4394 = vmatpush1.msra.mxu0 0.0
        %4395 = vmatprep.subr.mxu0 0.0
        %4396 = vmatpush1.msra.mxu0 0.0
        %4397 = vmatprep.subr.mxu0 0.0
        %4398 = vmatpush1.msra.mxu0 0.0
        %4399 = vmatprep.subr.mxu0 0.0
        %4400 = vmatpush1.msra.mxu0 0.0
        %4401 = vmatprep.subr.mxu0 0.0
        %4402 = vmatpush1.msra.mxu0 0.0
        %4403 = vmatprep.subr.mxu0 0.0
        %4404 = vmatpush1.msra.mxu0 0.0
        %4405 = vmatprep.subr.mxu0 0.0
        %4406 = vmatpush1.msra.mxu0 0.0
        %4407 = vmatprep.subr.mxu0 0.0
        %4408 = vmatpush1.msra.mxu0 0.0
        %4409 = vmatprep.subr.mxu0 0.0
        %4410 = vmatpush1.msra.mxu0 0.0
        %4411 = vmatprep.subr.mxu0 0.0
        %4412 = vmatpush1.msra.mxu0 0.0
        %4413 = vmatprep.subr.mxu0 0.0
        %4414 = vmatpush1.msra.mxu0 0.0
        %4415 = vmatprep.subr.mxu0 0.0
        %4416 = vmatpush1.msra.mxu0 0.0
        %4417 = vmatprep.subr.mxu0 0.0
        %4418 = vmatpush1.msra.mxu0 0.0
        %4419 = vmatprep.subr.mxu0 0.0
        %4420 = vmatpush1.msra.mxu0 0.0
        %4421 = vmatprep.subr.mxu0 0.0
        %4422 = vmatpush1.msra.mxu0 0.0
        %4423 = vmatprep.subr.mxu0 0.0
        %4424 = vmatpush1.msra.mxu0 0.0
        %4425 = vmatprep.subr.mxu0 0.0
        %4426 = vmatpush1.msra.mxu0 0.0
        %4427 = vmatprep.subr.mxu0 0.0
        %4428 = vmatpush1.msra.mxu0 0.0
        %4429 = vmatprep.subr.mxu0 0.0
        %4430 = vmatpush1.msra.mxu0 0.0
        %4431 = vmatprep.subr.mxu0 0.0
        %4432 = vmatpush1.msra.mxu0 0.0
        %4433 = vmatprep.subr.mxu0 0.0
        %4434 = vmatpush1.msra.mxu0 0.0
        %4435 = vmatprep.subr.mxu0 0.0
        %4436 = vmatpush1.msra.mxu0 0.0
        %4437 = vmatprep.subr.mxu0 0.0
        %4438 = vmatpush1.msra.mxu0 0.0
        %4439 = vmatprep.subr.mxu0 0.0
        %4440 = vmatpush1.msra.mxu0 0.0
        %4441 = vmatprep.subr.mxu0 0.0
        %4442 = vmatpush1.msra.mxu0 0.0
        %4443 = vmatprep.mubr.f32.mxu0 0.0
        %4444 = vmatmul.mubr.f32.gmra.mrb[0].mxu0 %v4356
        %v4445 = vpop.f32.mrb[0].mxu0
        %v4446 = vadd.f32 0.0, %v4445
        %v4447 = vpop.f32.mrb[0].mxu0
        %4448 = vmatprep.mubr.f32.mxu0 0.0
        %4449 = vmatmul.mubr.f32.gmra.mrb[0].mxu0 %v4359
        %v4450 = vpop.f32.mrb[0].mxu0
        %v4451 = vadd.f32 0.0, %v4450
        %v4452 = vpop.f32.mrb[0].mxu0
        %4453 = vmatprep.mubr.f32.mxu0 0.0
        %4454 = vmatmul.mubr.f32.gmra.mrb[0].mxu0 %v4362
        %v4455 = vpop.f32.mrb[0].mxu0
        %v4456 = vadd.f32 0.0, %v4455
        %v4457 = vpop.f32.mrb[0].mxu0
        %4458 = vmatprep.mubr.f32.mxu0 0.0
        %4459 = vmatmul.mubr.f32.gmra.mrb[0].mxu0 %v4365
        %v4460 = vpop.f32.mrb[0].mxu0
        %v4461 = vadd.f32 0.0, %v4460
        %v4462 = vpop.f32.mrb[0].mxu0
        %4463 = vmatprep.mubr.f32.mxu0 0.0
        %4464 = vmatmul.mubr.f32.gmra.mrb[0].mxu0 %v4368
        %v4465 = vpop.f32.mrb[0].mxu0
        %v4466 = vadd.f32 0.0, %v4465
        %v4467 = vpop.f32.mrb[0].mxu0
        %4468 = vmatprep.mubr.f32.mxu0 0.0
        %4469 = vmatmul.mubr.f32.gmra.mrb[0].mxu0 %v4371
        %v4470 = vpop.f32.mrb[0].mxu0
        %v4471 = vadd.f32 0.0, %v4470
        %v4472 = vpop.f32.mrb[0].mxu0
        %4473 = vmatprep.mubr.f32.mxu0 0.0
        %4474 = vmatmul.mubr.f32.gmra.mrb[0].mxu0 %v4374
        %v4475 = vpop.f32.mrb[0].mxu0
        %v4476 = vadd.f32 0.0, %v4475
        %v4477 = vpop.f32.mrb[0].mxu0
        %4478 = vmatprep.mubr.f32.mxu0 0.0
        %4479 = vmatmul.mubr.f32.gmra.mrb[0].mxu0 %v4377
        %v4480 = vpop.f32.mrb[0].mxu0
        %v4481 = vadd.f32 0.0, %v4480
        %v4482 = vpop.f32.mrb[0].mxu0
        %4483 = vdwg.mxu0
        %v4484 = vadd.f32 %v4332, %v4446
        %v4485 = vadd.f32 %v4333, %v4451
        %v4486 = vadd.f32 %v4334, %v4456
        %v4487 = vadd.f32 %v4335, %v4461
        %v4488 = vadd.f32 %v4336, %v4466
        %v4489 = vadd.f32 %v4337, %v4471
        %v4490 = vadd.f32 %v4338, %v4476
        %v4491 = vadd.f32 %v4339, %v4481
        %s4492 = scalar_lea.vmem [#allocation6], 32
        %v4493 = vld [vmem:[%s4492] sm:$0xff]
        %v4494 = vld [vmem:[%s4492 + $0x8] sm:$0xff]
        %v4495 = vld [vmem:[%s4492 + $0x10] sm:$0xff]
        %v4496 = vld [vmem:[%s4492 + $0x18] sm:$0xff]
        %v4497 = vld [vmem:[%s4492 + $0x20] sm:$0xff]
        %v4498 = vld [vmem:[%s4492 + $0x28] sm:$0xff]
        %v4499 = vld [vmem:[%s4492 + $0x30] sm:$0xff]
        %v4500 = vld [vmem:[%s4492 + $0x38] sm:$0xff]
        %s4501 = scalar_lea.vmem [#allocation10], 160
        %v4502 = vld [vmem:[%s4501] sm:$0xff]
        %v4503 = vld [vmem:[%s4501 + $0x8] sm:$0xff]
        %v4504 = vld [vmem:[%s4501 + $0x10] sm:$0xff]
        %v4505 = vld [vmem:[%s4501 + $0x18] sm:$0xff]
        %v4506 = vld [vmem:[%s4501 + $0x20] sm:$0xff]
        %v4508 = vsel %vm3889, %v4493, 0
        %v4511 = vsel %vm3889, %v4494, 0
        %v4514 = vsel %vm3889, %v4495, 0
        %v4517 = vsel %vm3889, %v4496, 0
        %v4520 = vsel %vm3889, %v4497, 0
        %v4523 = vsel %vm3889, %v4498, 0
        %v4526 = vsel %vm3889, %v4499, 0
        %v4529 = vsel %vm3889, %v4500, 0
        %4531 = vmatprep.subr.mxu0 0.0
        %4532 = vmatpush1.msra.mxu0 %v4502
        %4533 = vmatprep.subr.mxu0 0.0
        %4534 = vmatpush1.msra.mxu0 %v4503
        %4535 = vmatprep.subr.mxu0 0.0
        %4536 = vmatpush1.msra.mxu0 %v4504
        %4537 = vmatprep.subr.mxu0 0.0
        %4538 = vmatpush1.msra.mxu0 %v4505
        %4539 = vmatprep.subr.mxu0 0.0
        %4540 = vmatpush1.msra.mxu0 %v4506
        %4541 = vmatprep.subr.mxu0 0.0
        %4542 = vmatpush1.msra.mxu0 0.0
        %4543 = vmatprep.subr.mxu0 0.0
        %4544 = vmatpush1.msra.mxu0 0.0
        %4545 = vmatprep.subr.mxu0 0.0
        %4546 = vmatpush1.msra.mxu0 0.0
        %4547 = vmatprep.subr.mxu0 0.0
        %4548 = vmatpush1.msra.mxu0 0.0
        %4549 = vmatprep.subr.mxu0 0.0
        %4550 = vmatpush1.msra.mxu0 0.0
        %4551 = vmatprep.subr.mxu0 0.0
        %4552 = vmatpush1.msra.mxu0 0.0
        %4553 = vmatprep.subr.mxu0 0.0
        %4554 = vmatpush1.msra.mxu0 0.0
        %4555 = vmatprep.subr.mxu0 0.0
        %4556 = vmatpush1.msra.mxu0 0.0
        %4557 = vmatprep.subr.mxu0 0.0
        %4558 = vmatpush1.msra.mxu0 0.0
        %4559 = vmatprep.subr.mxu0 0.0
        %4560 = vmatpush1.msra.mxu0 0.0
        %4561 = vmatprep.subr.mxu0 0.0
        %4562 = vmatpush1.msra.mxu0 0.0
        %4563 = vmatprep.subr.mxu0 0.0
        %4564 = vmatpush1.msra.mxu0 0.0
        %4565 = vmatprep.subr.mxu0 0.0
        %4566 = vmatpush1.msra.mxu0 0.0
        %4567 = vmatprep.subr.mxu0 0.0
        %4568 = vmatpush1.msra.mxu0 0.0
        %4569 = vmatprep.subr.mxu0 0.0
        %4570 = vmatpush1.msra.mxu0 0.0
        %4571 = vmatprep.subr.mxu0 0.0
        %4572 = vmatpush1.msra.mxu0 0.0
        %4573 = vmatprep.subr.mxu0 0.0
        %4574 = vmatpush1.msra.mxu0 0.0
        %4575 = vmatprep.subr.mxu0 0.0
        %4576 = vmatpush1.msra.mxu0 0.0
        %4577 = vmatprep.subr.mxu0 0.0
        %4578 = vmatpush1.msra.mxu0 0.0
        %4579 = vmatprep.subr.mxu0 0.0
        %4580 = vmatpush1.msra.mxu0 0.0
        %4581 = vmatprep.subr.mxu0 0.0
        %4582 = vmatpush1.msra.mxu0 0.0
        %4583 = vmatprep.subr.mxu0 0.0
        %4584 = vmatpush1.msra.mxu0 0.0
        %4585 = vmatprep.subr.mxu0 0.0
        %4586 = vmatpush1.msra.mxu0 0.0
        %4587 = vmatprep.subr.mxu0 0.0
        %4588 = vmatpush1.msra.mxu0 0.0
        %4589 = vmatprep.subr.mxu0 0.0
        %4590 = vmatpush1.msra.mxu0 0.0
        %4591 = vmatprep.subr.mxu0 0.0
        %4592 = vmatpush1.msra.mxu0 0.0
        %4593 = vmatprep.subr.mxu0 0.0
        %4594 = vmatpush1.msra.mxu0 0.0
        %4595 = vmatprep.mubr.f32.mxu0 0.0
        %4596 = vmatmul.mubr.f32.gmra.mrb[0].mxu0 %v4508
        %v4597 = vpop.f32.mrb[0].mxu0
        %v4598 = vadd.f32 0.0, %v4597
        %v4599 = vpop.f32.mrb[0].mxu0
        %4600 = vmatprep.mubr.f32.mxu0 0.0
        %4601 = vmatmul.mubr.f32.gmra.mrb[0].mxu0 %v4511
        %v4602 = vpop.f32.mrb[0].mxu0
        %v4603 = vadd.f32 0.0, %v4602
        %v4604 = vpop.f32.mrb[0].mxu0
        %4605 = vmatprep.mubr.f32.mxu0 0.0
        %4606 = vmatmul.mubr.f32.gmra.mrb[0].mxu0 %v4514
        %v4607 = vpop.f32.mrb[0].mxu0
        %v4608 = vadd.f32 0.0, %v4607
        %v4609 = vpop.f32.mrb[0].mxu0
        %4610 = vmatprep.mubr.f32.mxu0 0.0
        %4611 = vmatmul.mubr.f32.gmra.mrb[0].mxu0 %v4517
        %v4612 = vpop.f32.mrb[0].mxu0
        %v4613 = vadd.f32 0.0, %v4612
        %v4614 = vpop.f32.mrb[0].mxu0
        %4615 = vmatprep.mubr.f32.mxu0 0.0
        %4616 = vmatmul.mubr.f32.gmra.mrb[0].mxu0 %v4520
        %v4617 = vpop.f32.mrb[0].mxu0
        %v4618 = vadd.f32 0.0, %v4617
        %v4619 = vpop.f32.mrb[0].mxu0
        %4620 = vmatprep.mubr.f32.mxu0 0.0
        %4621 = vmatmul.mubr.f32.gmra.mrb[0].mxu0 %v4523
        %v4622 = vpop.f32.mrb[0].mxu0
        %v4623 = vadd.f32 0.0, %v4622
        %v4624 = vpop.f32.mrb[0].mxu0
        %4625 = vmatprep.mubr.f32.mxu0 0.0
        %4626 = vmatmul.mubr.f32.gmra.mrb[0].mxu0 %v4526
        %v4627 = vpop.f32.mrb[0].mxu0
        %v4628 = vadd.f32 0.0, %v4627
        %v4629 = vpop.f32.mrb[0].mxu0
        %4630 = vmatprep.mubr.f32.mxu0 0.0
        %4631 = vmatmul.mubr.f32.gmra.mrb[0].mxu0 %v4529
        %v4632 = vpop.f32.mrb[0].mxu0
        %v4633 = vadd.f32 0.0, %v4632
        %v4634 = vpop.f32.mrb[0].mxu0
        %4635 = vdwg.mxu0
        %v4636 = vadd.f32 %v4484, %v4598
        %v4637 = vadd.f32 %v4485, %v4603
        %v4638 = vadd.f32 %v4486, %v4608
        %v4639 = vadd.f32 %v4487, %v4613
        %v4640 = vadd.f32 %v4488, %v4618
        %v4641 = vadd.f32 %v4489, %v4623
        %v4642 = vadd.f32 %v4490, %v4628
        %v4643 = vadd.f32 %v4491, %v4633
        %v4644 = vld [vmem:[%s4] sm:$0x1]
        %v4646 = vlaneseq
        %v4647 = vshrl.u32 %v4646, 7
        %v4648 = vsub.s32 0, %v4647
        %v4649 = vrot.slane %v4644, %v4648
        %v4651 = vadd.f32 %v4636, %v4649
        %v4652 = vadd.f32 %v4637, %v4649
        %v4653 = vadd.f32 %v4638, %v4649
        %v4654 = vadd.f32 %v4639, %v4649
        %v4655 = vadd.f32 %v4640, %v4649
        %v4656 = vadd.f32 %v4641, %v4649
        %v4657 = vadd.f32 %v4642, %v4649
        %v4658 = vadd.f32 %v4643, %v4649
        %v4659 = vmax.f32 %v4651, 0.0
        %v4660 = vmax.f32 %v4652, 0.0
        %v4661 = vmax.f32 %v4653, 0.0
        %v4662 = vmax.f32 %v4654, 0.0
        %v4663 = vmax.f32 %v4655, 0.0
        %v4664 = vmax.f32 %v4656, 0.0
        %v4665 = vmax.f32 %v4657, 0.0
        %v4666 = vmax.f32 %v4658, 0.0
        %4667 = vst.msk [vmem:[#allocation9] sm:$0xff] %vm1381, %v4659
        %4668 = vst.msk [vmem:[#allocation9 + $0x8] sm:$0xff] %vm1381, %v4660
        %4669 = vst.msk [vmem:[#allocation9 + $0x10] sm:$0xff] %vm1381, %v4661
        %4670 = vst.msk [vmem:[#allocation9 + $0x18] sm:$0xff] %vm1381, %v4662
        %4671 = vst.msk [vmem:[#allocation9 + $0x20] sm:$0xff] %vm1381, %v4663
        %4672 = vst.msk [vmem:[#allocation9 + $0x28] sm:$0xff] %vm1381, %v4664
        %4673 = vst.msk [vmem:[#allocation9 + $0x30] sm:$0xff] %vm1381, %v4665
        %4674 = vst.msk [vmem:[#allocation9 + $0x38] sm:$0xff] %vm1381, %v4666
        %4675 = vst.msk [vmem:[#allocation4] sm:$0xff] %vm1381, 0.0
        %vm4676 = vcmask 128000
        %4677 = vst.msk [vmem:[#allocation4 + $0x8] sm:$0x3f] %vm4676, 0.0
        %4678 = vst.msk [vmem:[#allocation4 + $0x10] sm:$0xff] %vm1381, 0.0
        %4679 = vst.msk [vmem:[#allocation4 + $0x18] sm:$0x3f] %vm4676, 0.0
        %4680 = vst.msk [vmem:[#allocation4 + $0x20] sm:$0xff] %vm1381, 0.0
        %4681 = vst.msk [vmem:[#allocation4 + $0x28] sm:$0x3f] %vm4676, 0.0
        %4682 = vst.msk [vmem:[#allocation4 + $0x30] sm:$0xff] %vm1381, 0.0
        %4683 = vst.msk [vmem:[#allocation4 + $0x38] sm:$0x3f] %vm4676, 0.0
        %4684 = vst.msk [vmem:[#allocation4 + $0x40] sm:$0xff] %vm1381, 0.0
        %4685 = vst.msk [vmem:[#allocation4 + $0x48] sm:$0x3f] %vm4676, 0.0
        %4686 = vst.msk [vmem:[#allocation4 + $0x50] sm:$0xff] %vm1381, 0.0
        %4687 = vst.msk [vmem:[#allocation4 + $0x58] sm:$0x3f] %vm4676, 0.0
        %4688 = vst.msk [vmem:[#allocation4 + $0x60] sm:$0xff] %vm1381, 0.0
        %4689 = vst.msk [vmem:[#allocation4 + $0x68] sm:$0x3f] %vm4676, 0.0
        %4690 = vst.msk [vmem:[#allocation4 + $0x70] sm:$0xff] %vm1381, 0.0
        %4691 = vst.msk [vmem:[#allocation4 + $0x78] sm:$0x3f] %vm4676, 0.0
        %4692 = vst.msk [vmem:[#allocation4 + $0x80] sm:$0xff] %vm1381, 0.0
        %4693 = vst.msk [vmem:[#allocation4 + $0x88] sm:$0x3f] %vm4676, 0.0
        %4694 = vst.msk [vmem:[#allocation4 + $0x90] sm:$0xff] %vm1381, 0.0
        %4695 = vst.msk [vmem:[#allocation4 + $0x98] sm:$0x3f] %vm4676, 0.0
        %v4696 = vld [vmem:[#allocation9] ss:$2 sm:$0xf]
        %s4697 = scalar_lea.vmem [#allocation9], 16
        %v4698 = vld [vmem:[%s4697] ss:$2 sm:$0xf]
        %s4699 = scalar_lea.vmem [#allocation9], 32
        %v4700 = vld [vmem:[%s4699] ss:$2 sm:$0xf]
        %s4701 = scalar_lea.vmem [#allocation9], 48
        %v4702 = vld [vmem:[%s4701] ss:$2 sm:$0xf]
        %s4703 = scalar_lea.vmem [#allocation9], 1
        %v4704 = vld [vmem:[%s4703] ss:$2 sm:$0xf]
        %s4705 = scalar_lea.vmem [#allocation9], 17
        %v4706 = vld [vmem:[%s4705] ss:$2 sm:$0xf]
        %s4707 = scalar_lea.vmem [#allocation9], 33
        %v4708 = vld [vmem:[%s4707] ss:$2 sm:$0xf]
        %s4709 = scalar_lea.vmem [#allocation9], 49
        %v4710 = vld [vmem:[%s4709] ss:$2 sm:$0xf]
        %s4711 = scalar_lea.vmem [#allocation9], 8
        %v4712 = vld [vmem:[%s4711] ss:$2 sm:$0xf]
        %s4713 = scalar_lea.vmem %s4711, 16 [#allocation9]
        %v4714 = vld [vmem:[%s4713] ss:$2 sm:$0xf]
        %s4715 = scalar_lea.vmem %s4711, 32 [#allocation9]
        %v4716 = vld [vmem:[%s4715] ss:$2 sm:$0xf]
        %s4717 = scalar_lea.vmem %s4711, 48 [#allocation9]
        %v4718 = vld [vmem:[%s4717] ss:$2 sm:$0xf]
        %s4719 = scalar_lea.vmem %s4711, 1 [#allocation9]
        %v4720 = vld [vmem:[%s4719] ss:$2 sm:$0xf]
        %s4721 = scalar_lea.vmem %s4711, 17 [#allocation9]
        %v4722 = vld [vmem:[%s4721] ss:$2 sm:$0xf]
        %s4723 = scalar_lea.vmem %s4711, 33 [#allocation9]
        %v4724 = vld [vmem:[%s4723] ss:$2 sm:$0xf]
        %s4725 = scalar_lea.vmem %s4711, 49 [#allocation9]
        %v4726 = vld [vmem:[%s4725] ss:$2 sm:$0xf]
        %v4727 = vmax.f32 %v4696, %v4704
        %v4728 = vmax.f32 %v4698, %v4706
        %v4729 = vmax.f32 %v4700, %v4708
        %v4730 = vmax.f32 %v4702, %v4710
        %v4731 = vmax.f32 %v4712, %v4720
        %v4732 = vmax.f32 %v4714, %v4722
        %v4733 = vmax.f32 %v4716, %v4724
        %v4734 = vmax.f32 %v4718, %v4726
        %v4735 = vmax.f32 %v4727, %v4731
        %v4736 = vmax.f32 %v4728, %v4732
        %v4737 = vmax.f32 %v4729, %v4733
        %v4738 = vmax.f32 %v4730, %v4734
        %s4739 = scalar_lea.vmem [#allocation4], 48
        %vm4740 = vcmask 125952
        %4741 = vst.msk [vmem:[%s4739 + $0x3] sm:$0xf] %vm4740, %v4735
        %4742 = vst.msk [vmem:[%s4739 + $0x13] sm:$0xf] %vm4740, %v4736
        %4743 = vst.msk [vmem:[%s4739 + $0x23] sm:$0xf] %vm4740, %v4737
        %4744 = vst.msk [vmem:[%s4739 + $0x33] sm:$0xf] %vm4740, %v4738
        %v4745 = vld [vmem:[#allocation4] sm:$0xff]
        %v4746 = vld [vmem:[#allocation4 + $0x10] sm:$0xff]
        %v4747 = vld [vmem:[#allocation4 + $0x20] sm:$0xff]
        %v4748 = vld [vmem:[#allocation4 + $0x30] sm:$0xff]
        %v4749 = vld [vmem:[#allocation4 + $0x40] sm:$0xff]
        %v4750 = vld [vmem:[#allocation4 + $0x50] sm:$0xff]
        %v4751 = vld [vmem:[#allocation4 + $0x60] sm:$0xff]
        %v4752 = vld [vmem:[#allocation4 + $0x70] sm:$0xff]
        %v4753 = vld [vmem:[#allocation4 + $0x80] sm:$0xff]
        %v4754 = vld [vmem:[#allocation4 + $0x90] sm:$0xff]
        %v4755 = vld [vmem:[#allocation4 + $0x1] sm:$0xff]
        %v4756 = vld [vmem:[#allocation4 + $0x11] sm:$0xff]
        %v4757 = vld [vmem:[#allocation4 + $0x21] sm:$0xff]
        %v4758 = vld [vmem:[#allocation4 + $0x31] sm:$0xff]
        %v4759 = vld [vmem:[#allocation4 + $0x41] sm:$0xff]
        %v4760 = vld [vmem:[#allocation4 + $0x51] sm:$0xff]
        %v4761 = vld [vmem:[#allocation4 + $0x61] sm:$0xff]
        %v4762 = vld [vmem:[#allocation4 + $0x71] sm:$0xff]
        %v4763 = vld [vmem:[#allocation4 + $0x81] sm:$0xff]
        %v4764 = vld [vmem:[#allocation4 + $0x91] sm:$0xff]
        %v4765 = vld [vmem:[#allocation4 + $0x2] sm:$0xff]
        %v4766 = vld [vmem:[#allocation4 + $0x12] sm:$0xff]
        %v4767 = vld [vmem:[#allocation4 + $0x22] sm:$0xff]
        %v4768 = vld [vmem:[#allocation4 + $0x32] sm:$0xff]
        %v4769 = vld [vmem:[#allocation4 + $0x42] sm:$0xff]
        %v4770 = vld [vmem:[#allocation4 + $0x52] sm:$0xff]
        %v4771 = vld [vmem:[#allocation4 + $0x62] sm:$0xff]
        %v4772 = vld [vmem:[#allocation4 + $0x72] sm:$0xff]
        %v4773 = vld [vmem:[#allocation4 + $0x82] sm:$0xff]
        %v4774 = vld [vmem:[#allocation4 + $0x92] sm:$0xff]
        %v4775 = vld [vmem:[#allocation4 + $0x3] sm:$0xff]
        %v4776 = vld [vmem:[#allocation4 + $0x13] sm:$0xff]
        %v4777 = vld [vmem:[#allocation4 + $0x23] sm:$0xff]
        %v4778 = vld [vmem:[#allocation4 + $0x33] sm:$0xff]
        %v4779 = vld [vmem:[#allocation4 + $0x43] sm:$0xff]
        %v4780 = vld [vmem:[#allocation4 + $0x53] sm:$0xff]
        %v4781 = vld [vmem:[#allocation4 + $0x63] sm:$0xff]
        %v4782 = vld [vmem:[#allocation4 + $0x73] sm:$0xff]
        %v4783 = vld [vmem:[#allocation4 + $0x83] sm:$0xff]
        %v4784 = vld [vmem:[#allocation4 + $0x93] sm:$0xff]
        %v4785 = vld [vmem:[#allocation4 + $0x4] sm:$0xff]
        %v4786 = vld [vmem:[#allocation4 + $0x14] sm:$0xff]
        %v4787 = vld [vmem:[#allocation4 + $0x24] sm:$0xff]
        %v4788 = vld [vmem:[#allocation4 + $0x34] sm:$0xff]
        %v4789 = vld [vmem:[#allocation4 + $0x44] sm:$0xff]
        %v4790 = vld [vmem:[#allocation4 + $0x54] sm:$0xff]
        %v4791 = vld [vmem:[#allocation4 + $0x64] sm:$0xff]
        %v4792 = vld [vmem:[#allocation4 + $0x74] sm:$0xff]
        %v4793 = vld [vmem:[#allocation4 + $0x84] sm:$0xff]
        %v4794 = vld [vmem:[#allocation4 + $0x94] sm:$0xff]
        %v4795 = vld [vmem:[#allocation4 + $0x5] sm:$0xff]
        %v4796 = vld [vmem:[#allocation4 + $0x15] sm:$0xff]
        %v4797 = vld [vmem:[#allocation4 + $0x25] sm:$0xff]
        %v4798 = vld [vmem:[#allocation4 + $0x35] sm:$0xff]
        %v4799 = vld [vmem:[#allocation4 + $0x45] sm:$0xff]
        %v4800 = vld [vmem:[#allocation4 + $0x55] sm:$0xff]
        %v4801 = vld [vmem:[#allocation4 + $0x65] sm:$0xff]
        %v4802 = vld [vmem:[#allocation4 + $0x75] sm:$0xff]
        %v4803 = vld [vmem:[#allocation4 + $0x85] sm:$0xff]
        %v4804 = vld [vmem:[#allocation4 + $0x95] sm:$0xff]
        %v4805 = vld [vmem:[#allocation4 + $0x6] sm:$0xff]
        %v4806 = vld [vmem:[#allocation4 + $0x16] sm:$0xff]
        %v4807 = vld [vmem:[#allocation4 + $0x26] sm:$0xff]
        %v4808 = vld [vmem:[#allocation4 + $0x36] sm:$0xff]
        %v4809 = vld [vmem:[#allocation4 + $0x46] sm:$0xff]
        %v4810 = vld [vmem:[#allocation4 + $0x56] sm:$0xff]
        %v4811 = vld [vmem:[#allocation4 + $0x66] sm:$0xff]
        %v4812 = vld [vmem:[#allocation4 + $0x76] sm:$0xff]
        %v4813 = vld [vmem:[#allocation4 + $0x86] sm:$0xff]
        %v4814 = vld [vmem:[#allocation4 + $0x96] sm:$0xff]
        %4825 = vrot.lane.b32.xlu0 %v4755, 16
        %v4826 = vpop.permute.xlu0 %4825
        %4827 = vrot.lane.b32.xlu0 %v4756, 16
        %v4828 = vpop.permute.xlu0 %4827
        %4829 = vrot.lane.b32.xlu0 %v4757, 16
        %v4830 = vpop.permute.xlu0 %4829
        %4831 = vrot.lane.b32.xlu0 %v4758, 16
        %v4832 = vpop.permute.xlu0 %4831
        %4833 = vrot.lane.b32.xlu0 %v4759, 16
        %v4834 = vpop.permute.xlu0 %4833
        %4835 = vrot.lane.b32.xlu0 %v4760, 16
        %v4836 = vpop.permute.xlu0 %4835
        %4837 = vrot.lane.b32.xlu0 %v4761, 16
        %v4838 = vpop.permute.xlu0 %4837
        %4839 = vrot.lane.b32.xlu0 %v4762, 16
        %v4840 = vpop.permute.xlu0 %4839
        %4841 = vrot.lane.b32.xlu0 %v4763, 16
        %v4842 = vpop.permute.xlu0 %4841
        %4843 = vrot.lane.b32.xlu0 %v4764, 16
        %v4844 = vpop.permute.xlu0 %4843
        %4865 = vrot.lane.b32.xlu0 %v4765, 32
        %v4866 = vpop.permute.xlu0 %4865
        %4867 = vrot.lane.b32.xlu0 %v4766, 32
        %v4868 = vpop.permute.xlu0 %4867
        %4869 = vrot.lane.b32.xlu0 %v4767, 32
        %v4870 = vpop.permute.xlu0 %4869
        %4871 = vrot.lane.b32.xlu0 %v4768, 32
        %v4872 = vpop.permute.xlu0 %4871
        %4873 = vrot.lane.b32.xlu0 %v4769, 32
        %v4874 = vpop.permute.xlu0 %4873
        %4875 = vrot.lane.b32.xlu0 %v4770, 32
        %v4876 = vpop.permute.xlu0 %4875
        %4877 = vrot.lane.b32.xlu0 %v4771, 32
        %v4878 = vpop.permute.xlu0 %4877
        %4879 = vrot.lane.b32.xlu0 %v4772, 32
        %v4880 = vpop.permute.xlu0 %4879
        %4881 = vrot.lane.b32.xlu0 %v4773, 32
        %v4882 = vpop.permute.xlu0 %4881
        %4883 = vrot.lane.b32.xlu0 %v4774, 32
        %v4884 = vpop.permute.xlu0 %4883
        %4905 = vrot.lane.b32.xlu0 %v4775, 48
        %v4906 = vpop.permute.xlu0 %4905
        %4907 = vrot.lane.b32.xlu0 %v4776, 48
        %v4908 = vpop.permute.xlu0 %4907
        %4909 = vrot.lane.b32.xlu0 %v4777, 48
        %v4910 = vpop.permute.xlu0 %4909
        %4911 = vrot.lane.b32.xlu0 %v4778, 48
        %v4912 = vpop.permute.xlu0 %4911
        %4913 = vrot.lane.b32.xlu0 %v4779, 48
        %v4914 = vpop.permute.xlu0 %4913
        %4915 = vrot.lane.b32.xlu0 %v4780, 48
        %v4916 = vpop.permute.xlu0 %4915
        %4917 = vrot.lane.b32.xlu0 %v4781, 48
        %v4918 = vpop.permute.xlu0 %4917
        %4919 = vrot.lane.b32.xlu0 %v4782, 48
        %v4920 = vpop.permute.xlu0 %4919
        %4921 = vrot.lane.b32.xlu0 %v4783, 48
        %v4922 = vpop.permute.xlu0 %4921
        %4923 = vrot.lane.b32.xlu0 %v4784, 48
        %v4924 = vpop.permute.xlu0 %4923
        %4945 = vrot.lane.b32.xlu0 %v4785, 64
        %v4946 = vpop.permute.xlu0 %4945
        %4947 = vrot.lane.b32.xlu0 %v4786, 64
        %v4948 = vpop.permute.xlu0 %4947
        %4949 = vrot.lane.b32.xlu0 %v4787, 64
        %v4950 = vpop.permute.xlu0 %4949
        %4951 = vrot.lane.b32.xlu0 %v4788, 64
        %v4952 = vpop.permute.xlu0 %4951
        %4953 = vrot.lane.b32.xlu0 %v4789, 64
        %v4954 = vpop.permute.xlu0 %4953
        %4955 = vrot.lane.b32.xlu0 %v4790, 64
        %v4956 = vpop.permute.xlu0 %4955
        %4957 = vrot.lane.b32.xlu0 %v4791, 64
        %v4958 = vpop.permute.xlu0 %4957
        %4959 = vrot.lane.b32.xlu0 %v4792, 64
        %v4960 = vpop.permute.xlu0 %4959
        %4961 = vrot.lane.b32.xlu0 %v4793, 64
        %v4962 = vpop.permute.xlu0 %4961
        %4963 = vrot.lane.b32.xlu0 %v4794, 64
        %v4964 = vpop.permute.xlu0 %4963
        %4985 = vrot.lane.b32.xlu0 %v4795, 80
        %v4986 = vpop.permute.xlu0 %4985
        %4987 = vrot.lane.b32.xlu0 %v4796, 80
        %v4988 = vpop.permute.xlu0 %4987
        %4989 = vrot.lane.b32.xlu0 %v4797, 80
        %v4990 = vpop.permute.xlu0 %4989
        %4991 = vrot.lane.b32.xlu0 %v4798, 80
        %v4992 = vpop.permute.xlu0 %4991
        %4993 = vrot.lane.b32.xlu0 %v4799, 80
        %v4994 = vpop.permute.xlu0 %4993
        %4995 = vrot.lane.b32.xlu0 %v4800, 80
        %v4996 = vpop.permute.xlu0 %4995
        %4997 = vrot.lane.b32.xlu0 %v4801, 80
        %v4998 = vpop.permute.xlu0 %4997
        %4999 = vrot.lane.b32.xlu0 %v4802, 80
        %v5000 = vpop.permute.xlu0 %4999
        %5001 = vrot.lane.b32.xlu0 %v4803, 80
        %v5002 = vpop.permute.xlu0 %5001
        %5003 = vrot.lane.b32.xlu0 %v4804, 80
        %v5004 = vpop.permute.xlu0 %5003
        %5025 = vrot.lane.b32.xlu0 %v4805, 96
        %v5026 = vpop.permute.xlu0 %5025
        %5027 = vrot.lane.b32.xlu0 %v4806, 96
        %v5028 = vpop.permute.xlu0 %5027
        %5029 = vrot.lane.b32.xlu0 %v4807, 96
        %v5030 = vpop.permute.xlu0 %5029
        %5031 = vrot.lane.b32.xlu0 %v4808, 96
        %v5032 = vpop.permute.xlu0 %5031
        %5033 = vrot.lane.b32.xlu0 %v4809, 96
        %v5034 = vpop.permute.xlu0 %5033
        %5035 = vrot.lane.b32.xlu0 %v4810, 96
        %v5036 = vpop.permute.xlu0 %5035
        %5037 = vrot.lane.b32.xlu0 %v4811, 96
        %v5038 = vpop.permute.xlu0 %5037
        %5039 = vrot.lane.b32.xlu0 %v4812, 96
        %v5040 = vpop.permute.xlu0 %5039
        %5041 = vrot.lane.b32.xlu0 %v4813, 96
        %v5042 = vpop.permute.xlu0 %5041
        %5043 = vrot.lane.b32.xlu0 %v4814, 96
        %v5044 = vpop.permute.xlu0 %5043
        %v5055 = vsel %vm1381, %v4745, %v4826
        %v5056 = vsel %vm1381, %v4746, %v4828
        %v5057 = vsel %vm1381, %v4747, %v4830
        %v5058 = vsel %vm1381, %v4748, %v4832
        %v5059 = vsel %vm1381, %v4749, %v4834
        %v5060 = vsel %vm1381, %v4750, %v4836
        %v5061 = vsel %vm1381, %v4751, %v4838
        %v5062 = vsel %vm1381, %v4752, %v4840
        %v5063 = vsel %vm1381, %v4753, %v4842
        %v5064 = vsel %vm1381, %v4754, %v4844
        %v5065 = vsel %vm3876, %v5055, %v4866
        %v5066 = vsel %vm3876, %v5056, %v4868
        %v5067 = vsel %vm3876, %v5057, %v4870
        %v5068 = vsel %vm3876, %v5058, %v4872
        %v5069 = vsel %vm3876, %v5059, %v4874
        %v5070 = vsel %vm3876, %v5060, %v4876
        %v5071 = vsel %vm3876, %v5061, %v4878
        %v5072 = vsel %vm3876, %v5062, %v4880
        %v5073 = vsel %vm3876, %v5063, %v4882
        %v5074 = vsel %vm3876, %v5064, %v4884
        %vm5075 = vcmask 392192
        %v5076 = vsel %vm5075, %v5065, %v4906
        %v5077 = vsel %vm5075, %v5066, %v4908
        %v5078 = vsel %vm5075, %v5067, %v4910
        %v5079 = vsel %vm5075, %v5068, %v4912
        %v5080 = vsel %vm5075, %v5069, %v4914
        %v5081 = vsel %vm5075, %v5070, %v4916
        %v5082 = vsel %vm5075, %v5071, %v4918
        %v5083 = vsel %vm5075, %v5072, %v4920
        %v5084 = vsel %vm5075, %v5073, %v4922
        %v5085 = vsel %vm5075, %v5074, %v4924
        %vm5086 = vcmask 523264
        %v5087 = vsel %vm5086, %v5076, %v4946
        %v5088 = vsel %vm5086, %v5077, %v4948
        %v5089 = vsel %vm5086, %v5078, %v4950
        %v5090 = vsel %vm5086, %v5079, %v4952
        %v5091 = vsel %vm5086, %v5080, %v4954
        %v5092 = vsel %vm5086, %v5081, %v4956
        %v5093 = vsel %vm5086, %v5082, %v4958
        %v5094 = vsel %vm5086, %v5083, %v4960
        %v5095 = vsel %vm5086, %v5084, %v4962
        %v5096 = vsel %vm5086, %v5085, %v4964
        %vm5097 = vcmask 654336
        %v5098 = vsel %vm5097, %v5087, %v4986
        %v5099 = vsel %vm5097, %v5088, %v4988
        %v5100 = vsel %vm5097, %v5089, %v4990
        %v5101 = vsel %vm5097, %v5090, %v4992
        %v5102 = vsel %vm5097, %v5091, %v4994
        %v5103 = vsel %vm5097, %v5092, %v4996
        %v5104 = vsel %vm5097, %v5093, %v4998
        %v5105 = vsel %vm5097, %v5094, %v5000
        %v5106 = vsel %vm5097, %v5095, %v5002
        %v5107 = vsel %vm5097, %v5096, %v5004
        %vm5108 = vcmask 785408
        %v5109 = vsel %vm5108, %v5098, %v5026
        %v5110 = vsel %vm5108, %v5099, %v5028
        %v5111 = vsel %vm5108, %v5100, %v5030
        %v5112 = vsel %vm5108, %v5101, %v5032
        %v5113 = vsel %vm5108, %v5102, %v5034
        %v5114 = vsel %vm5108, %v5103, %v5036
        %v5115 = vsel %vm5108, %v5104, %v5038
        %v5116 = vsel %vm5108, %v5105, %v5040
        %v5117 = vsel %vm5108, %v5106, %v5042
        %v5118 = vsel %vm5108, %v5107, %v5044
        %vm5119 = vcmask 916480
        %5120 = vst.msk [vmem:[#allocation7] sm:$0xff] %vm5119, %v5109
        %5121 = vst.msk [vmem:[#allocation7 + $0x8] sm:$0xff] %vm5119, %v5110
        %5122 = vst.msk [vmem:[#allocation7 + $0x10] sm:$0xff] %vm5119, %v5111
        %5123 = vst.msk [vmem:[#allocation7 + $0x18] sm:$0xff] %vm5119, %v5112
        %5124 = vst.msk [vmem:[#allocation7 + $0x20] sm:$0xff] %vm5119, %v5113
        %5125 = vst.msk [vmem:[#allocation7 + $0x28] sm:$0xff] %vm5119, %v5114
        %5126 = vst.msk [vmem:[#allocation7 + $0x30] sm:$0xff] %vm5119, %v5115
        %5127 = vst.msk [vmem:[#allocation7 + $0x38] sm:$0xff] %vm5119, %v5116
        %5128 = vst.msk [vmem:[#allocation7 + $0x40] sm:$0xff] %vm5119, %v5117
        %5129 = vst.msk [vmem:[#allocation7 + $0x48] sm:$0xff] %vm5119, %v5118
        %v5130 = vld [vmem:[#allocation7] sm:$0xff]
        %v5131 = vld [vmem:[#allocation7 + $0x8] sm:$0xff]
        %v5132 = vld [vmem:[#allocation7 + $0x10] sm:$0xff]
        %v5133 = vld [vmem:[#allocation7 + $0x18] sm:$0xff]
        %v5134 = vld [vmem:[%s5] sm:$0xff]
        %v5135 = vld [vmem:[%s5 + $0x8] sm:$0xff]
        %v5136 = vld [vmem:[%s5 + $0x10] sm:$0xff]
        %v5137 = vld [vmem:[%s5 + $0x18] sm:$0xff]
        %v5138 = vld [vmem:[%s5 + $0x20] sm:$0xff]
        %v5139 = vld [vmem:[%s5 + $0x28] sm:$0xff]
        %v5140 = vld [vmem:[%s5 + $0x30] sm:$0xff]
        %v5141 = vld [vmem:[%s5 + $0x38] sm:$0xff]
        %v5142 = vld [vmem:[%s5 + $0x40] sm:$0xff]
        %v5143 = vld [vmem:[%s5 + $0x48] sm:$0xff]
        %v5144 = vld [vmem:[%s5 + $0x50] sm:$0xff]
        %v5145 = vld [vmem:[%s5 + $0x58] sm:$0xff]
        %v5146 = vld [vmem:[%s5 + $0x60] sm:$0xff]
        %v5147 = vld [vmem:[%s5 + $0x68] sm:$0xff]
        %s5148 = scalar_lea.vmem [#allocation7], 8
        %v5149 = vld [vmem:[%s5148] sm:$0xff]
        %v5150 = vld [vmem:[%s5148 + $0x8] sm:$0xff]
        %v5151 = vld [vmem:[%s5148 + $0x10] sm:$0xff]
        %v5152 = vld [vmem:[%s5148 + $0x18] sm:$0xff]
        %s5153 = scalar_lea.vmem %s5, 112
        %v5154 = vld [vmem:[%s5153] sm:$0xff]
        %v5155 = vld [vmem:[%s5153 + $0x8] sm:$0xff]
        %v5156 = vld [vmem:[%s5153 + $0x10] sm:$0xff]
        %v5157 = vld [vmem:[%s5153 + $0x18] sm:$0xff]
        %v5158 = vld [vmem:[%s5153 + $0x20] sm:$0xff]
        %v5159 = vld [vmem:[%s5153 + $0x28] sm:$0xff]
        %v5160 = vld [vmem:[%s5153 + $0x30] sm:$0xff]
        %v5161 = vld [vmem:[%s5153 + $0x38] sm:$0xff]
        %v5162 = vld [vmem:[%s5153 + $0x40] sm:$0xff]
        %v5163 = vld [vmem:[%s5153 + $0x48] sm:$0xff]
        %v5164 = vld [vmem:[%s5153 + $0x50] sm:$0xff]
        %v5165 = vld [vmem:[%s5153 + $0x58] sm:$0xff]
        %v5166 = vld [vmem:[%s5153 + $0x60] sm:$0xff]
        %v5167 = vld [vmem:[%s5153 + $0x68] sm:$0xff]
        %v5169 = vsel %vm5119, %v5149, 0
        %v5172 = vsel %vm5119, %v5150, 0
        %v5175 = vsel %vm5119, %v5151, 0
        %v5178 = vsel %vm5119, %v5152, 0
        %5180 = vmatprep.subr.mxu0 0.0
        %5181 = vmatpush1.msra.mxu0 %v5154
        %5182 = vmatprep.subr.mxu0 0.0
        %5183 = vmatpush1.msra.mxu0 %v5155
        %5184 = vmatprep.subr.mxu0 0.0
        %5185 = vmatpush1.msra.mxu0 %v5156
        %5186 = vmatprep.subr.mxu0 0.0
        %5187 = vmatpush1.msra.mxu0 %v5157
        %5188 = vmatprep.subr.mxu0 0.0
        %5189 = vmatpush1.msra.mxu0 %v5158
        %5190 = vmatprep.subr.mxu0 0.0
        %5191 = vmatpush1.msra.mxu0 %v5159
        %5192 = vmatprep.subr.mxu0 0.0
        %5193 = vmatpush1.msra.mxu0 %v5160
        %5194 = vmatprep.subr.mxu0 0.0
        %5195 = vmatpush1.msra.mxu0 %v5161
        %5196 = vmatprep.subr.mxu0 0.0
        %5197 = vmatpush1.msra.mxu0 %v5162
        %5198 = vmatprep.subr.mxu0 0.0
        %5199 = vmatpush1.msra.mxu0 %v5163
        %5200 = vmatprep.subr.mxu0 0.0
        %5201 = vmatpush1.msra.mxu0 %v5164
        %5202 = vmatprep.subr.mxu0 0.0
        %5203 = vmatpush1.msra.mxu0 %v5165
        %5204 = vmatprep.subr.mxu0 0.0
        %5205 = vmatpush1.msra.mxu0 %v5166
        %5206 = vmatprep.subr.mxu0 0.0
        %5207 = vmatpush1.msra.mxu0 %v5167
        %5208 = vmatprep.subr.mxu0 0.0
        %5209 = vmatpush1.msra.mxu0 0.0
        %5210 = vmatprep.subr.mxu0 0.0
        %5211 = vmatpush1.msra.mxu0 0.0
        %5212 = vmatprep.subr.mxu0 0.0
        %5213 = vmatpush1.msra.mxu0 0.0
        %5214 = vmatprep.subr.mxu0 0.0
        %5215 = vmatpush1.msra.mxu0 0.0
        %5216 = vmatprep.subr.mxu0 0.0
        %5217 = vmatpush1.msra.mxu0 0.0
        %5218 = vmatprep.subr.mxu0 0.0
        %5219 = vmatpush1.msra.mxu0 0.0
        %5220 = vmatprep.subr.mxu0 0.0
        %5221 = vmatpush1.msra.mxu0 0.0
        %5222 = vmatprep.subr.mxu0 0.0
        %5223 = vmatpush1.msra.mxu0 0.0
        %5224 = vmatprep.subr.mxu0 0.0
        %5225 = vmatpush1.msra.mxu0 0.0
        %5226 = vmatprep.subr.mxu0 0.0
        %5227 = vmatpush1.msra.mxu0 0.0
        %5228 = vmatprep.subr.mxu0 0.0
        %5229 = vmatpush1.msra.mxu0 0.0
        %5230 = vmatprep.subr.mxu0 0.0
        %5231 = vmatpush1.msra.mxu0 0.0
        %5232 = vmatprep.subr.mxu0 0.0
        %5233 = vmatpush1.msra.mxu0 0.0
        %5234 = vmatprep.subr.mxu0 0.0
        %5235 = vmatpush1.msra.mxu0 0.0
        %5236 = vmatprep.subr.mxu0 0.0
        %5237 = vmatpush1.msra.mxu0 0.0
        %5238 = vmatprep.subr.mxu0 0.0
        %5239 = vmatpush1.msra.mxu0 0.0
        %5240 = vmatprep.subr.mxu0 0.0
        %5241 = vmatpush1.msra.mxu0 0.0
        %5242 = vmatprep.subr.mxu0 0.0
        %5243 = vmatpush1.msra.mxu0 0.0
        %5244 = vmatprep.mubr.f32.mxu0 0.0
        %5245 = vmatmul.mubr.f32.gmra.mrb[0].mxu0 %v5169
        %v5246 = vpop.f32.mrb[0].mxu0
        %v5247 = vadd.f32 0.0, %v5246
        %v5248 = vpop.f32.mrb[0].mxu0
        %5249 = vmatprep.mubr.f32.mxu0 0.0
        %5250 = vmatmul.mubr.f32.gmra.mrb[0].mxu0 %v5172
        %v5251 = vpop.f32.mrb[0].mxu0
        %v5252 = vadd.f32 0.0, %v5251
        %v5253 = vpop.f32.mrb[0].mxu0
        %5254 = vmatprep.mubr.f32.mxu0 0.0
        %5255 = vmatmul.mubr.f32.gmra.mrb[0].mxu0 %v5175
        %v5256 = vpop.f32.mrb[0].mxu0
        %v5257 = vadd.f32 0.0, %v5256
        %v5258 = vpop.f32.mrb[0].mxu0
        %5259 = vmatprep.mubr.f32.mxu0 0.0
        %5260 = vmatmul.mubr.f32.gmra.mrb[0].mxu0 %v5178
        %v5261 = vpop.f32.mrb[0].mxu0
        %v5262 = vadd.f32 0.0, %v5261
        %v5263 = vpop.f32.mrb[0].mxu0
        %5264 = vdwg.mxu0
        %v5266 = vsel %vm5119, %v5130, 0
        %v5269 = vsel %vm5119, %v5131, 0
        %v5272 = vsel %vm5119, %v5132, 0
        %v5275 = vsel %vm5119, %v5133, 0
        %5277 = vmatprep.subr.mxu0 0.0
        %5278 = vmatpush1.msra.mxu0 %v5134
        %5279 = vmatprep.subr.mxu0 0.0
        %5280 = vmatpush1.msra.mxu0 %v5135
        %5281 = vmatprep.subr.mxu0 0.0
        %5282 = vmatpush1.msra.mxu0 %v5136
        %5283 = vmatprep.subr.mxu0 0.0
        %5284 = vmatpush1.msra.mxu0 %v5137
        %5285 = vmatprep.subr.mxu0 0.0
        %5286 = vmatpush1.msra.mxu0 %v5138
        %5287 = vmatprep.subr.mxu0 0.0
        %5288 = vmatpush1.msra.mxu0 %v5139
        %5289 = vmatprep.subr.mxu0 0.0
        %5290 = vmatpush1.msra.mxu0 %v5140
        %5291 = vmatprep.subr.mxu0 0.0
        %5292 = vmatpush1.msra.mxu0 %v5141
        %5293 = vmatprep.subr.mxu0 0.0
        %5294 = vmatpush1.msra.mxu0 %v5142
        %5295 = vmatprep.subr.mxu0 0.0
        %5296 = vmatpush1.msra.mxu0 %v5143
        %5297 = vmatprep.subr.mxu0 0.0
        %5298 = vmatpush1.msra.mxu0 %v5144
        %5299 = vmatprep.subr.mxu0 0.0
        %5300 = vmatpush1.msra.mxu0 %v5145
        %5301 = vmatprep.subr.mxu0 0.0
        %5302 = vmatpush1.msra.mxu0 %v5146
        %5303 = vmatprep.subr.mxu0 0.0
        %5304 = vmatpush1.msra.mxu0 %v5147
        %5305 = vmatprep.subr.mxu0 0.0
        %5306 = vmatpush1.msra.mxu0 0.0
        %5307 = vmatprep.subr.mxu0 0.0
        %5308 = vmatpush1.msra.mxu0 0.0
        %5309 = vmatprep.subr.mxu0 0.0
        %5310 = vmatpush1.msra.mxu0 0.0
        %5311 = vmatprep.subr.mxu0 0.0
        %5312 = vmatpush1.msra.mxu0 0.0
        %5313 = vmatprep.subr.mxu0 0.0
        %5314 = vmatpush1.msra.mxu0 0.0
        %5315 = vmatprep.subr.mxu0 0.0
        %5316 = vmatpush1.msra.mxu0 0.0
        %5317 = vmatprep.subr.mxu0 0.0
        %5318 = vmatpush1.msra.mxu0 0.0
        %5319 = vmatprep.subr.mxu0 0.0
        %5320 = vmatpush1.msra.mxu0 0.0
        %5321 = vmatprep.subr.mxu0 0.0
        %5322 = vmatpush1.msra.mxu0 0.0
        %5323 = vmatprep.subr.mxu0 0.0
        %5324 = vmatpush1.msra.mxu0 0.0
        %5325 = vmatprep.subr.mxu0 0.0
        %5326 = vmatpush1.msra.mxu0 0.0
        %5327 = vmatprep.subr.mxu0 0.0
        %5328 = vmatpush1.msra.mxu0 0.0
        %5329 = vmatprep.subr.mxu0 0.0
        %5330 = vmatpush1.msra.mxu0 0.0
        %5331 = vmatprep.subr.mxu0 0.0
        %5332 = vmatpush1.msra.mxu0 0.0
        %5333 = vmatprep.subr.mxu0 0.0
        %5334 = vmatpush1.msra.mxu0 0.0
        %5335 = vmatprep.subr.mxu0 0.0
        %5336 = vmatpush1.msra.mxu0 0.0
        %5337 = vmatprep.subr.mxu0 0.0
        %5338 = vmatpush1.msra.mxu0 0.0
        %5339 = vmatprep.subr.mxu0 0.0
        %5340 = vmatpush1.msra.mxu0 0.0
        %5341 = vmatprep.mubr.f32.mxu0 0.0
        %5342 = vmatmul.mubr.f32.gmra.mrb[0].mxu0 %v5266
        %v5343 = vpop.f32.mrb[0].mxu0
        %v5344 = vadd.f32 %v5247, %v5343
        %v5345 = vpop.f32.mrb[0].mxu0
        %5346 = vmatprep.mubr.f32.mxu0 0.0
        %5347 = vmatmul.mubr.f32.gmra.mrb[0].mxu0 %v5269
        %v5348 = vpop.f32.mrb[0].mxu0
        %v5349 = vadd.f32 %v5252, %v5348
        %v5350 = vpop.f32.mrb[0].mxu0
        %5351 = vmatprep.mubr.f32.mxu0 0.0
        %5352 = vmatmul.mubr.f32.gmra.mrb[0].mxu0 %v5272
        %v5353 = vpop.f32.mrb[0].mxu0
        %v5354 = vadd.f32 %v5257, %v5353
        %v5355 = vpop.f32.mrb[0].mxu0
        %5356 = vmatprep.mubr.f32.mxu0 0.0
        %5357 = vmatmul.mubr.f32.gmra.mrb[0].mxu0 %v5275
        %v5358 = vpop.f32.mrb[0].mxu0
        %v5359 = vadd.f32 %v5262, %v5358
        %v5360 = vpop.f32.mrb[0].mxu0
        %5361 = vdwg.mxu0
        %s5362 = scalar_lea.vmem [#allocation7], 16
        %v5363 = vld [vmem:[%s5362] sm:$0xff]
        %v5364 = vld [vmem:[%s5362 + $0x8] sm:$0xff]
        %v5365 = vld [vmem:[%s5362 + $0x10] sm:$0xff]
        %v5366 = vld [vmem:[%s5362 + $0x18] sm:$0xff]
        %s5367 = scalar_lea.vmem %s5, 224
        %v5368 = vld [vmem:[%s5367] sm:$0xff]
        %v5369 = vld [vmem:[%s5367 + $0x8] sm:$0xff]
        %v5370 = vld [vmem:[%s5367 + $0x10] sm:$0xff]
        %v5371 = vld [vmem:[%s5367 + $0x18] sm:$0xff]
        %v5372 = vld [vmem:[%s5367 + $0x20] sm:$0xff]
        %v5373 = vld [vmem:[%s5367 + $0x28] sm:$0xff]
        %v5374 = vld [vmem:[%s5367 + $0x30] sm:$0xff]
        %v5375 = vld [vmem:[%s5367 + $0x38] sm:$0xff]
        %v5376 = vld [vmem:[%s5367 + $0x40] sm:$0xff]
        %v5377 = vld [vmem:[%s5367 + $0x48] sm:$0xff]
        %v5378 = vld [vmem:[%s5367 + $0x50] sm:$0xff]
        %v5379 = vld [vmem:[%s5367 + $0x58] sm:$0xff]
        %v5380 = vld [vmem:[%s5367 + $0x60] sm:$0xff]
        %v5381 = vld [vmem:[%s5367 + $0x68] sm:$0xff]
        %v5383 = vsel %vm5119, %v5363, 0
        %v5386 = vsel %vm5119, %v5364, 0
        %v5389 = vsel %vm5119, %v5365, 0
        %v5392 = vsel %vm5119, %v5366, 0
        %5394 = vmatprep.subr.mxu0 0.0
        %5395 = vmatpush1.msra.mxu0 %v5368
        %5396 = vmatprep.subr.mxu0 0.0
        %5397 = vmatpush1.msra.mxu0 %v5369
        %5398 = vmatprep.subr.mxu0 0.0
        %5399 = vmatpush1.msra.mxu0 %v5370
        %5400 = vmatprep.subr.mxu0 0.0
        %5401 = vmatpush1.msra.mxu0 %v5371
        %5402 = vmatprep.subr.mxu0 0.0
        %5403 = vmatpush1.msra.mxu0 %v5372
        %5404 = vmatprep.subr.mxu0 0.0
        %5405 = vmatpush1.msra.mxu0 %v5373
        %5406 = vmatprep.subr.mxu0 0.0
        %5407 = vmatpush1.msra.mxu0 %v5374
        %5408 = vmatprep.subr.mxu0 0.0
        %5409 = vmatpush1.msra.mxu0 %v5375
        %5410 = vmatprep.subr.mxu0 0.0
        %5411 = vmatpush1.msra.mxu0 %v5376
        %5412 = vmatprep.subr.mxu0 0.0
        %5413 = vmatpush1.msra.mxu0 %v5377
        %5414 = vmatprep.subr.mxu0 0.0
        %5415 = vmatpush1.msra.mxu0 %v5378
        %5416 = vmatprep.subr.mxu0 0.0
        %5417 = vmatpush1.msra.mxu0 %v5379
        %5418 = vmatprep.subr.mxu0 0.0
        %5419 = vmatpush1.msra.mxu0 %v5380
        %5420 = vmatprep.subr.mxu0 0.0
        %5421 = vmatpush1.msra.mxu0 %v5381
        %5422 = vmatprep.subr.mxu0 0.0
        %5423 = vmatpush1.msra.mxu0 0.0
        %5424 = vmatprep.subr.mxu0 0.0
        %5425 = vmatpush1.msra.mxu0 0.0
        %5426 = vmatprep.subr.mxu0 0.0
        %5427 = vmatpush1.msra.mxu0 0.0
        %5428 = vmatprep.subr.mxu0 0.0
        %5429 = vmatpush1.msra.mxu0 0.0
        %5430 = vmatprep.subr.mxu0 0.0
        %5431 = vmatpush1.msra.mxu0 0.0
        %5432 = vmatprep.subr.mxu0 0.0
        %5433 = vmatpush1.msra.mxu0 0.0
        %5434 = vmatprep.subr.mxu0 0.0
        %5435 = vmatpush1.msra.mxu0 0.0
        %5436 = vmatprep.subr.mxu0 0.0
        %5437 = vmatpush1.msra.mxu0 0.0
        %5438 = vmatprep.subr.mxu0 0.0
        %5439 = vmatpush1.msra.mxu0 0.0
        %5440 = vmatprep.subr.mxu0 0.0
        %5441 = vmatpush1.msra.mxu0 0.0
        %5442 = vmatprep.subr.mxu0 0.0
        %5443 = vmatpush1.msra.mxu0 0.0
        %5444 = vmatprep.subr.mxu0 0.0
        %5445 = vmatpush1.msra.mxu0 0.0
        %5446 = vmatprep.subr.mxu0 0.0
        %5447 = vmatpush1.msra.mxu0 0.0
        %5448 = vmatprep.subr.mxu0 0.0
        %5449 = vmatpush1.msra.mxu0 0.0
        %5450 = vmatprep.subr.mxu0 0.0
        %5451 = vmatpush1.msra.mxu0 0.0
        %5452 = vmatprep.subr.mxu0 0.0
        %5453 = vmatpush1.msra.mxu0 0.0
        %5454 = vmatprep.subr.mxu0 0.0
        %5455 = vmatpush1.msra.mxu0 0.0
        %5456 = vmatprep.subr.mxu0 0.0
        %5457 = vmatpush1.msra.mxu0 0.0
        %5458 = vmatprep.mubr.f32.mxu0 0.0
        %5459 = vmatmul.mubr.f32.gmra.mrb[0].mxu0 %v5383
        %v5460 = vpop.f32.mrb[0].mxu0
        %v5461 = vadd.f32 0.0, %v5460
        %v5462 = vpop.f32.mrb[0].mxu0
        %5463 = vmatprep.mubr.f32.mxu0 0.0
        %5464 = vmatmul.mubr.f32.gmra.mrb[0].mxu0 %v5386
        %v5465 = vpop.f32.mrb[0].mxu0
        %v5466 = vadd.f32 0.0, %v5465
        %v5467 = vpop.f32.mrb[0].mxu0
        %5468 = vmatprep.mubr.f32.mxu0 0.0
        %5469 = vmatmul.mubr.f32.gmra.mrb[0].mxu0 %v5389
        %v5470 = vpop.f32.mrb[0].mxu0
        %v5471 = vadd.f32 0.0, %v5470
        %v5472 = vpop.f32.mrb[0].mxu0
        %5473 = vmatprep.mubr.f32.mxu0 0.0
        %5474 = vmatmul.mubr.f32.gmra.mrb[0].mxu0 %v5392
        %v5475 = vpop.f32.mrb[0].mxu0
        %v5476 = vadd.f32 0.0, %v5475
        %v5477 = vpop.f32.mrb[0].mxu0
        %5478 = vdwg.mxu0
        %v5479 = vadd.f32 %v5344, %v5461
        %v5480 = vadd.f32 %v5349, %v5466
        %v5481 = vadd.f32 %v5354, %v5471
        %v5482 = vadd.f32 %v5359, %v5476
        %s5483 = scalar_lea.vmem [#allocation7], 24
        %v5484 = vld [vmem:[%s5483] sm:$0xff]
        %v5485 = vld [vmem:[%s5483 + $0x8] sm:$0xff]
        %v5486 = vld [vmem:[%s5483 + $0x10] sm:$0xff]
        %v5487 = vld [vmem:[%s5483 + $0x18] sm:$0xff]
        %s5488 = scalar_lea.vmem %s5, 336
        %v5489 = vld [vmem:[%s5488] sm:$0xff]
        %v5490 = vld [vmem:[%s5488 + $0x8] sm:$0xff]
        %v5491 = vld [vmem:[%s5488 + $0x10] sm:$0xff]
        %v5492 = vld [vmem:[%s5488 + $0x18] sm:$0xff]
        %v5493 = vld [vmem:[%s5488 + $0x20] sm:$0xff]
        %v5494 = vld [vmem:[%s5488 + $0x28] sm:$0xff]
        %v5495 = vld [vmem:[%s5488 + $0x30] sm:$0xff]
        %v5496 = vld [vmem:[%s5488 + $0x38] sm:$0xff]
        %v5497 = vld [vmem:[%s5488 + $0x40] sm:$0xff]
        %v5498 = vld [vmem:[%s5488 + $0x48] sm:$0xff]
        %v5499 = vld [vmem:[%s5488 + $0x50] sm:$0xff]
        %v5500 = vld [vmem:[%s5488 + $0x58] sm:$0xff]
        %v5501 = vld [vmem:[%s5488 + $0x60] sm:$0xff]
        %v5502 = vld [vmem:[%s5488 + $0x68] sm:$0xff]
        %v5504 = vsel %vm5119, %v5484, 0
        %v5507 = vsel %vm5119, %v5485, 0
        %v5510 = vsel %vm5119, %v5486, 0
        %v5513 = vsel %vm5119, %v5487, 0
        %5515 = vmatprep.subr.mxu0 0.0
        %5516 = vmatpush1.msra.mxu0 %v5489
        %5517 = vmatprep.subr.mxu0 0.0
        %5518 = vmatpush1.msra.mxu0 %v5490
        %5519 = vmatprep.subr.mxu0 0.0
        %5520 = vmatpush1.msra.mxu0 %v5491
        %5521 = vmatprep.subr.mxu0 0.0
        %5522 = vmatpush1.msra.mxu0 %v5492
        %5523 = vmatprep.subr.mxu0 0.0
        %5524 = vmatpush1.msra.mxu0 %v5493
        %5525 = vmatprep.subr.mxu0 0.0
        %5526 = vmatpush1.msra.mxu0 %v5494
        %5527 = vmatprep.subr.mxu0 0.0
        %5528 = vmatpush1.msra.mxu0 %v5495
        %5529 = vmatprep.subr.mxu0 0.0
        %5530 = vmatpush1.msra.mxu0 %v5496
        %5531 = vmatprep.subr.mxu0 0.0
        %5532 = vmatpush1.msra.mxu0 %v5497
        %5533 = vmatprep.subr.mxu0 0.0
        %5534 = vmatpush1.msra.mxu0 %v5498
        %5535 = vmatprep.subr.mxu0 0.0
        %5536 = vmatpush1.msra.mxu0 %v5499
        %5537 = vmatprep.subr.mxu0 0.0
        %5538 = vmatpush1.msra.mxu0 %v5500
        %5539 = vmatprep.subr.mxu0 0.0
        %5540 = vmatpush1.msra.mxu0 %v5501
        %5541 = vmatprep.subr.mxu0 0.0
        %5542 = vmatpush1.msra.mxu0 %v5502
        %5543 = vmatprep.subr.mxu0 0.0
        %5544 = vmatpush1.msra.mxu0 0.0
        %5545 = vmatprep.subr.mxu0 0.0
        %5546 = vmatpush1.msra.mxu0 0.0
        %5547 = vmatprep.subr.mxu0 0.0
        %5548 = vmatpush1.msra.mxu0 0.0
        %5549 = vmatprep.subr.mxu0 0.0
        %5550 = vmatpush1.msra.mxu0 0.0
        %5551 = vmatprep.subr.mxu0 0.0
        %5552 = vmatpush1.msra.mxu0 0.0
        %5553 = vmatprep.subr.mxu0 0.0
        %5554 = vmatpush1.msra.mxu0 0.0
        %5555 = vmatprep.subr.mxu0 0.0
        %5556 = vmatpush1.msra.mxu0 0.0
        %5557 = vmatprep.subr.mxu0 0.0
        %5558 = vmatpush1.msra.mxu0 0.0
        %5559 = vmatprep.subr.mxu0 0.0
        %5560 = vmatpush1.msra.mxu0 0.0
        %5561 = vmatprep.subr.mxu0 0.0
        %5562 = vmatpush1.msra.mxu0 0.0
        %5563 = vmatprep.subr.mxu0 0.0
        %5564 = vmatpush1.msra.mxu0 0.0
        %5565 = vmatprep.subr.mxu0 0.0
        %5566 = vmatpush1.msra.mxu0 0.0
        %5567 = vmatprep.subr.mxu0 0.0
        %5568 = vmatpush1.msra.mxu0 0.0
        %5569 = vmatprep.subr.mxu0 0.0
        %5570 = vmatpush1.msra.mxu0 0.0
        %5571 = vmatprep.subr.mxu0 0.0
        %5572 = vmatpush1.msra.mxu0 0.0
        %5573 = vmatprep.subr.mxu0 0.0
        %5574 = vmatpush1.msra.mxu0 0.0
        %5575 = vmatprep.subr.mxu0 0.0
        %5576 = vmatpush1.msra.mxu0 0.0
        %5577 = vmatprep.subr.mxu0 0.0
        %5578 = vmatpush1.msra.mxu0 0.0
        %5579 = vmatprep.mubr.f32.mxu0 0.0
        %5580 = vmatmul.mubr.f32.gmra.mrb[0].mxu0 %v5504
        %v5581 = vpop.f32.mrb[0].mxu0
        %v5582 = vadd.f32 0.0, %v5581
        %v5583 = vpop.f32.mrb[0].mxu0
        %5584 = vmatprep.mubr.f32.mxu0 0.0
        %5585 = vmatmul.mubr.f32.gmra.mrb[0].mxu0 %v5507
        %v5586 = vpop.f32.mrb[0].mxu0
        %v5587 = vadd.f32 0.0, %v5586
        %v5588 = vpop.f32.mrb[0].mxu0
        %5589 = vmatprep.mubr.f32.mxu0 0.0
        %5590 = vmatmul.mubr.f32.gmra.mrb[0].mxu0 %v5510
        %v5591 = vpop.f32.mrb[0].mxu0
        %v5592 = vadd.f32 0.0, %v5591
        %v5593 = vpop.f32.mrb[0].mxu0
        %5594 = vmatprep.mubr.f32.mxu0 0.0
        %5595 = vmatmul.mubr.f32.gmra.mrb[0].mxu0 %v5513
        %v5596 = vpop.f32.mrb[0].mxu0
        %v5597 = vadd.f32 0.0, %v5596
        %v5598 = vpop.f32.mrb[0].mxu0
        %5599 = vdwg.mxu0
        %v5600 = vadd.f32 %v5479, %v5582
        %v5601 = vadd.f32 %v5480, %v5587
        %v5602 = vadd.f32 %v5481, %v5592
        %v5603 = vadd.f32 %v5482, %v5597
        %s5604 = scalar_lea.vmem [#allocation7], 32
        %v5605 = vld [vmem:[%s5604] sm:$0xff]
        %v5606 = vld [vmem:[%s5604 + $0x8] sm:$0xff]
        %v5607 = vld [vmem:[%s5604 + $0x10] sm:$0xff]
        %v5608 = vld [vmem:[%s5604 + $0x18] sm:$0xff]
        %s5609 = scalar_lea.vmem %s5, 448
        %v5610 = vld [vmem:[%s5609] sm:$0xff]
        %v5611 = vld [vmem:[%s5609 + $0x8] sm:$0xff]
        %v5612 = vld [vmem:[%s5609 + $0x10] sm:$0xff]
        %v5613 = vld [vmem:[%s5609 + $0x18] sm:$0xff]
        %v5614 = vld [vmem:[%s5609 + $0x20] sm:$0xff]
        %v5615 = vld [vmem:[%s5609 + $0x28] sm:$0xff]
        %v5616 = vld [vmem:[%s5609 + $0x30] sm:$0xff]
        %v5617 = vld [vmem:[%s5609 + $0x38] sm:$0xff]
        %v5618 = vld [vmem:[%s5609 + $0x40] sm:$0xff]
        %v5619 = vld [vmem:[%s5609 + $0x48] sm:$0xff]
        %v5620 = vld [vmem:[%s5609 + $0x50] sm:$0xff]
        %v5621 = vld [vmem:[%s5609 + $0x58] sm:$0xff]
        %v5622 = vld [vmem:[%s5609 + $0x60] sm:$0xff]
        %v5623 = vld [vmem:[%s5609 + $0x68] sm:$0xff]
        %v5625 = vsel %vm5119, %v5605, 0
        %v5628 = vsel %vm5119, %v5606, 0
        %v5631 = vsel %vm5119, %v5607, 0
        %v5634 = vsel %vm5119, %v5608, 0
        %5636 = vmatprep.subr.mxu0 0.0
        %5637 = vmatpush1.msra.mxu0 %v5610
        %5638 = vmatprep.subr.mxu0 0.0
        %5639 = vmatpush1.msra.mxu0 %v5611
        %5640 = vmatprep.subr.mxu0 0.0
        %5641 = vmatpush1.msra.mxu0 %v5612
        %5642 = vmatprep.subr.mxu0 0.0
        %5643 = vmatpush1.msra.mxu0 %v5613
        %5644 = vmatprep.subr.mxu0 0.0
        %5645 = vmatpush1.msra.mxu0 %v5614
        %5646 = vmatprep.subr.mxu0 0.0
        %5647 = vmatpush1.msra.mxu0 %v5615
        %5648 = vmatprep.subr.mxu0 0.0
        %5649 = vmatpush1.msra.mxu0 %v5616
        %5650 = vmatprep.subr.mxu0 0.0
        %5651 = vmatpush1.msra.mxu0 %v5617
        %5652 = vmatprep.subr.mxu0 0.0
        %5653 = vmatpush1.msra.mxu0 %v5618
        %5654 = vmatprep.subr.mxu0 0.0
        %5655 = vmatpush1.msra.mxu0 %v5619
        %5656 = vmatprep.subr.mxu0 0.0
        %5657 = vmatpush1.msra.mxu0 %v5620
        %5658 = vmatprep.subr.mxu0 0.0
        %5659 = vmatpush1.msra.mxu0 %v5621
        %5660 = vmatprep.subr.mxu0 0.0
        %5661 = vmatpush1.msra.mxu0 %v5622
        %5662 = vmatprep.subr.mxu0 0.0
        %5663 = vmatpush1.msra.mxu0 %v5623
        %5664 = vmatprep.subr.mxu0 0.0
        %5665 = vmatpush1.msra.mxu0 0.0
        %5666 = vmatprep.subr.mxu0 0.0
        %5667 = vmatpush1.msra.mxu0 0.0
        %5668 = vmatprep.subr.mxu0 0.0
        %5669 = vmatpush1.msra.mxu0 0.0
        %5670 = vmatprep.subr.mxu0 0.0
        %5671 = vmatpush1.msra.mxu0 0.0
        %5672 = vmatprep.subr.mxu0 0.0
        %5673 = vmatpush1.msra.mxu0 0.0
        %5674 = vmatprep.subr.mxu0 0.0
        %5675 = vmatpush1.msra.mxu0 0.0
        %5676 = vmatprep.subr.mxu0 0.0
        %5677 = vmatpush1.msra.mxu0 0.0
        %5678 = vmatprep.subr.mxu0 0.0
        %5679 = vmatpush1.msra.mxu0 0.0
        %5680 = vmatprep.subr.mxu0 0.0
        %5681 = vmatpush1.msra.mxu0 0.0
        %5682 = vmatprep.subr.mxu0 0.0
        %5683 = vmatpush1.msra.mxu0 0.0
        %5684 = vmatprep.subr.mxu0 0.0
        %5685 = vmatpush1.msra.mxu0 0.0
        %5686 = vmatprep.subr.mxu0 0.0
        %5687 = vmatpush1.msra.mxu0 0.0
        %5688 = vmatprep.subr.mxu0 0.0
        %5689 = vmatpush1.msra.mxu0 0.0
        %5690 = vmatprep.subr.mxu0 0.0
        %5691 = vmatpush1.msra.mxu0 0.0
        %5692 = vmatprep.subr.mxu0 0.0
        %5693 = vmatpush1.msra.mxu0 0.0
        %5694 = vmatprep.subr.mxu0 0.0
        %5695 = vmatpush1.msra.mxu0 0.0
        %5696 = vmatprep.subr.mxu0 0.0
        %5697 = vmatpush1.msra.mxu0 0.0
        %5698 = vmatprep.subr.mxu0 0.0
        %5699 = vmatpush1.msra.mxu0 0.0
        %5700 = vmatprep.mubr.f32.mxu0 0.0
        %5701 = vmatmul.mubr.f32.gmra.mrb[0].mxu0 %v5625
        %v5702 = vpop.f32.mrb[0].mxu0
        %v5703 = vadd.f32 0.0, %v5702
        %v5704 = vpop.f32.mrb[0].mxu0
        %5705 = vmatprep.mubr.f32.mxu0 0.0
        %5706 = vmatmul.mubr.f32.gmra.mrb[0].mxu0 %v5628
        %v5707 = vpop.f32.mrb[0].mxu0
        %v5708 = vadd.f32 0.0, %v5707
        %v5709 = vpop.f32.mrb[0].mxu0
        %5710 = vmatprep.mubr.f32.mxu0 0.0
        %5711 = vmatmul.mubr.f32.gmra.mrb[0].mxu0 %v5631
        %v5712 = vpop.f32.mrb[0].mxu0
        %v5713 = vadd.f32 0.0, %v5712
        %v5714 = vpop.f32.mrb[0].mxu0
        %5715 = vmatprep.mubr.f32.mxu0 0.0
        %5716 = vmatmul.mubr.f32.gmra.mrb[0].mxu0 %v5634
        %v5717 = vpop.f32.mrb[0].mxu0
        %v5718 = vadd.f32 0.0, %v5717
        %v5719 = vpop.f32.mrb[0].mxu0
        %5720 = vdwg.mxu0
        %v5721 = vadd.f32 %v5600, %v5703
        %v5722 = vadd.f32 %v5601, %v5708
        %v5723 = vadd.f32 %v5602, %v5713
        %v5724 = vadd.f32 %v5603, %v5718
        %s5725 = scalar_lea.vmem [#allocation7], 40
        %v5726 = vld [vmem:[%s5725] sm:$0xff]
        %v5727 = vld [vmem:[%s5725 + $0x8] sm:$0xff]
        %v5728 = vld [vmem:[%s5725 + $0x10] sm:$0xff]
        %v5729 = vld [vmem:[%s5725 + $0x18] sm:$0xff]
        %s5730 = scalar_lea.vmem %s5, 560
        %v5731 = vld [vmem:[%s5730] sm:$0xff]
        %v5732 = vld [vmem:[%s5730 + $0x8] sm:$0xff]
        %v5733 = vld [vmem:[%s5730 + $0x10] sm:$0xff]
        %v5734 = vld [vmem:[%s5730 + $0x18] sm:$0xff]
        %v5735 = vld [vmem:[%s5730 + $0x20] sm:$0xff]
        %v5736 = vld [vmem:[%s5730 + $0x28] sm:$0xff]
        %v5737 = vld [vmem:[%s5730 + $0x30] sm:$0xff]
        %v5738 = vld [vmem:[%s5730 + $0x38] sm:$0xff]
        %v5739 = vld [vmem:[%s5730 + $0x40] sm:$0xff]
        %v5740 = vld [vmem:[%s5730 + $0x48] sm:$0xff]
        %v5741 = vld [vmem:[%s5730 + $0x50] sm:$0xff]
        %v5742 = vld [vmem:[%s5730 + $0x58] sm:$0xff]
        %v5743 = vld [vmem:[%s5730 + $0x60] sm:$0xff]
        %v5744 = vld [vmem:[%s5730 + $0x68] sm:$0xff]
        %v5746 = vsel %vm5119, %v5726, 0
        %v5749 = vsel %vm5119, %v5727, 0
        %v5752 = vsel %vm5119, %v5728, 0
        %v5755 = vsel %vm5119, %v5729, 0
        %5757 = vmatprep.subr.mxu0 0.0
        %5758 = vmatpush1.msra.mxu0 %v5731
        %5759 = vmatprep.subr.mxu0 0.0
        %5760 = vmatpush1.msra.mxu0 %v5732
        %5761 = vmatprep.subr.mxu0 0.0
        %5762 = vmatpush1.msra.mxu0 %v5733
        %5763 = vmatprep.subr.mxu0 0.0
        %5764 = vmatpush1.msra.mxu0 %v5734
        %5765 = vmatprep.subr.mxu0 0.0
        %5766 = vmatpush1.msra.mxu0 %v5735
        %5767 = vmatprep.subr.mxu0 0.0
        %5768 = vmatpush1.msra.mxu0 %v5736
        %5769 = vmatprep.subr.mxu0 0.0
        %5770 = vmatpush1.msra.mxu0 %v5737
        %5771 = vmatprep.subr.mxu0 0.0
        %5772 = vmatpush1.msra.mxu0 %v5738
        %5773 = vmatprep.subr.mxu0 0.0
        %5774 = vmatpush1.msra.mxu0 %v5739
        %5775 = vmatprep.subr.mxu0 0.0
        %5776 = vmatpush1.msra.mxu0 %v5740
        %5777 = vmatprep.subr.mxu0 0.0
        %5778 = vmatpush1.msra.mxu0 %v5741
        %5779 = vmatprep.subr.mxu0 0.0
        %5780 = vmatpush1.msra.mxu0 %v5742
        %5781 = vmatprep.subr.mxu0 0.0
        %5782 = vmatpush1.msra.mxu0 %v5743
        %5783 = vmatprep.subr.mxu0 0.0
        %5784 = vmatpush1.msra.mxu0 %v5744
        %5785 = vmatprep.subr.mxu0 0.0
        %5786 = vmatpush1.msra.mxu0 0.0
        %5787 = vmatprep.subr.mxu0 0.0
        %5788 = vmatpush1.msra.mxu0 0.0
        %5789 = vmatprep.subr.mxu0 0.0
        %5790 = vmatpush1.msra.mxu0 0.0
        %5791 = vmatprep.subr.mxu0 0.0
        %5792 = vmatpush1.msra.mxu0 0.0
        %5793 = vmatprep.subr.mxu0 0.0
        %5794 = vmatpush1.msra.mxu0 0.0
        %5795 = vmatprep.subr.mxu0 0.0
        %5796 = vmatpush1.msra.mxu0 0.0
        %5797 = vmatprep.subr.mxu0 0.0
        %5798 = vmatpush1.msra.mxu0 0.0
        %5799 = vmatprep.subr.mxu0 0.0
        %5800 = vmatpush1.msra.mxu0 0.0
        %5801 = vmatprep.subr.mxu0 0.0
        %5802 = vmatpush1.msra.mxu0 0.0
        %5803 = vmatprep.subr.mxu0 0.0
        %5804 = vmatpush1.msra.mxu0 0.0
        %5805 = vmatprep.subr.mxu0 0.0
        %5806 = vmatpush1.msra.mxu0 0.0
        %5807 = vmatprep.subr.mxu0 0.0
        %5808 = vmatpush1.msra.mxu0 0.0
        %5809 = vmatprep.subr.mxu0 0.0
        %5810 = vmatpush1.msra.mxu0 0.0
        %5811 = vmatprep.subr.mxu0 0.0
        %5812 = vmatpush1.msra.mxu0 0.0
        %5813 = vmatprep.subr.mxu0 0.0
        %5814 = vmatpush1.msra.mxu0 0.0
        %5815 = vmatprep.subr.mxu0 0.0
        %5816 = vmatpush1.msra.mxu0 0.0
        %5817 = vmatprep.subr.mxu0 0.0
        %5818 = vmatpush1.msra.mxu0 0.0
        %5819 = vmatprep.subr.mxu0 0.0
        %5820 = vmatpush1.msra.mxu0 0.0
        %5821 = vmatprep.mubr.f32.mxu0 0.0
        %5822 = vmatmul.mubr.f32.gmra.mrb[0].mxu0 %v5746
        %v5823 = vpop.f32.mrb[0].mxu0
        %v5824 = vadd.f32 0.0, %v5823
        %v5825 = vpop.f32.mrb[0].mxu0
        %5826 = vmatprep.mubr.f32.mxu0 0.0
        %5827 = vmatmul.mubr.f32.gmra.mrb[0].mxu0 %v5749
        %v5828 = vpop.f32.mrb[0].mxu0
        %v5829 = vadd.f32 0.0, %v5828
        %v5830 = vpop.f32.mrb[0].mxu0
        %5831 = vmatprep.mubr.f32.mxu0 0.0
        %5832 = vmatmul.mubr.f32.gmra.mrb[0].mxu0 %v5752
        %v5833 = vpop.f32.mrb[0].mxu0
        %v5834 = vadd.f32 0.0, %v5833
        %v5835 = vpop.f32.mrb[0].mxu0
        %5836 = vmatprep.mubr.f32.mxu0 0.0
        %5837 = vmatmul.mubr.f32.gmra.mrb[0].mxu0 %v5755
        %v5838 = vpop.f32.mrb[0].mxu0
        %v5839 = vadd.f32 0.0, %v5838
        %v5840 = vpop.f32.mrb[0].mxu0
        %5841 = vdwg.mxu0
        %v5842 = vadd.f32 %v5721, %v5824
        %v5843 = vadd.f32 %v5722, %v5829
        %v5844 = vadd.f32 %v5723, %v5834
        %v5845 = vadd.f32 %v5724, %v5839
        %s5846 = scalar_lea.vmem [#allocation7], 48
        %v5847 = vld [vmem:[%s5846] sm:$0xff]
        %v5848 = vld [vmem:[%s5846 + $0x8] sm:$0xff]
        %v5849 = vld [vmem:[%s5846 + $0x10] sm:$0xff]
        %v5850 = vld [vmem:[%s5846 + $0x18] sm:$0xff]
        %s5851 = scalar_lea.vmem %s5, 672
        %v5852 = vld [vmem:[%s5851] sm:$0xff]
        %v5853 = vld [vmem:[%s5851 + $0x8] sm:$0xff]
        %v5854 = vld [vmem:[%s5851 + $0x10] sm:$0xff]
        %v5855 = vld [vmem:[%s5851 + $0x18] sm:$0xff]
        %v5856 = vld [vmem:[%s5851 + $0x20] sm:$0xff]
        %v5857 = vld [vmem:[%s5851 + $0x28] sm:$0xff]
        %v5858 = vld [vmem:[%s5851 + $0x30] sm:$0xff]
        %v5859 = vld [vmem:[%s5851 + $0x38] sm:$0xff]
        %v5860 = vld [vmem:[%s5851 + $0x40] sm:$0xff]
        %v5861 = vld [vmem:[%s5851 + $0x48] sm:$0xff]
        %v5862 = vld [vmem:[%s5851 + $0x50] sm:$0xff]
        %v5863 = vld [vmem:[%s5851 + $0x58] sm:$0xff]
        %v5864 = vld [vmem:[%s5851 + $0x60] sm:$0xff]
        %v5865 = vld [vmem:[%s5851 + $0x68] sm:$0xff]
        %v5867 = vsel %vm5119, %v5847, 0
        %v5870 = vsel %vm5119, %v5848, 0
        %v5873 = vsel %vm5119, %v5849, 0
        %v5876 = vsel %vm5119, %v5850, 0
        %5878 = vmatprep.subr.mxu0 0.0
        %5879 = vmatpush1.msra.mxu0 %v5852
        %5880 = vmatprep.subr.mxu0 0.0
        %5881 = vmatpush1.msra.mxu0 %v5853
        %5882 = vmatprep.subr.mxu0 0.0
        %5883 = vmatpush1.msra.mxu0 %v5854
        %5884 = vmatprep.subr.mxu0 0.0
        %5885 = vmatpush1.msra.mxu0 %v5855
        %5886 = vmatprep.subr.mxu0 0.0
        %5887 = vmatpush1.msra.mxu0 %v5856
        %5888 = vmatprep.subr.mxu0 0.0
        %5889 = vmatpush1.msra.mxu0 %v5857
        %5890 = vmatprep.subr.mxu0 0.0
        %5891 = vmatpush1.msra.mxu0 %v5858
        %5892 = vmatprep.subr.mxu0 0.0
        %5893 = vmatpush1.msra.mxu0 %v5859
        %5894 = vmatprep.subr.mxu0 0.0
        %5895 = vmatpush1.msra.mxu0 %v5860
        %5896 = vmatprep.subr.mxu0 0.0
        %5897 = vmatpush1.msra.mxu0 %v5861
        %5898 = vmatprep.subr.mxu0 0.0
        %5899 = vmatpush1.msra.mxu0 %v5862
        %5900 = vmatprep.subr.mxu0 0.0
        %5901 = vmatpush1.msra.mxu0 %v5863
        %5902 = vmatprep.subr.mxu0 0.0
        %5903 = vmatpush1.msra.mxu0 %v5864
        %5904 = vmatprep.subr.mxu0 0.0
        %5905 = vmatpush1.msra.mxu0 %v5865
        %5906 = vmatprep.subr.mxu0 0.0
        %5907 = vmatpush1.msra.mxu0 0.0
        %5908 = vmatprep.subr.mxu0 0.0
        %5909 = vmatpush1.msra.mxu0 0.0
        %5910 = vmatprep.subr.mxu0 0.0
        %5911 = vmatpush1.msra.mxu0 0.0
        %5912 = vmatprep.subr.mxu0 0.0
        %5913 = vmatpush1.msra.mxu0 0.0
        %5914 = vmatprep.subr.mxu0 0.0
        %5915 = vmatpush1.msra.mxu0 0.0
        %5916 = vmatprep.subr.mxu0 0.0
        %5917 = vmatpush1.msra.mxu0 0.0
        %5918 = vmatprep.subr.mxu0 0.0
        %5919 = vmatpush1.msra.mxu0 0.0
        %5920 = vmatprep.subr.mxu0 0.0
        %5921 = vmatpush1.msra.mxu0 0.0
        %5922 = vmatprep.subr.mxu0 0.0
        %5923 = vmatpush1.msra.mxu0 0.0
        %5924 = vmatprep.subr.mxu0 0.0
        %5925 = vmatpush1.msra.mxu0 0.0
        %5926 = vmatprep.subr.mxu0 0.0
        %5927 = vmatpush1.msra.mxu0 0.0
        %5928 = vmatprep.subr.mxu0 0.0
        %5929 = vmatpush1.msra.mxu0 0.0
        %5930 = vmatprep.subr.mxu0 0.0
        %5931 = vmatpush1.msra.mxu0 0.0
        %5932 = vmatprep.subr.mxu0 0.0
        %5933 = vmatpush1.msra.mxu0 0.0
        %5934 = vmatprep.subr.mxu0 0.0
        %5935 = vmatpush1.msra.mxu0 0.0
        %5936 = vmatprep.subr.mxu0 0.0
        %5937 = vmatpush1.msra.mxu0 0.0
        %5938 = vmatprep.subr.mxu0 0.0
        %5939 = vmatpush1.msra.mxu0 0.0
        %5940 = vmatprep.subr.mxu0 0.0
        %5941 = vmatpush1.msra.mxu0 0.0
        %5942 = vmatprep.mubr.f32.mxu0 0.0
        %5943 = vmatmul.mubr.f32.gmra.mrb[0].mxu0 %v5867
        %v5944 = vpop.f32.mrb[0].mxu0
        %v5945 = vadd.f32 0.0, %v5944
        %v5946 = vpop.f32.mrb[0].mxu0
        %5947 = vmatprep.mubr.f32.mxu0 0.0
        %5948 = vmatmul.mubr.f32.gmra.mrb[0].mxu0 %v5870
        %v5949 = vpop.f32.mrb[0].mxu0
        %v5950 = vadd.f32 0.0, %v5949
        %v5951 = vpop.f32.mrb[0].mxu0
        %5952 = vmatprep.mubr.f32.mxu0 0.0
        %5953 = vmatmul.mubr.f32.gmra.mrb[0].mxu0 %v5873
        %v5954 = vpop.f32.mrb[0].mxu0
        %v5955 = vadd.f32 0.0, %v5954
        %v5956 = vpop.f32.mrb[0].mxu0
        %5957 = vmatprep.mubr.f32.mxu0 0.0
        %5958 = vmatmul.mubr.f32.gmra.mrb[0].mxu0 %v5876
        %v5959 = vpop.f32.mrb[0].mxu0
        %v5960 = vadd.f32 0.0, %v5959
        %v5961 = vpop.f32.mrb[0].mxu0
        %5962 = vdwg.mxu0
        %v5963 = vadd.f32 %v5842, %v5945
        %v5964 = vadd.f32 %v5843, %v5950
        %v5965 = vadd.f32 %v5844, %v5955
        %v5966 = vadd.f32 %v5845, %v5960
        %v5967 = vld [vmem:[%s6] sm:$0x1]
        %v5969 = vlaneseq
        %v5970 = vshrl.u32 %v5969, 7
        %v5971 = vsub.s32 0, %v5970
        %v5972 = vrot.slane %v5967, %v5971
        %v5974 = vadd.f32 %v5963, %v5972
        %v5975 = vadd.f32 %v5964, %v5972
        %v5976 = vadd.f32 %v5965, %v5972
        %v5977 = vadd.f32 %v5966, %v5972
        %v5978 = vmax.f32 %v5974, 0.0
        %v5979 = vmax.f32 %v5975, 0.0
        %v5980 = vmax.f32 %v5976, 0.0
        %v5981 = vmax.f32 %v5977, 0.0
        %vm5982 = vcmask 257024
        %5983 = vst.msk [vmem:[%s286] sm:$0xf] %vm5982, %v5978
        %5984 = vst.msk [vmem:[%s286 + $0x4] sm:$0xf] %vm5982, %v5979
        %5985 = vst.msk [vmem:[%s286 + $0x8] sm:$0xf] %vm5982, %v5980
        %5986 = vst.msk [vmem:[%s286 + $0xc] sm:$0xf] %vm5982, %v5981
        %s5987 = sand.u32 %s182, 1
        %s5988 = scalar_lea.sflag [#allocation12], %s5987
        %s5989 = sand.u32 %s182, 1
        %s5990 = smul.addr %s5989, 16
        %s5991 = scalar_lea.vmem [#allocation13], %s5990
        // Predicated region
        $region53: #{motion_encoder_forward.1} parent=47 // pred_check
          %p5992 = pneg %p192
        $region54: #{motion_encoder_forward.1} parent=47 // pred_check_branch
          %5994 = sbr.rel (%p5992) target = $region56
        $region55: #{motion_encoder_forward.1} parent=47 // pred_region
          %s5996 = ssub.s32 256, 256
          %5997 = vsyncadd %s5988, %s5996
          %s5998 = smul.addr %s22, 4
          %s5999 = smul.addr %s5998, 64
          %s6000 = scalar_lea.hbm %s7, %s5999
          %s6001 = sshll.u32 %s5991, 4
          %s6002 = int_to_ptr.vmem [resolvable:$true] %s6001
          %6007 = dma.vmem_to_hbm [thread:$0]  %s6002, 256, %s6000, %s5988, 64, 64, 4
        $region56: #{motion_encoder_forward.1} parent=47 // pred_fallthru
          _
      $region48: #{motion_encoder_forward.1} parent=5 // pred_fallthru
        _
      %p6008 = scmp.le.s32.totalorder 2, %s17
      // Predicated region
      $region57: #{motion_encoder_forward.1} parent=5 // pred_check
        %p6009 = pneg %p6008
      $region58: #{motion_encoder_forward.1} parent=5 // pred_check_branch
        %6011 = sbr.rel (%p6009) target = $region60
      $region59: #{motion_encoder_forward.1} parent=5 // pred_region
        %s6012 = ssub.s32 %s17, 2
        // Predicated region
        $region61: #{motion_encoder_forward.1} parent=59 // pred_check
          %p6013 = pneg %p198
        $region62: #{motion_encoder_forward.1} parent=59 // pred_check_branch
          %6015 = sbr.rel (%p6013) target = $region64
        $region63: #{motion_encoder_forward.1} parent=59 // pred_region
          %s6016 = sand.u32 %s183, 1
          %s6017 = scalar_lea.sflag [#allocation12], %s6016
          %s6018 = sand.u32 %s183, 1
          %s6019 = smul.addr %s6018, 16
          %s6020 = scalar_lea.vmem [#allocation13], %s6019
          %6021 = dma.done %s6017, 256
        $region64: #{motion_encoder_forward.1} parent=59 // pred_fallthru
          _
      $region60: #{motion_encoder_forward.1} parent=5 // pred_fallthru
        _
    $region6: #{motion_encoder_forward.1} parent=1 // loop_footer
      %s21 = sadd.s32 1, %s17
    $region7: #{motion_encoder_forward.1} parent=1 // loop_footer_branch
      %16 = sbr.rel target = $region3
    $region8: #{motion_encoder_forward.1} parent=1 // loop_exit
      _
    %6022 = vsyncpa [#allocation11], 1
    %s6023 = scalar_lea.sflag [#allocation11], 1
    %6024 = vsyncpa %s6023, 1
    %6025 = vsyncpa [#allocation12], 1
    %s6026 = scalar_lea.sflag [#allocation12], 1
    %6027 = vsyncpa %s6026, 1

</llo_original>
